<compile_context>
chip_gen: v5e
topology: v5e:2x2
jax: 0.10.0
libtpu: 0.0.40
codegen_flags: <defaults>
</compile_context>

<pallas_src>
import functools

import jax
import jax.numpy as jnp
from jax.experimental import pallas as pl
from jax.experimental.pallas import tpu as pltpu


LANE = 128    # lane-dense width of all kernel-visible activation panels
TM = 512      # output-row tile (parallel axis)
TK = 1024     # reduction tile (arbitrary axis, last in grid)

_VMEM = pltpu.MemorySpace.VMEM


def _round_up(v, m):
    return ((v + m - 1) // m) * m


def _grid_cfg(n):
    """Return (n_pad, tm, tk) for an [n, n] square operand."""
    if n <= TM:
        n_pad = _round_up(n, LANE)
        return n_pad, n_pad, n_pad            # single-tile collapse
    n_pad = _round_up(n, TM)
    tk = TK if n_pad % TK == 0 else TM
    return n_pad, TM, tk


# ----------------------------------------------------------------------------
# Pallas kernels
# ----------------------------------------------------------------------------
def _gcn_hidden_kernel(a_ref, b_ref, w_ref, o_ref, acc_ref, *, tk):
    """out = relu(A @ B) @ W, tiled over (row tiles, K tiles).

    A tile : (tm, tk) bf16 (streamed).
    B      : (N, wb) bf16, VMEM-resident; sliced per K step with pl.ds.
    W      : (wb, wo) bf16, VMEM-resident.
    acc    : (tm, wb) f32 scratch; relu + small weight matmul once per output
             tile in the epilogue.
    """
    k = pl.program_id(1)

    @pl.when(k == 0)
    def _init():
        acc_ref[...] = jnp.zeros_like(acc_ref)

    start = pl.multiple_of(k * tk, tk)
    b_blk = b_ref[pl.ds(start, tk), :]
    acc_ref[...] += jnp.dot(a_ref[...], b_blk,
                            preferred_element_type=jnp.float32)

    @pl.when(k == pl.num_programs(1) - 1)
    def _finalize():
        h = jnp.maximum(acc_ref[...], 0.0).astype(w_ref.dtype)
        o_ref[...] = jnp.dot(h, w_ref[...],
                             preferred_element_type=jnp.float32
                             ).astype(o_ref.dtype)


def _matmul_kernel(a_ref, b_ref, o_ref, *, tk):
    """out = A @ B, tiled over (row tiles, K tiles).

    A tile : (tm, tk) streamed (bf16 or f32).
    B      : (N, d) VMEM-resident, sliced per K step.
    o      : (tm, d) f32, block index constant along K -> accumulate in place
             (no scratch, no finalize copy).
    """
    k = pl.program_id(1)

    @pl.when(k == 0)
    def _init():
        o_ref[...] = jnp.zeros_like(o_ref)

    start = pl.multiple_of(k * tk, tk)
    b_blk = b_ref[pl.ds(start, tk), :]
    o_ref[...] += jnp.dot(a_ref[...], b_blk,
                          preferred_element_type=jnp.float32)


# ----------------------------------------------------------------------------
# pallas_call wrappers
# ----------------------------------------------------------------------------
def gcn_hidden(a_bf, b_bf, w_bf, *, tm, tk):
    """relu(A @ B) @ W  ->  bf16 [N, wo] (consumed as an MXU input next)."""
    n = a_bf.shape[0]
    wb = b_bf.shape[1]
    wo = w_bf.shape[1]
    return pl.pallas_call(
        functools.partial(_gcn_hidden_kernel, tk=tk),
        out_shape=jax.ShapeDtypeStruct((n, wo), jnp.bfloat16),
        grid_spec=pltpu.PrefetchScalarGridSpec(
            num_scalar_prefetch=0,
            grid=(n // tm, n // tk),
            in_specs=[
                pl.BlockSpec((tm, tk), lambda i, k: (i, k), memory_space=_VMEM),
                # B panel: whole array resident in VMEM (index constant).
                pl.BlockSpec((n, wb), lambda i, k: (0, 0), memory_space=_VMEM),
                pl.BlockSpec((wb, wo), lambda i, k: (0, 0), memory_space=_VMEM),
            ],
            out_specs=pl.BlockSpec((tm, wo), lambda i, k: (i, 0),
                                   memory_space=_VMEM),
            scratch_shapes=[pltpu.VMEM((tm, wb), jnp.float32)],
        ),
        compiler_params=pltpu.CompilerParams(
            dimension_semantics=("parallel", "arbitrary")),
    )(a_bf, b_bf, w_bf)


def tiled_matmul(a_op, b_panel, *, tm, tk):
    """A @ B with f32 accumulation directly into the f32 output block.

    Used both for EMB = A_bf16 @ H2_bf16 and Z = C_f32 @ EMB_f32.
    """
    n = a_op.shape[0]
    d = b_panel.shape[1]
    return pl.pallas_call(
        functools.partial(_matmul_kernel, tk=tk),
        out_shape=jax.ShapeDtypeStruct((n, d), jnp.float32),
        grid_spec=pltpu.PrefetchScalarGridSpec(
            num_scalar_prefetch=0,
            grid=(n // tm, n // tk),
            in_specs=[
                pl.BlockSpec((tm, tk), lambda i, k: (i, k), memory_space=_VMEM),
                # B panel: whole array resident in VMEM (index constant).
                pl.BlockSpec((n, d), lambda i, k: (0, 0), memory_space=_VMEM),
            ],
            out_specs=pl.BlockSpec((tm, d), lambda i, k: (i, 0),
                                   memory_space=_VMEM),
        ),
        compiler_params=pltpu.CompilerParams(
            dimension_semantics=("parallel", "arbitrary")),
    )(a_op, b_panel)


# ----------------------------------------------------------------------------
# stMGSC forward (glue in plain JAX, hot path in Pallas)
# ----------------------------------------------------------------------------
def init_params(key, nfeatX, nfeatI, hidden_dims, num_sample, weight_c=0.01):
    h0, h1 = hidden_dims
    k = jax.random.split(key, 5)

    def w(kk, fan_in, fan_out):
        return jax.random.normal(kk, (fan_in, fan_out), jnp.float32) / (fan_in ** 0.5)

    return {
        "Wx1": w(k[0], nfeatX, h0),
        "Wx2": w(k[1], h0, h1),
        "Wi1": w(k[2], nfeatI, h0),
        "Wi2": w(k[3], h0, h1),
        # SelfExpression.Coefficient = weight_c * randn(n, n)
        "Coefficient": weight_c
        * jax.random.normal(k[4], (num_sample, num_sample), jnp.float32),
    }


def prepare_adjacency(a):
    """One-time (outside the train step): cast A to bf16 and zero-pad to the
    tile multiple.  A is static across steps, so the bf16 copy is reused."""
    n = a.shape[0]
    n_pad, _, _ = _grid_cfg(n)
    a_bf = a.astype(jnp.bfloat16)
    if n_pad != n:
        a_bf = jnp.pad(a_bf, ((0, n_pad - n), (0, n_pad - n)))
    return a_bf


@jax.jit
def stmgsc_forward(params, x, i, a_bf):
    n = x.shape[0]
    n_pad, tm, tk = _grid_cfg(n)
    assert a_bf.shape[0] == n_pad, "a_bf must come from prepare_adjacency()"

    h0 = params["Wx1"].shape[1]
    h1 = params["Wx2"].shape[1]
    w1p = _round_up(2 * h0, LANE)   # lane-dense width of layer-1 activations
    w2p = _round_up(2 * h1, LANE)   # lane-dense width of layer-2 embeddings

    # Tiny per-modality input projections stay in XLA; both modalities are
    # batched through a single lane-dense [N_pad, 128] panel (A @ (X W)).
    xw = jnp.dot(x, params["Wx1"])                       # [N, h0]
    iw = jnp.dot(i, params["Wi1"])                       # [N, h0]
    b1 = jnp.concatenate([xw, iw], axis=1)               # [N, 2*h0]
    b1 = jnp.pad(b1, ((0, n_pad - n), (0, w1p - 2 * h0))).astype(jnp.bfloat16)

    # Block-diagonal second-layer weight [Wx2 0; 0 Wi2], zero-padded so every
    # kernel-visible last dim is a 128-multiple.
    wcat2 = jnp.zeros((w1p, w2p), jnp.float32)
    wcat2 = wcat2.at[:h0, :h1].set(params["Wx2"])
    wcat2 = wcat2.at[h0:2 * h0, h1:2 * h1].set(params["Wi2"])
    wcat2 = wcat2.astype(jnp.bfloat16)

    # Coefficient stays f32: no materialized bf16 copy, no extra HBM pass.
    c = params["Coefficient"]
    if n_pad != n:
        c = jnp.pad(c, ((0, n_pad - n), (0, n_pad - n)))

    # Kernel 1: H2 = relu(A @ B1) @ Wcat2   (both modalities in one pass)
    h2 = gcn_hidden(a_bf, b1, wcat2, tm=tm, tk=tk)       # [N_pad, w2p] bf16
    # Kernel 2: EMB = A @ H2                 -> [emb_x | emb_i | 0-pad]
    emb = tiled_matmul(a_bf, h2, tm=tm, tk=tk)           # [N_pad, w2p] f32
    # Kernel 3: Z = Coefficient @ EMB        (self-expression, f32 x f32)
    z = tiled_matmul(c, emb, tm=tm, tk=tk)               # [N_pad, w2p] f32

    emb_x, emb_i = emb[:n, :h1], emb[:n, h1:2 * h1]
    zx, zi = z[:n, :h1], z[:n, h1:2 * h1]
    return [emb_x, emb_i], [zx, zi]


# ----------------------------------------------------------------------------
# Pure-JAX f32 reference for sanity check
# ----------------------------------------------------------------------------
def stmgsc_ref(params, x, i, a):
    hx = jnp.maximum(a @ (x @ params["Wx1"]), 0.0)
    emb_x = a @ (hx @ params["Wx2"])
    hi = jnp.maximum(a @ (i @ params["Wi1"]), 0.0)
    emb_i = a @ (hi @ params["Wi2"])
    zx = params["Coefficient"] @ emb_x
    zi = params["Coefficient"] @ emb_i
    return [emb_x, emb_i], [zx, zi]


def _run_case(seed, num_sample, nfeatX, nfeatI, hidden_dims):
    key = jax.random.PRNGKey(seed)
    kx, ki, ka, kp = jax.random.split(key, 4)

    x = jax.random.normal(kx, (num_sample, nfeatX), jnp.float32)
    i = jax.random.normal(ki, (num_sample, nfeatI), jnp.float32)
    # symmetric row-normalized-ish adjacency
    a_raw = jax.random.uniform(ka, (num_sample, num_sample), jnp.float32)
    a_sym = 0.5 * (a_raw + a_raw.T) + jnp.eye(num_sample, dtype=jnp.float32)
    a = a_sym / jnp.sum(a_sym, axis=1, keepdims=True)

    params = init_params(kp, nfeatX, nfeatI, hidden_dims, num_sample)

    a_bf = prepare_adjacency(a)   # cast + pad ONCE, outside the hot path
    (emb_x, emb_i), (zx, zi) = stmgsc_forward(params, x, i, a_bf)
    jax.block_until_ready((emb_x, emb_i, zx, zi))

    # correctness check vs pure-JAX f32 reference (bf16 MXU inputs on A/H2 ->
    # loosened tolerance; f32 accumulation / f32 self-expression keep errors low)
    (rex, rei), (rzx, rzi) = stmgsc_ref(params, x, i, a)
    for got, want in [(emb_x, rex), (emb_i, rei), (zx, rzx), (zi, rzi)]:
        assert got.shape == want.shape, "shape mismatch vs reference"
        assert jnp.allclose(got, want, atol=3e-3, rtol=5e-2), \
            "mismatch vs reference"


if __name__ == "__main__":
    # Demo size: N=512 collapses to a single (512, 512) tile.
    _run_case(seed=0, num_sample=512, nfeatX=48, nfeatI=32, hidden_dims=[64, 32])
    # Non-divisible N exercises the padding / multi-row-tile path (N_pad=1024).
    _run_case(seed=1, num_sample=640, nfeatX=48, nfeatI=32, hidden_dims=[64, 32])
    print("KERNEL_OK")
</pallas_src>

<mosaic_0001>
module attributes {stable_mosaic.version = 11 : i64} {
  func.func @_gcn_hidden_kernel(%arg0: i32, %arg1: i32, %arg2: memref<512x512xbf16, #tpu.memory_space<vmem>>, %arg3: memref<512x128xbf16, #tpu.memory_space<vmem>>, %arg4: memref<128x128xbf16, #tpu.memory_space<vmem>>, %arg5: memref<512x128xbf16, #tpu.memory_space<vmem>>, %arg6: memref<512x128xf32, #tpu.memory_space<vmem>>) attributes {dimension_semantics = [#tpu.dimension_semantics<parallel>, #tpu.dimension_semantics<arbitrary>], iteration_bounds = array<i64: 1, 1>, scalar_prefetch = 0 : i64, scratch_operands = 1 : i64, tpu.core_type = #tpu.core_type<tc>, window_params = [{transform_indices = @transform_0, window_bounds = array<i64: 512, 512>}, {pipeline_mode = #tpu.pipeline_mode<synchronous>, transform_indices = @transform_1, window_bounds = array<i64: 512, 128>}, {pipeline_mode = #tpu.pipeline_mode<synchronous>, transform_indices = @transform_2, window_bounds = array<i64: 128, 128>}, {transform_indices = @transform_3, window_bounds = array<i64: 512, 128>}]} {
    %c0_i32 = arith.constant 0 : i32
    %0 = arith.cmpi eq, %arg1, %c0_i32 : i32
    %1 = arith.extui %0 : i1 to i32
    %c0_i32_0 = arith.constant 0 : i32
    %2 = arith.cmpi ne, %1, %c0_i32_0 : i32
    scf.if %2 {
      %cst_9 = arith.constant 0.000000e+00 : f32
      %15 = vector.broadcast %cst_9 : f32 to vector<512x128xf32>
      %c0_10 = arith.constant 0 : index
      %c0_11 = arith.constant 0 : index
      %16 = vector.load %arg6[%c0_10, %c0_11] : memref<512x128xf32, #tpu.memory_space<vmem>>, vector<512x128xf32>
      tpu.vector_store %arg6[%c0_10, %c0_11], %15 {strides = array<i32>} : memref<512x128xf32, #tpu.memory_space<vmem>>, vector<512x128xf32>,
    } else {
    }
    %c512_i32 = arith.constant 512 : i32
    %3 = arith.muli %arg1, %c512_i32 : i32
    %4 = tpu.assume_multiple %3, 512 : i32
    %5 = arith.index_cast %4 : i32 to index
    %c0 = arith.constant 0 : index
    %6 = vector.load %arg3[%5, %c0] : memref<512x128xbf16, #tpu.memory_space<vmem>>, vector<512x128xbf16>
    %c0_1 = arith.constant 0 : index
    %c0_2 = arith.constant 0 : index
    %7 = vector.load %arg6[%c0_1, %c0_2] : memref<512x128xf32, #tpu.memory_space<vmem>>, vector<512x128xf32>
    %c0_3 = arith.constant 0 : index
    %c0_4 = arith.constant 0 : index
    %8 = vector.load %arg2[%c0_3, %c0_4] : memref<512x512xbf16, #tpu.memory_space<vmem>>, vector<512x512xbf16>
    %cst = arith.constant dense<0.000000e+00> : vector<512x128xf32>
    %9 = tpu.matmul %8, %6, %cst {dimension_numbers = #tpu.dot_dimension_numbers<[1], [0], [0], [1], [0, 0, 1, 1], [], []>} : vector<512x512xbf16>, vector<512x128xbf16>, vector<512x128xf32> -> vector<512x128xf32>
    %10 = arith.addf %7, %9 : vector<512x128xf32>
    %c0_5 = arith.constant 0 : index
    %c0_6 = arith.constant 0 : index
    %11 = vector.load %arg6[%c0_5, %c0_6] : memref<512x128xf32, #tpu.memory_space<vmem>>, vector<512x128xf32>
    tpu.vector_store %arg6[%c0_5, %c0_6], %10 {strides = array<i32>} : memref<512x128xf32, #tpu.memory_space<vmem>>, vector<512x128xf32>,
    %c0_i32_7 = arith.constant 0 : i32
    %12 = arith.cmpi eq, %arg1, %c0_i32_7 : i32
    %13 = arith.extui %12 : i1 to i32
    %c0_i32_8 = arith.constant 0 : i32
    %14 = arith.cmpi ne, %13, %c0_i32_8 : i32
    scf.if %14 {
      %c0_9 = arith.constant 0 : index
      %c0_10 = arith.constant 0 : index
      %15 = vector.load %arg6[%c0_9, %c0_10] : memref<512x128xf32, #tpu.memory_space<vmem>>, vector<512x128xf32>
      %cst_11 = arith.constant 0.000000e+00 : f32
      %16 = vector.broadcast %cst_11 : f32 to vector<512x128xf32>
      %17 = arith.maximumf %15, %16 : vector<512x128xf32>
      %18 = arith.truncf %17 : vector<512x128xf32> to vector<512x128xbf16>
      %c0_12 = arith.constant 0 : index
      %c0_13 = arith.constant 0 : index
      %19 = vector.load %arg4[%c0_12, %c0_13] : memref<128x128xbf16, #tpu.memory_space<vmem>>, vector<128x128xbf16>
      %cst_14 = arith.constant dense<0.000000e+00> : vector<512x128xf32>
      %20 = tpu.matmul %18, %19, %cst_14 {dimension_numbers = #tpu.dot_dimension_numbers<[1], [0], [0], [1], [0, 0, 1, 1], [], []>} : vector<512x128xbf16>, vector<128x128xbf16>, vector<512x128xf32> -> vector<512x128xf32>
      %21 = arith.truncf %20 : vector<512x128xf32> to vector<512x128xbf16>
      %c0_15 = arith.constant 0 : index
      %c0_16 = arith.constant 0 : index
      %22 = vector.load %arg5[%c0_15, %c0_16] : memref<512x128xbf16, #tpu.memory_space<vmem>>, vector<512x128xbf16>
      tpu.vector_store %arg5[%c0_15, %c0_16], %21 {strides = array<i32>} : memref<512x128xbf16, #tpu.memory_space<vmem>>, vector<512x128xbf16>,
    } else {
    }
    return
  }
  func.func @transform_0(%arg0: i32, %arg1: i32) -> (i32, i32) {
    %c0_i32 = arith.constant 0 : i32
    return %arg0, %arg1 : i32, i32
  }
  func.func @transform_1(%arg0: i32, %arg1: i32) -> (i32, i32) {
    %c0_i32 = arith.constant 0 : i32
    %c0_i32_0 = arith.constant 0 : i32
    %c0_i32_1 = arith.constant 0 : i32
    return %c0_i32, %c0_i32_0 : i32, i32
  }
  func.func @transform_2(%arg0: i32, %arg1: i32) -> (i32, i32) {
    %c0_i32 = arith.constant 0 : i32
    %c0_i32_0 = arith.constant 0 : i32
    %c0_i32_1 = arith.constant 0 : i32
    return %c0_i32, %c0_i32_0 : i32, i32
  }
  func.func @transform_3(%arg0: i32, %arg1: i32) -> (i32, i32) {
    %c0_i32 = arith.constant 0 : i32
    %c0_i32_0 = arith.constant 0 : i32
    return %arg0, %c0_i32 : i32, i32
  }
}

module attributes {stable_mosaic.version = 11 : i64} {
  func.func @_matmul_kernel(%arg0: i32, %arg1: i32, %arg2: memref<512x512xbf16, #tpu.memory_space<vmem>>, %arg3: memref<512x128xbf16, #tpu.memory_space<vmem>>, %arg4: memref<512x128xf32, #tpu.memory_space<vmem>>) attributes {dimension_semantics = [#tpu.dimension_semantics<parallel>, #tpu.dimension_semantics<arbitrary>], iteration_bounds = array<i64: 1, 1>, scalar_prefetch = 0 : i64, scratch_operands = 0 : i64, tpu.core_type = #tpu.core_type<tc>, window_params = [{transform_indices = @transform_0, window_bounds = array<i64: 512, 512>}, {pipeline_mode = #tpu.pipeline_mode<synchronous>, transform_indices = @transform_1, window_bounds = array<i64: 512, 128>}, {transform_indices = @transform_2, window_bounds = array<i64: 512, 128>}]} {
    %c0_i32 = arith.constant 0 : i32
    %0 = arith.cmpi eq, %arg1, %c0_i32 : i32
    %1 = arith.extui %0 : i1 to i32
    %c0_i32_0 = arith.constant 0 : i32
    %2 = arith.cmpi ne, %1, %c0_i32_0 : i32
    scf.if %2 {
      %cst_7 = arith.constant 0.000000e+00 : f32
      %12 = vector.broadcast %cst_7 : f32 to vector<512x128xf32>
      %c0_8 = arith.constant 0 : index
      %c0_9 = arith.constant 0 : index
      %13 = vector.load %arg4[%c0_8, %c0_9] : memref<512x128xf32, #tpu.memory_space<vmem>>, vector<512x128xf32>
      tpu.vector_store %arg4[%c0_8, %c0_9], %12 {strides = array<i32>} : memref<512x128xf32, #tpu.memory_space<vmem>>, vector<512x128xf32>,
    } else {
    }
    %c512_i32 = arith.constant 512 : i32
    %3 = arith.muli %arg1, %c512_i32 : i32
    %4 = tpu.assume_multiple %3, 512 : i32
    %5 = arith.index_cast %4 : i32 to index
    %c0 = arith.constant 0 : index
    %6 = vector.load %arg3[%5, %c0] : memref<512x128xbf16, #tpu.memory_space<vmem>>, vector<512x128xbf16>
    %c0_1 = arith.constant 0 : index
    %c0_2 = arith.constant 0 : index
    %7 = vector.load %arg4[%c0_1, %c0_2] : memref<512x128xf32, #tpu.memory_space<vmem>>, vector<512x128xf32>
    %c0_3 = arith.constant 0 : index
    %c0_4 = arith.constant 0 : index
    %8 = vector.load %arg2[%c0_3, %c0_4] : memref<512x512xbf16, #tpu.memory_space<vmem>>, vector<512x512xbf16>
    %cst = arith.constant dense<0.000000e+00> : vector<512x128xf32>
    %9 = tpu.matmul %8, %6, %cst {dimension_numbers = #tpu.dot_dimension_numbers<[1], [0], [0], [1], [0, 0, 1, 1], [], []>} : vector<512x512xbf16>, vector<512x128xbf16>, vector<512x128xf32> -> vector<512x128xf32>
    %10 = arith.addf %7, %9 : vector<512x128xf32>
    %c0_5 = arith.constant 0 : index
    %c0_6 = arith.constant 0 : index
    %11 = vector.load %arg4[%c0_5, %c0_6] : memref<512x128xf32, #tpu.memory_space<vmem>>, vector<512x128xf32>
    tpu.vector_store %arg4[%c0_5, %c0_6], %10 {strides = array<i32>} : memref<512x128xf32, #tpu.memory_space<vmem>>, vector<512x128xf32>,
    return
  }
  func.func @transform_0(%arg0: i32, %arg1: i32) -> (i32, i32) {
    %c0_i32 = arith.constant 0 : i32
    return %arg0, %arg1 : i32, i32
  }
  func.func @transform_1(%arg0: i32, %arg1: i32) -> (i32, i32) {
    %c0_i32 = arith.constant 0 : i32
    %c0_i32_0 = arith.constant 0 : i32
    %c0_i32_1 = arith.constant 0 : i32
    return %c0_i32, %c0_i32_0 : i32, i32
  }
  func.func @transform_2(%arg0: i32, %arg1: i32) -> (i32, i32) {
    %c0_i32 = arith.constant 0 : i32
    %c0_i32_0 = arith.constant 0 : i32
    return %arg0, %c0_i32 : i32, i32
  }
}

module attributes {stable_mosaic.version = 11 : i64} {
  func.func @_matmul_kernel(%arg0: i32, %arg1: i32, %arg2: memref<512x512xf32, #tpu.memory_space<vmem>>, %arg3: memref<512x128xf32, #tpu.memory_space<vmem>>, %arg4: memref<512x128xf32, #tpu.memory_space<vmem>>) attributes {dimension_semantics = [#tpu.dimension_semantics<parallel>, #tpu.dimension_semantics<arbitrary>], iteration_bounds = array<i64: 1, 1>, scalar_prefetch = 0 : i64, scratch_operands = 0 : i64, tpu.core_type = #tpu.core_type<tc>, window_params = [{transform_indices = @transform_0, window_bounds = array<i64: 512, 512>}, {pipeline_mode = #tpu.pipeline_mode<synchronous>, transform_indices = @transform_1, window_bounds = array<i64: 512, 128>}, {transform_indices = @transform_2, window_bounds = array<i64: 512, 128>}]} {
    %c0_i32 = arith.constant 0 : i32
    %0 = arith.cmpi eq, %arg1, %c0_i32 : i32
    %1 = arith.extui %0 : i1 to i32
    %c0_i32_0 = arith.constant 0 : i32
    %2 = arith.cmpi ne, %1, %c0_i32_0 : i32
    scf.if %2 {
      %cst_7 = arith.constant 0.000000e+00 : f32
      %12 = vector.broadcast %cst_7 : f32 to vector<512x128xf32>
      %c0_8 = arith.constant 0 : index
      %c0_9 = arith.constant 0 : index
      %13 = vector.load %arg4[%c0_8, %c0_9] : memref<512x128xf32, #tpu.memory_space<vmem>>, vector<512x128xf32>
      tpu.vector_store %arg4[%c0_8, %c0_9], %12 {strides = array<i32>} : memref<512x128xf32, #tpu.memory_space<vmem>>, vector<512x128xf32>,
    } else {
    }
    %c512_i32 = arith.constant 512 : i32
    %3 = arith.muli %arg1, %c512_i32 : i32
    %4 = tpu.assume_multiple %3, 512 : i32
    %5 = arith.index_cast %4 : i32 to index
    %c0 = arith.constant 0 : index
    %6 = vector.load %arg3[%5, %c0] : memref<512x128xf32, #tpu.memory_space<vmem>>, vector<512x128xf32>
    %c0_1 = arith.constant 0 : index
    %c0_2 = arith.constant 0 : index
    %7 = vector.load %arg4[%c0_1, %c0_2] : memref<512x128xf32, #tpu.memory_space<vmem>>, vector<512x128xf32>
    %c0_3 = arith.constant 0 : index
    %c0_4 = arith.constant 0 : index
    %8 = vector.load %arg2[%c0_3, %c0_4] : memref<512x512xf32, #tpu.memory_space<vmem>>, vector<512x512xf32>
    %cst = arith.constant dense<0.000000e+00> : vector<512x128xf32>
    %9 = tpu.matmul %8, %6, %cst {dimension_numbers = #tpu.dot_dimension_numbers<[1], [0], [0], [1], [0, 0, 1, 1], [], []>} : vector<512x512xf32>, vector<512x128xf32>, vector<512x128xf32> -> vector<512x128xf32>
    %10 = arith.addf %7, %9 : vector<512x128xf32>
    %c0_5 = arith.constant 0 : index
    %c0_6 = arith.constant 0 : index
    %11 = vector.load %arg4[%c0_5, %c0_6] : memref<512x128xf32, #tpu.memory_space<vmem>>, vector<512x128xf32>
    tpu.vector_store %arg4[%c0_5, %c0_6], %10 {strides = array<i32>} : memref<512x128xf32, #tpu.memory_space<vmem>>, vector<512x128xf32>,
    return
  }
  func.func @transform_0(%arg0: i32, %arg1: i32) -> (i32, i32) {
    %c0_i32 = arith.constant 0 : i32
    return %arg0, %arg1 : i32, i32
  }
  func.func @transform_1(%arg0: i32, %arg1: i32) -> (i32, i32) {
    %c0_i32 = arith.constant 0 : i32
    %c0_i32_0 = arith.constant 0 : i32
    %c0_i32_1 = arith.constant 0 : i32
    return %c0_i32, %c0_i32_0 : i32, i32
  }
  func.func @transform_2(%arg0: i32, %arg1: i32) -> (i32, i32) {
    %c0_i32 = arith.constant 0 : i32
    %c0_i32_0 = arith.constant 0 : i32
    return %arg0, %c0_i32 : i32, i32
  }
}

</mosaic_0001>

<llo_original>
// kernel: stmgsc_forward.5
$region0: #{stmgsc_forward.5}
  #allocation0 [shape = 'u32[]', space=smem, size = 0x4, offset = 0x4, fixed_abs, tag = 'smem constant byte address 0x4 - core index']
  #allocation1 [shape = 'u32[72,128]{1,0:T(1,128)}', space=vmem, size = 0x9000, scoped, tag = 'internal scratch']
  %s0 = inlined_call_operand.vmem [shape: f32[512,512], index: 0, kind: input, shape index: {}]
  %s1 = inlined_call_operand.vmem [shape: f32[512,128], index: 1, kind: input, shape index: {}]
  %s2 = inlined_call_operand.vmem [shape: f32[512,128], index: 2, kind: output, shape index: {}]
  %s3 = sld [smem:[#allocation0]]
  $region22: #{stmgsc_forward.5} parent=0
    _
  %s5 = ssub.s32 1, %s3
  %s6 = scalar_select 0, %s5, %s3
  // Predicated region
  $region2: #{stmgsc_forward.5} parent=0 // pred_check
    _
  $region3: #{stmgsc_forward.5} parent=0 // pred_check_branch
    %8 = sbr.rel (0) target = $region5
  $region4: #{stmgsc_forward.5} parent=0 // pred_region
    _
  $region5: #{stmgsc_forward.5} parent=0 // pred_fallthru
    _
  // Predicated region
  $region6: #{stmgsc_forward.5} parent=0 // pred_check
    _
  $region7: #{stmgsc_forward.5} parent=0 // pred_check_branch
    %10 = sbr.rel (0) target = $region9
  $region8: #{stmgsc_forward.5} parent=0 // pred_region
    _
  $region9: #{stmgsc_forward.5} parent=0 // pred_fallthru
    _
  %p11 = scmp.eq.s32.totalorder 0, 0
  // Predicated region
  $region10: #{stmgsc_forward.5} parent=0 // pred_check
    %p12 = pneg %p11
  $region11: #{stmgsc_forward.5} parent=0 // pred_check_branch
    %14 = sbr.rel (%p12) target = $region13
  $region12: #{stmgsc_forward.5} parent=0 // pred_region
    %15 = vst [vmem:[%s2] sm:$0xff] 0.0
    %16 = vst [vmem:[%s2 + $0x8] sm:$0xff] 0.0
    %17 = vst [vmem:[%s2 + $0x10] sm:$0xff] 0.0
    %18 = vst [vmem:[%s2 + $0x18] sm:$0xff] 0.0
    %19 = vst [vmem:[%s2 + $0x20] sm:$0xff] 0.0
    %20 = vst [vmem:[%s2 + $0x28] sm:$0xff] 0.0
    %21 = vst [vmem:[%s2 + $0x30] sm:$0xff] 0.0
    %22 = vst [vmem:[%s2 + $0x38] sm:$0xff] 0.0
    %23 = vst [vmem:[%s2 + $0x40] sm:$0xff] 0.0
    %24 = vst [vmem:[%s2 + $0x48] sm:$0xff] 0.0
    %25 = vst [vmem:[%s2 + $0x50] sm:$0xff] 0.0
    %26 = vst [vmem:[%s2 + $0x58] sm:$0xff] 0.0
    %27 = vst [vmem:[%s2 + $0x60] sm:$0xff] 0.0
    %28 = vst [vmem:[%s2 + $0x68] sm:$0xff] 0.0
    %29 = vst [vmem:[%s2 + $0x70] sm:$0xff] 0.0
    %30 = vst [vmem:[%s2 + $0x78] sm:$0xff] 0.0
    %31 = vst [vmem:[%s2 + $0x80] sm:$0xff] 0.0
    %32 = vst [vmem:[%s2 + $0x88] sm:$0xff] 0.0
    %33 = vst [vmem:[%s2 + $0x90] sm:$0xff] 0.0
    %34 = vst [vmem:[%s2 + $0x98] sm:$0xff] 0.0
    %35 = vst [vmem:[%s2 + $0xa0] sm:$0xff] 0.0
    %36 = vst [vmem:[%s2 + $0xa8] sm:$0xff] 0.0
    %37 = vst [vmem:[%s2 + $0xb0] sm:$0xff] 0.0
    %38 = vst [vmem:[%s2 + $0xb8] sm:$0xff] 0.0
    %39 = vst [vmem:[%s2 + $0xc0] sm:$0xff] 0.0
    %40 = vst [vmem:[%s2 + $0xc8] sm:$0xff] 0.0
    %41 = vst [vmem:[%s2 + $0xd0] sm:$0xff] 0.0
    %42 = vst [vmem:[%s2 + $0xd8] sm:$0xff] 0.0
    %43 = vst [vmem:[%s2 + $0xe0] sm:$0xff] 0.0
    %44 = vst [vmem:[%s2 + $0xe8] sm:$0xff] 0.0
    %45 = vst [vmem:[%s2 + $0xf0] sm:$0xff] 0.0
    %46 = vst [vmem:[%s2 + $0xf8] sm:$0xff] 0.0
    %47 = vst [vmem:[%s2 + $0x100] sm:$0xff] 0.0
    %48 = vst [vmem:[%s2 + $0x108] sm:$0xff] 0.0
    %49 = vst [vmem:[%s2 + $0x110] sm:$0xff] 0.0
    %50 = vst [vmem:[%s2 + $0x118] sm:$0xff] 0.0
    %51 = vst [vmem:[%s2 + $0x120] sm:$0xff] 0.0
    %52 = vst [vmem:[%s2 + $0x128] sm:$0xff] 0.0
    %53 = vst [vmem:[%s2 + $0x130] sm:$0xff] 0.0
    %54 = vst [vmem:[%s2 + $0x138] sm:$0xff] 0.0
    %55 = vst [vmem:[%s2 + $0x140] sm:$0xff] 0.0
    %56 = vst [vmem:[%s2 + $0x148] sm:$0xff] 0.0
    %57 = vst [vmem:[%s2 + $0x150] sm:$0xff] 0.0
    %58 = vst [vmem:[%s2 + $0x158] sm:$0xff] 0.0
    %59 = vst [vmem:[%s2 + $0x160] sm:$0xff] 0.0
    %60 = vst [vmem:[%s2 + $0x168] sm:$0xff] 0.0
    %61 = vst [vmem:[%s2 + $0x170] sm:$0xff] 0.0
    %62 = vst [vmem:[%s2 + $0x178] sm:$0xff] 0.0
    %63 = vst [vmem:[%s2 + $0x180] sm:$0xff] 0.0
    %64 = vst [vmem:[%s2 + $0x188] sm:$0xff] 0.0
    %65 = vst [vmem:[%s2 + $0x190] sm:$0xff] 0.0
    %66 = vst [vmem:[%s2 + $0x198] sm:$0xff] 0.0
    %67 = vst [vmem:[%s2 + $0x1a0] sm:$0xff] 0.0
    %68 = vst [vmem:[%s2 + $0x1a8] sm:$0xff] 0.0
    %69 = vst [vmem:[%s2 + $0x1b0] sm:$0xff] 0.0
    %70 = vst [vmem:[%s2 + $0x1b8] sm:$0xff] 0.0
    %71 = vst [vmem:[%s2 + $0x1c0] sm:$0xff] 0.0
    %72 = vst [vmem:[%s2 + $0x1c8] sm:$0xff] 0.0
    %73 = vst [vmem:[%s2 + $0x1d0] sm:$0xff] 0.0
    %74 = vst [vmem:[%s2 + $0x1d8] sm:$0xff] 0.0
    %75 = vst [vmem:[%s2 + $0x1e0] sm:$0xff] 0.0
    %76 = vst [vmem:[%s2 + $0x1e8] sm:$0xff] 0.0
    %77 = vst [vmem:[%s2 + $0x1f0] sm:$0xff] 0.0
    %78 = vst [vmem:[%s2 + $0x1f8] sm:$0xff] 0.0
  $region13: #{stmgsc_forward.5} parent=0 // pred_fallthru
    _
  %s79 = smul.u32 0, 512
  %s80 = scalar_lea.vmem %s1, %s79
  %v81 = vld [vmem:[%s80] sm:$0xff]
  %v82 = vld [vmem:[%s80 + $0x8] sm:$0xff]
  %v83 = vld [vmem:[%s80 + $0x10] sm:$0xff]
  %v84 = vld [vmem:[%s80 + $0x18] sm:$0xff]
  %v85 = vld [vmem:[%s80 + $0x20] sm:$0xff]
  %v86 = vld [vmem:[%s80 + $0x28] sm:$0xff]
  %v87 = vld [vmem:[%s80 + $0x30] sm:$0xff]
  %v88 = vld [vmem:[%s80 + $0x38] sm:$0xff]
  %v89 = vld [vmem:[%s80 + $0x40] sm:$0xff]
  %v90 = vld [vmem:[%s80 + $0x48] sm:$0xff]
  %v91 = vld [vmem:[%s80 + $0x50] sm:$0xff]
  %v92 = vld [vmem:[%s80 + $0x58] sm:$0xff]
  %v93 = vld [vmem:[%s80 + $0x60] sm:$0xff]
  %v94 = vld [vmem:[%s80 + $0x68] sm:$0xff]
  %v95 = vld [vmem:[%s80 + $0x70] sm:$0xff]
  %v96 = vld [vmem:[%s80 + $0x78] sm:$0xff]
  %v97 = vld [vmem:[%s80 + $0x80] sm:$0xff]
  %v98 = vld [vmem:[%s80 + $0x88] sm:$0xff]
  %v99 = vld [vmem:[%s80 + $0x90] sm:$0xff]
  %v100 = vld [vmem:[%s80 + $0x98] sm:$0xff]
  %v101 = vld [vmem:[%s80 + $0xa0] sm:$0xff]
  %v102 = vld [vmem:[%s80 + $0xa8] sm:$0xff]
  %v103 = vld [vmem:[%s80 + $0xb0] sm:$0xff]
  %v104 = vld [vmem:[%s80 + $0xb8] sm:$0xff]
  %v105 = vld [vmem:[%s80 + $0xc0] sm:$0xff]
  %v106 = vld [vmem:[%s80 + $0xc8] sm:$0xff]
  %v107 = vld [vmem:[%s80 + $0xd0] sm:$0xff]
  %v108 = vld [vmem:[%s80 + $0xd8] sm:$0xff]
  %v109 = vld [vmem:[%s80 + $0xe0] sm:$0xff]
  %v110 = vld [vmem:[%s80 + $0xe8] sm:$0xff]
  %v111 = vld [vmem:[%s80 + $0xf0] sm:$0xff]
  %v112 = vld [vmem:[%s80 + $0xf8] sm:$0xff]
  %v113 = vld [vmem:[%s80 + $0x100] sm:$0xff]
  %v114 = vld [vmem:[%s80 + $0x108] sm:$0xff]
  %v115 = vld [vmem:[%s80 + $0x110] sm:$0xff]
  %v116 = vld [vmem:[%s80 + $0x118] sm:$0xff]
  %v117 = vld [vmem:[%s80 + $0x120] sm:$0xff]
  %v118 = vld [vmem:[%s80 + $0x128] sm:$0xff]
  %v119 = vld [vmem:[%s80 + $0x130] sm:$0xff]
  %v120 = vld [vmem:[%s80 + $0x138] sm:$0xff]
  %v121 = vld [vmem:[%s80 + $0x140] sm:$0xff]
  %v122 = vld [vmem:[%s80 + $0x148] sm:$0xff]
  %v123 = vld [vmem:[%s80 + $0x150] sm:$0xff]
  %v124 = vld [vmem:[%s80 + $0x158] sm:$0xff]
  %v125 = vld [vmem:[%s80 + $0x160] sm:$0xff]
  %v126 = vld [vmem:[%s80 + $0x168] sm:$0xff]
  %v127 = vld [vmem:[%s80 + $0x170] sm:$0xff]
  %v128 = vld [vmem:[%s80 + $0x178] sm:$0xff]
  %v129 = vld [vmem:[%s80 + $0x180] sm:$0xff]
  %v130 = vld [vmem:[%s80 + $0x188] sm:$0xff]
  %v131 = vld [vmem:[%s80 + $0x190] sm:$0xff]
  %v132 = vld [vmem:[%s80 + $0x198] sm:$0xff]
  %v133 = vld [vmem:[%s80 + $0x1a0] sm:$0xff]
  %v134 = vld [vmem:[%s80 + $0x1a8] sm:$0xff]
  %v135 = vld [vmem:[%s80 + $0x1b0] sm:$0xff]
  %v136 = vld [vmem:[%s80 + $0x1b8] sm:$0xff]
  %v137 = vld [vmem:[%s80 + $0x1c0] sm:$0xff]
  %v138 = vld [vmem:[%s80 + $0x1c8] sm:$0xff]
  %v139 = vld [vmem:[%s80 + $0x1d0] sm:$0xff]
  %v140 = vld [vmem:[%s80 + $0x1d8] sm:$0xff]
  %v141 = vld [vmem:[%s80 + $0x1e0] sm:$0xff]
  %v142 = vld [vmem:[%s80 + $0x1e8] sm:$0xff]
  %v143 = vld [vmem:[%s80 + $0x1f0] sm:$0xff]
  %v144 = vld [vmem:[%s80 + $0x1f8] sm:$0xff]
  %v145 = vld [vmem:[%s2] sm:$0xff]
  %v146 = vld [vmem:[%s2 + $0x8] sm:$0xff]
  %v147 = vld [vmem:[%s2 + $0x10] sm:$0xff]
  %v148 = vld [vmem:[%s2 + $0x18] sm:$0xff]
  %v149 = vld [vmem:[%s2 + $0x20] sm:$0xff]
  %v150 = vld [vmem:[%s2 + $0x28] sm:$0xff]
  %v151 = vld [vmem:[%s2 + $0x30] sm:$0xff]
  %v152 = vld [vmem:[%s2 + $0x38] sm:$0xff]
  %v153 = vld [vmem:[%s2 + $0x40] sm:$0xff]
  %v154 = vld [vmem:[%s2 + $0x48] sm:$0xff]
  %v155 = vld [vmem:[%s2 + $0x50] sm:$0xff]
  %v156 = vld [vmem:[%s2 + $0x58] sm:$0xff]
  %v157 = vld [vmem:[%s2 + $0x60] sm:$0xff]
  %v158 = vld [vmem:[%s2 + $0x68] sm:$0xff]
  %v159 = vld [vmem:[%s2 + $0x70] sm:$0xff]
  %v160 = vld [vmem:[%s2 + $0x78] sm:$0xff]
  %v161 = vld [vmem:[%s2 + $0x80] sm:$0xff]
  %v162 = vld [vmem:[%s2 + $0x88] sm:$0xff]
  %v163 = vld [vmem:[%s2 + $0x90] sm:$0xff]
  %v164 = vld [vmem:[%s2 + $0x98] sm:$0xff]
  %v165 = vld [vmem:[%s2 + $0xa0] sm:$0xff]
  %v166 = vld [vmem:[%s2 + $0xa8] sm:$0xff]
  %v167 = vld [vmem:[%s2 + $0xb0] sm:$0xff]
  %v168 = vld [vmem:[%s2 + $0xb8] sm:$0xff]
  %v169 = vld [vmem:[%s2 + $0xc0] sm:$0xff]
  %v170 = vld [vmem:[%s2 + $0xc8] sm:$0xff]
  %v171 = vld [vmem:[%s2 + $0xd0] sm:$0xff]
  %v172 = vld [vmem:[%s2 + $0xd8] sm:$0xff]
  %v173 = vld [vmem:[%s2 + $0xe0] sm:$0xff]
  %v174 = vld [vmem:[%s2 + $0xe8] sm:$0xff]
  %v175 = vld [vmem:[%s2 + $0xf0] sm:$0xff]
  %v176 = vld [vmem:[%s2 + $0xf8] sm:$0xff]
  %v177 = vld [vmem:[%s2 + $0x100] sm:$0xff]
  %v178 = vld [vmem:[%s2 + $0x108] sm:$0xff]
  %v179 = vld [vmem:[%s2 + $0x110] sm:$0xff]
  %v180 = vld [vmem:[%s2 + $0x118] sm:$0xff]
  %v181 = vld [vmem:[%s2 + $0x120] sm:$0xff]
  %v182 = vld [vmem:[%s2 + $0x128] sm:$0xff]
  %v183 = vld [vmem:[%s2 + $0x130] sm:$0xff]
  %v184 = vld [vmem:[%s2 + $0x138] sm:$0xff]
  %v185 = vld [vmem:[%s2 + $0x140] sm:$0xff]
  %v186 = vld [vmem:[%s2 + $0x148] sm:$0xff]
  %v187 = vld [vmem:[%s2 + $0x150] sm:$0xff]
  %v188 = vld [vmem:[%s2 + $0x158] sm:$0xff]
  %v189 = vld [vmem:[%s2 + $0x160] sm:$0xff]
  %v190 = vld [vmem:[%s2 + $0x168] sm:$0xff]
  %v191 = vld [vmem:[%s2 + $0x170] sm:$0xff]
  %v192 = vld [vmem:[%s2 + $0x178] sm:$0xff]
  %v193 = vld [vmem:[%s2 + $0x180] sm:$0xff]
  %v194 = vld [vmem:[%s2 + $0x188] sm:$0xff]
  %v195 = vld [vmem:[%s2 + $0x190] sm:$0xff]
  %v196 = vld [vmem:[%s2 + $0x198] sm:$0xff]
  %v197 = vld [vmem:[%s2 + $0x1a0] sm:$0xff]
  %v198 = vld [vmem:[%s2 + $0x1a8] sm:$0xff]
  %v199 = vld [vmem:[%s2 + $0x1b0] sm:$0xff]
  %v200 = vld [vmem:[%s2 + $0x1b8] sm:$0xff]
  %v201 = vld [vmem:[%s2 + $0x1c0] sm:$0xff]
  %v202 = vld [vmem:[%s2 + $0x1c8] sm:$0xff]
  %v203 = vld [vmem:[%s2 + $0x1d0] sm:$0xff]
  %v204 = vld [vmem:[%s2 + $0x1d8] sm:$0xff]
  %v205 = vld [vmem:[%s2 + $0x1e0] sm:$0xff]
  %v206 = vld [vmem:[%s2 + $0x1e8] sm:$0xff]
  %v207 = vld [vmem:[%s2 + $0x1f0] sm:$0xff]
  %v208 = vld [vmem:[%s2 + $0x1f8] sm:$0xff]
  %v209 = vld [vmem:[%s0] sm:$0xff]
  %v210 = vld [vmem:[%s0 + $0x8] sm:$0xff]
  %v211 = vld [vmem:[%s0 + $0x10] sm:$0xff]
  %v212 = vld [vmem:[%s0 + $0x18] sm:$0xff]
  %v213 = vld [vmem:[%s0 + $0x20] sm:$0xff]
  %v214 = vld [vmem:[%s0 + $0x28] sm:$0xff]
  %v215 = vld [vmem:[%s0 + $0x30] sm:$0xff]
  %v216 = vld [vmem:[%s0 + $0x38] sm:$0xff]
  %v217 = vld [vmem:[%s0 + $0x40] sm:$0xff]
  %v218 = vld [vmem:[%s0 + $0x48] sm:$0xff]
  %v219 = vld [vmem:[%s0 + $0x50] sm:$0xff]
  %v220 = vld [vmem:[%s0 + $0x58] sm:$0xff]
  %v221 = vld [vmem:[%s0 + $0x60] sm:$0xff]
  %v222 = vld [vmem:[%s0 + $0x68] sm:$0xff]
  %v223 = vld [vmem:[%s0 + $0x70] sm:$0xff]
  %v224 = vld [vmem:[%s0 + $0x78] sm:$0xff]
  %v225 = vld [vmem:[%s0 + $0x80] sm:$0xff]
  %v226 = vld [vmem:[%s0 + $0x88] sm:$0xff]
  %v227 = vld [vmem:[%s0 + $0x90] sm:$0xff]
  %v228 = vld [vmem:[%s0 + $0x98] sm:$0xff]
  %v229 = vld [vmem:[%s0 + $0xa0] sm:$0xff]
  %v230 = vld [vmem:[%s0 + $0xa8] sm:$0xff]
  %v231 = vld [vmem:[%s0 + $0xb0] sm:$0xff]
  %v232 = vld [vmem:[%s0 + $0xb8] sm:$0xff]
  %v233 = vld [vmem:[%s0 + $0xc0] sm:$0xff]
  %v234 = vld [vmem:[%s0 + $0xc8] sm:$0xff]
  %v235 = vld [vmem:[%s0 + $0xd0] sm:$0xff]
  %v236 = vld [vmem:[%s0 + $0xd8] sm:$0xff]
  %v237 = vld [vmem:[%s0 + $0xe0] sm:$0xff]
  %v238 = vld [vmem:[%s0 + $0xe8] sm:$0xff]
  %v239 = vld [vmem:[%s0 + $0xf0] sm:$0xff]
  %v240 = vld [vmem:[%s0 + $0xf8] sm:$0xff]
  %v241 = vld [vmem:[%s0 + $0x100] sm:$0xff]
  %v242 = vld [vmem:[%s0 + $0x108] sm:$0xff]
  %v243 = vld [vmem:[%s0 + $0x110] sm:$0xff]
  %v244 = vld [vmem:[%s0 + $0x118] sm:$0xff]
  %v245 = vld [vmem:[%s0 + $0x120] sm:$0xff]
  %v246 = vld [vmem:[%s0 + $0x128] sm:$0xff]
  %v247 = vld [vmem:[%s0 + $0x130] sm:$0xff]
  %v248 = vld [vmem:[%s0 + $0x138] sm:$0xff]
  %v249 = vld [vmem:[%s0 + $0x140] sm:$0xff]
  %v250 = vld [vmem:[%s0 + $0x148] sm:$0xff]
  %v251 = vld [vmem:[%s0 + $0x150] sm:$0xff]
  %v252 = vld [vmem:[%s0 + $0x158] sm:$0xff]
  %v253 = vld [vmem:[%s0 + $0x160] sm:$0xff]
  %v254 = vld [vmem:[%s0 + $0x168] sm:$0xff]
  %v255 = vld [vmem:[%s0 + $0x170] sm:$0xff]
  %v256 = vld [vmem:[%s0 + $0x178] sm:$0xff]
  %v257 = vld [vmem:[%s0 + $0x180] sm:$0xff]
  %v258 = vld [vmem:[%s0 + $0x188] sm:$0xff]
  %v259 = vld [vmem:[%s0 + $0x190] sm:$0xff]
  %v260 = vld [vmem:[%s0 + $0x198] sm:$0xff]
  %v261 = vld [vmem:[%s0 + $0x1a0] sm:$0xff]
  %v262 = vld [vmem:[%s0 + $0x1a8] sm:$0xff]
  %v263 = vld [vmem:[%s0 + $0x1b0] sm:$0xff]
  %v264 = vld [vmem:[%s0 + $0x1b8] sm:$0xff]
  %v265 = vld [vmem:[%s0 + $0x1c0] sm:$0xff]
  %v266 = vld [vmem:[%s0 + $0x1c8] sm:$0xff]
  %v267 = vld [vmem:[%s0 + $0x1d0] sm:$0xff]
  %v268 = vld [vmem:[%s0 + $0x1d8] sm:$0xff]
  %v269 = vld [vmem:[%s0 + $0x1e0] sm:$0xff]
  %v270 = vld [vmem:[%s0 + $0x1e8] sm:$0xff]
  %v271 = vld [vmem:[%s0 + $0x1f0] sm:$0xff]
  %v272 = vld [vmem:[%s0 + $0x1f8] sm:$0xff]
  %v273 = vld [vmem:[%s0 + $0x200] sm:$0xff]
  %v274 = vld [vmem:[%s0 + $0x208] sm:$0xff]
  %v275 = vld [vmem:[%s0 + $0x210] sm:$0xff]
  %v276 = vld [vmem:[%s0 + $0x218] sm:$0xff]
  %v277 = vld [vmem:[%s0 + $0x220] sm:$0xff]
  %v278 = vld [vmem:[%s0 + $0x228] sm:$0xff]
  %v279 = vld [vmem:[%s0 + $0x230] sm:$0xff]
  %v280 = vld [vmem:[%s0 + $0x238] sm:$0xff]
  %v281 = vld [vmem:[%s0 + $0x240] sm:$0xff]
  %v282 = vld [vmem:[%s0 + $0x248] sm:$0xff]
  %v283 = vld [vmem:[%s0 + $0x250] sm:$0xff]
  %v284 = vld [vmem:[%s0 + $0x258] sm:$0xff]
  %v285 = vld [vmem:[%s0 + $0x260] sm:$0xff]
  %v286 = vld [vmem:[%s0 + $0x268] sm:$0xff]
  %v287 = vld [vmem:[%s0 + $0x270] sm:$0xff]
  %v288 = vld [vmem:[%s0 + $0x278] sm:$0xff]
  %v289 = vld [vmem:[%s0 + $0x280] sm:$0xff]
  %v290 = vld [vmem:[%s0 + $0x288] sm:$0xff]
  %v291 = vld [vmem:[%s0 + $0x290] sm:$0xff]
  %v292 = vld [vmem:[%s0 + $0x298] sm:$0xff]
  %v293 = vld [vmem:[%s0 + $0x2a0] sm:$0xff]
  %v294 = vld [vmem:[%s0 + $0x2a8] sm:$0xff]
  %v295 = vld [vmem:[%s0 + $0x2b0] sm:$0xff]
  %v296 = vld [vmem:[%s0 + $0x2b8] sm:$0xff]
  %v297 = vld [vmem:[%s0 + $0x2c0] sm:$0xff]
  %v298 = vld [vmem:[%s0 + $0x2c8] sm:$0xff]
  %v299 = vld [vmem:[%s0 + $0x2d0] sm:$0xff]
  %v300 = vld [vmem:[%s0 + $0x2d8] sm:$0xff]
  %v301 = vld [vmem:[%s0 + $0x2e0] sm:$0xff]
  %v302 = vld [vmem:[%s0 + $0x2e8] sm:$0xff]
  %v303 = vld [vmem:[%s0 + $0x2f0] sm:$0xff]
  %v304 = vld [vmem:[%s0 + $0x2f8] sm:$0xff]
  %v305 = vld [vmem:[%s0 + $0x300] sm:$0xff]
  %v306 = vld [vmem:[%s0 + $0x308] sm:$0xff]
  %v307 = vld [vmem:[%s0 + $0x310] sm:$0xff]
  %v308 = vld [vmem:[%s0 + $0x318] sm:$0xff]
  %v309 = vld [vmem:[%s0 + $0x320] sm:$0xff]
  %v310 = vld [vmem:[%s0 + $0x328] sm:$0xff]
  %v311 = vld [vmem:[%s0 + $0x330] sm:$0xff]
  %v312 = vld [vmem:[%s0 + $0x338] sm:$0xff]
  %v313 = vld [vmem:[%s0 + $0x340] sm:$0xff]
  %v314 = vld [vmem:[%s0 + $0x348] sm:$0xff]
  %v315 = vld [vmem:[%s0 + $0x350] sm:$0xff]
  %v316 = vld [vmem:[%s0 + $0x358] sm:$0xff]
  %v317 = vld [vmem:[%s0 + $0x360] sm:$0xff]
  %v318 = vld [vmem:[%s0 + $0x368] sm:$0xff]
  %v319 = vld [vmem:[%s0 + $0x370] sm:$0xff]
  %v320 = vld [vmem:[%s0 + $0x378] sm:$0xff]
  %v321 = vld [vmem:[%s0 + $0x380] sm:$0xff]
  %v322 = vld [vmem:[%s0 + $0x388] sm:$0xff]
  %v323 = vld [vmem:[%s0 + $0x390] sm:$0xff]
  %v324 = vld [vmem:[%s0 + $0x398] sm:$0xff]
  %v325 = vld [vmem:[%s0 + $0x3a0] sm:$0xff]
  %v326 = vld [vmem:[%s0 + $0x3a8] sm:$0xff]
  %v327 = vld [vmem:[%s0 + $0x3b0] sm:$0xff]
  %v328 = vld [vmem:[%s0 + $0x3b8] sm:$0xff]
  %v329 = vld [vmem:[%s0 + $0x3c0] sm:$0xff]
  %v330 = vld [vmem:[%s0 + $0x3c8] sm:$0xff]
  %v331 = vld [vmem:[%s0 + $0x3d0] sm:$0xff]
  %v332 = vld [vmem:[%s0 + $0x3d8] sm:$0xff]
  %v333 = vld [vmem:[%s0 + $0x3e0] sm:$0xff]
  %v334 = vld [vmem:[%s0 + $0x3e8] sm:$0xff]
  %v335 = vld [vmem:[%s0 + $0x3f0] sm:$0xff]
  %v336 = vld [vmem:[%s0 + $0x3f8] sm:$0xff]
  %v337 = vld [vmem:[%s0 + $0x400] sm:$0xff]
  %v338 = vld [vmem:[%s0 + $0x408] sm:$0xff]
  %v339 = vld [vmem:[%s0 + $0x410] sm:$0xff]
  %v340 = vld [vmem:[%s0 + $0x418] sm:$0xff]
  %v341 = vld [vmem:[%s0 + $0x420] sm:$0xff]
  %v342 = vld [vmem:[%s0 + $0x428] sm:$0xff]
  %v343 = vld [vmem:[%s0 + $0x430] sm:$0xff]
  %v344 = vld [vmem:[%s0 + $0x438] sm:$0xff]
  %v345 = vld [vmem:[%s0 + $0x440] sm:$0xff]
  %v346 = vld [vmem:[%s0 + $0x448] sm:$0xff]
  %v347 = vld [vmem:[%s0 + $0x450] sm:$0xff]
  %v348 = vld [vmem:[%s0 + $0x458] sm:$0xff]
  %v349 = vld [vmem:[%s0 + $0x460] sm:$0xff]
  %v350 = vld [vmem:[%s0 + $0x468] sm:$0xff]
  %v351 = vld [vmem:[%s0 + $0x470] sm:$0xff]
  %v352 = vld [vmem:[%s0 + $0x478] sm:$0xff]
  %v353 = vld [vmem:[%s0 + $0x480] sm:$0xff]
  %v354 = vld [vmem:[%s0 + $0x488] sm:$0xff]
  %v355 = vld [vmem:[%s0 + $0x490] sm:$0xff]
  %v356 = vld [vmem:[%s0 + $0x498] sm:$0xff]
  %v357 = vld [vmem:[%s0 + $0x4a0] sm:$0xff]
  %v358 = vld [vmem:[%s0 + $0x4a8] sm:$0xff]
  %v359 = vld [vmem:[%s0 + $0x4b0] sm:$0xff]
  %v360 = vld [vmem:[%s0 + $0x4b8] sm:$0xff]
  %v361 = vld [vmem:[%s0 + $0x4c0] sm:$0xff]
  %v362 = vld [vmem:[%s0 + $0x4c8] sm:$0xff]
  %v363 = vld [vmem:[%s0 + $0x4d0] sm:$0xff]
  %v364 = vld [vmem:[%s0 + $0x4d8] sm:$0xff]
  %v365 = vld [vmem:[%s0 + $0x4e0] sm:$0xff]
  %v366 = vld [vmem:[%s0 + $0x4e8] sm:$0xff]
  %v367 = vld [vmem:[%s0 + $0x4f0] sm:$0xff]
  %v368 = vld [vmem:[%s0 + $0x4f8] sm:$0xff]
  %v369 = vld [vmem:[%s0 + $0x500] sm:$0xff]
  %v370 = vld [vmem:[%s0 + $0x508] sm:$0xff]
  %v371 = vld [vmem:[%s0 + $0x510] sm:$0xff]
  %v372 = vld [vmem:[%s0 + $0x518] sm:$0xff]
  %v373 = vld [vmem:[%s0 + $0x520] sm:$0xff]
  %v374 = vld [vmem:[%s0 + $0x528] sm:$0xff]
  %v375 = vld [vmem:[%s0 + $0x530] sm:$0xff]
  %v376 = vld [vmem:[%s0 + $0x538] sm:$0xff]
  %v377 = vld [vmem:[%s0 + $0x540] sm:$0xff]
  %v378 = vld [vmem:[%s0 + $0x548] sm:$0xff]
  %v379 = vld [vmem:[%s0 + $0x550] sm:$0xff]
  %v380 = vld [vmem:[%s0 + $0x558] sm:$0xff]
  %v381 = vld [vmem:[%s0 + $0x560] sm:$0xff]
  %v382 = vld [vmem:[%s0 + $0x568] sm:$0xff]
  %v383 = vld [vmem:[%s0 + $0x570] sm:$0xff]
  %v384 = vld [vmem:[%s0 + $0x578] sm:$0xff]
  %v385 = vld [vmem:[%s0 + $0x580] sm:$0xff]
  %v386 = vld [vmem:[%s0 + $0x588] sm:$0xff]
  %v387 = vld [vmem:[%s0 + $0x590] sm:$0xff]
  %v388 = vld [vmem:[%s0 + $0x598] sm:$0xff]
  %v389 = vld [vmem:[%s0 + $0x5a0] sm:$0xff]
  %v390 = vld [vmem:[%s0 + $0x5a8] sm:$0xff]
  %v391 = vld [vmem:[%s0 + $0x5b0] sm:$0xff]
  %v392 = vld [vmem:[%s0 + $0x5b8] sm:$0xff]
  %v393 = vld [vmem:[%s0 + $0x5c0] sm:$0xff]
  %v394 = vld [vmem:[%s0 + $0x5c8] sm:$0xff]
  %v395 = vld [vmem:[%s0 + $0x5d0] sm:$0xff]
  %v396 = vld [vmem:[%s0 + $0x5d8] sm:$0xff]
  %v397 = vld [vmem:[%s0 + $0x5e0] sm:$0xff]
  %v398 = vld [vmem:[%s0 + $0x5e8] sm:$0xff]
  %v399 = vld [vmem:[%s0 + $0x5f0] sm:$0xff]
  %v400 = vld [vmem:[%s0 + $0x5f8] sm:$0xff]
  %v401 = vld [vmem:[%s0 + $0x600] sm:$0xff]
  %v402 = vld [vmem:[%s0 + $0x608] sm:$0xff]
  %v403 = vld [vmem:[%s0 + $0x610] sm:$0xff]
  %v404 = vld [vmem:[%s0 + $0x618] sm:$0xff]
  %v405 = vld [vmem:[%s0 + $0x620] sm:$0xff]
  %v406 = vld [vmem:[%s0 + $0x628] sm:$0xff]
  %v407 = vld [vmem:[%s0 + $0x630] sm:$0xff]
  %v408 = vld [vmem:[%s0 + $0x638] sm:$0xff]
  %v409 = vld [vmem:[%s0 + $0x640] sm:$0xff]
  %v410 = vld [vmem:[%s0 + $0x648] sm:$0xff]
  %v411 = vld [vmem:[%s0 + $0x650] sm:$0xff]
  %v412 = vld [vmem:[%s0 + $0x658] sm:$0xff]
  %v413 = vld [vmem:[%s0 + $0x660] sm:$0xff]
  %v414 = vld [vmem:[%s0 + $0x668] sm:$0xff]
  %v415 = vld [vmem:[%s0 + $0x670] sm:$0xff]
  %v416 = vld [vmem:[%s0 + $0x678] sm:$0xff]
  %v417 = vld [vmem:[%s0 + $0x680] sm:$0xff]
  %v418 = vld [vmem:[%s0 + $0x688] sm:$0xff]
  %v419 = vld [vmem:[%s0 + $0x690] sm:$0xff]
  %v420 = vld [vmem:[%s0 + $0x698] sm:$0xff]
  %v421 = vld [vmem:[%s0 + $0x6a0] sm:$0xff]
  %v422 = vld [vmem:[%s0 + $0x6a8] sm:$0xff]
  %v423 = vld [vmem:[%s0 + $0x6b0] sm:$0xff]
  %v424 = vld [vmem:[%s0 + $0x6b8] sm:$0xff]
  %v425 = vld [vmem:[%s0 + $0x6c0] sm:$0xff]
  %v426 = vld [vmem:[%s0 + $0x6c8] sm:$0xff]
  %v427 = vld [vmem:[%s0 + $0x6d0] sm:$0xff]
  %v428 = vld [vmem:[%s0 + $0x6d8] sm:$0xff]
  %v429 = vld [vmem:[%s0 + $0x6e0] sm:$0xff]
  %v430 = vld [vmem:[%s0 + $0x6e8] sm:$0xff]
  %v431 = vld [vmem:[%s0 + $0x6f0] sm:$0xff]
  %v432 = vld [vmem:[%s0 + $0x6f8] sm:$0xff]
  %v433 = vld [vmem:[%s0 + $0x700] sm:$0xff]
  %v434 = vld [vmem:[%s0 + $0x708] sm:$0xff]
  %v435 = vld [vmem:[%s0 + $0x710] sm:$0xff]
  %v436 = vld [vmem:[%s0 + $0x718] sm:$0xff]
  %v437 = vld [vmem:[%s0 + $0x720] sm:$0xff]
  %v438 = vld [vmem:[%s0 + $0x728] sm:$0xff]
  %v439 = vld [vmem:[%s0 + $0x730] sm:$0xff]
  %v440 = vld [vmem:[%s0 + $0x738] sm:$0xff]
  %v441 = vld [vmem:[%s0 + $0x740] sm:$0xff]
  %v442 = vld [vmem:[%s0 + $0x748] sm:$0xff]
  %v443 = vld [vmem:[%s0 + $0x750] sm:$0xff]
  %v444 = vld [vmem:[%s0 + $0x758] sm:$0xff]
  %v445 = vld [vmem:[%s0 + $0x760] sm:$0xff]
  %v446 = vld [vmem:[%s0 + $0x768] sm:$0xff]
  %v447 = vld [vmem:[%s0 + $0x770] sm:$0xff]
  %v448 = vld [vmem:[%s0 + $0x778] sm:$0xff]
  %v449 = vld [vmem:[%s0 + $0x780] sm:$0xff]
  %v450 = vld [vmem:[%s0 + $0x788] sm:$0xff]
  %v451 = vld [vmem:[%s0 + $0x790] sm:$0xff]
  %v452 = vld [vmem:[%s0 + $0x798] sm:$0xff]
  %v453 = vld [vmem:[%s0 + $0x7a0] sm:$0xff]
  %v454 = vld [vmem:[%s0 + $0x7a8] sm:$0xff]
  %v455 = vld [vmem:[%s0 + $0x7b0] sm:$0xff]
  %v456 = vld [vmem:[%s0 + $0x7b8] sm:$0xff]
  %v457 = vld [vmem:[%s0 + $0x7c0] sm:$0xff]
  %v458 = vld [vmem:[%s0 + $0x7c8] sm:$0xff]
  %v459 = vld [vmem:[%s0 + $0x7d0] sm:$0xff]
  %v460 = vld [vmem:[%s0 + $0x7d8] sm:$0xff]
  %v461 = vld [vmem:[%s0 + $0x7e0] sm:$0xff]
  %v462 = vld [vmem:[%s0 + $0x7e8] sm:$0xff]
  %v463 = vld [vmem:[%s0 + $0x7f0] sm:$0xff]
  %v464 = vld [vmem:[%s0 + $0x7f8] sm:$0xff]
  %465 = vmatpush.msra.mxu0 %v96
  %466 = vmatpush.msra.mxu0 %v95
  %467 = vmatpush.msra.mxu0 %v94
  %468 = vmatpush.msra.mxu0 %v93
  %469 = vmatpush.msra.mxu0 %v92
  %470 = vmatpush.msra.mxu0 %v91
  %471 = vmatpush.msra.mxu0 %v90
  %472 = vmatpush.msra.mxu0 %v89
  %473 = vmatpush.msra.mxu0 %v88
  %474 = vmatpush.msra.mxu0 %v87
  %475 = vmatpush.msra.mxu0 %v86
  %476 = vmatpush.msra.mxu0 %v85
  %477 = vmatpush.msra.mxu0 %v84
  %478 = vmatpush.msra.mxu0 %v83
  %479 = vmatpush.msra.mxu0 %v82
  %480 = vmatpush.msra.mxu0 %v81
  %481 = vmatmul.f32.gmra.mxu0 %v209
  %v482 = vpop.f32.mrf.mxu0
  %v483 = vadd.f32 0.0, %v482
  %484 = vmatmul.f32.gmra.mxu0 %v213
  %v485 = vpop.f32.mrf.mxu0
  %v486 = vadd.f32 0.0, %v485
  %487 = vmatmul.f32.gmra.mxu0 %v217
  %v488 = vpop.f32.mrf.mxu0
  %v489 = vadd.f32 0.0, %v488
  %490 = vmatmul.f32.gmra.mxu0 %v221
  %v491 = vpop.f32.mrf.mxu0
  %v492 = vadd.f32 0.0, %v491
  %493 = vmatmul.f32.gmra.mxu0 %v225
  %v494 = vpop.f32.mrf.mxu0
  %v495 = vadd.f32 0.0, %v494
  %496 = vmatmul.f32.gmra.mxu0 %v229
  %v497 = vpop.f32.mrf.mxu0
  %v498 = vadd.f32 0.0, %v497
  %499 = vmatmul.f32.gmra.mxu0 %v233
  %v500 = vpop.f32.mrf.mxu0
  %v501 = vadd.f32 0.0, %v500
  %502 = vmatmul.f32.gmra.mxu0 %v237
  %v503 = vpop.f32.mrf.mxu0
  %v504 = vadd.f32 0.0, %v503
  %505 = vmatmul.f32.gmra.mxu0 %v241
  %v506 = vpop.f32.mrf.mxu0
  %v507 = vadd.f32 0.0, %v506
  %508 = vmatmul.f32.gmra.mxu0 %v245
  %v509 = vpop.f32.mrf.mxu0
  %v510 = vadd.f32 0.0, %v509
  %511 = vmatmul.f32.gmra.mxu0 %v249
  %v512 = vpop.f32.mrf.mxu0
  %v513 = vadd.f32 0.0, %v512
  %514 = vmatmul.f32.gmra.mxu0 %v253
  %v515 = vpop.f32.mrf.mxu0
  %v516 = vadd.f32 0.0, %v515
  %517 = vmatmul.f32.gmra.mxu0 %v257
  %v518 = vpop.f32.mrf.mxu0
  %v519 = vadd.f32 0.0, %v518
  %520 = vmatmul.f32.gmra.mxu0 %v261
  %v521 = vpop.f32.mrf.mxu0
  %v522 = vadd.f32 0.0, %v521
  %523 = vmatmul.f32.gmra.mxu0 %v265
  %v524 = vpop.f32.mrf.mxu0
  %v525 = vadd.f32 0.0, %v524
  %526 = vmatmul.f32.gmra.mxu0 %v269
  %v527 = vpop.f32.mrf.mxu0
  %v528 = vadd.f32 0.0, %v527
  %529 = vmatmul.f32.gmra.mxu0 %v273
  %v530 = vpop.f32.mrf.mxu0
  %v531 = vadd.f32 0.0, %v530
  %532 = vmatmul.f32.gmra.mxu0 %v277
  %v533 = vpop.f32.mrf.mxu0
  %v534 = vadd.f32 0.0, %v533
  %535 = vmatmul.f32.gmra.mxu0 %v281
  %v536 = vpop.f32.mrf.mxu0
  %v537 = vadd.f32 0.0, %v536
  %538 = vmatmul.f32.gmra.mxu0 %v285
  %v539 = vpop.f32.mrf.mxu0
  %v540 = vadd.f32 0.0, %v539
  %541 = vmatmul.f32.gmra.mxu0 %v289
  %v542 = vpop.f32.mrf.mxu0
  %v543 = vadd.f32 0.0, %v542
  %544 = vmatmul.f32.gmra.mxu0 %v293
  %v545 = vpop.f32.mrf.mxu0
  %v546 = vadd.f32 0.0, %v545
  %547 = vmatmul.f32.gmra.mxu0 %v297
  %v548 = vpop.f32.mrf.mxu0
  %v549 = vadd.f32 0.0, %v548
  %550 = vmatmul.f32.gmra.mxu0 %v301
  %v551 = vpop.f32.mrf.mxu0
  %v552 = vadd.f32 0.0, %v551
  %553 = vmatmul.f32.gmra.mxu0 %v305
  %v554 = vpop.f32.mrf.mxu0
  %v555 = vadd.f32 0.0, %v554
  %556 = vmatmul.f32.gmra.mxu0 %v309
  %v557 = vpop.f32.mrf.mxu0
  %v558 = vadd.f32 0.0, %v557
  %559 = vmatmul.f32.gmra.mxu0 %v313
  %v560 = vpop.f32.mrf.mxu0
  %v561 = vadd.f32 0.0, %v560
  %562 = vmatmul.f32.gmra.mxu0 %v317
  %v563 = vpop.f32.mrf.mxu0
  %v564 = vadd.f32 0.0, %v563
  %565 = vmatmul.f32.gmra.mxu0 %v321
  %v566 = vpop.f32.mrf.mxu0
  %v567 = vadd.f32 0.0, %v566
  %568 = vmatmul.f32.gmra.mxu0 %v325
  %v569 = vpop.f32.mrf.mxu0
  %v570 = vadd.f32 0.0, %v569
  %571 = vmatmul.f32.gmra.mxu0 %v329
  %v572 = vpop.f32.mrf.mxu0
  %v573 = vadd.f32 0.0, %v572
  %574 = vmatmul.f32.gmra.mxu0 %v333
  %v575 = vpop.f32.mrf.mxu0
  %v576 = vadd.f32 0.0, %v575
  %577 = vmatmul.f32.gmra.mxu0 %v337
  %v578 = vpop.f32.mrf.mxu0
  %v579 = vadd.f32 0.0, %v578
  %580 = vmatmul.f32.gmra.mxu0 %v341
  %v581 = vpop.f32.mrf.mxu0
  %v582 = vadd.f32 0.0, %v581
  %583 = vmatmul.f32.gmra.mxu0 %v345
  %v584 = vpop.f32.mrf.mxu0
  %v585 = vadd.f32 0.0, %v584
  %586 = vmatmul.f32.gmra.mxu0 %v349
  %v587 = vpop.f32.mrf.mxu0
  %v588 = vadd.f32 0.0, %v587
  %589 = vmatmul.f32.gmra.mxu0 %v353
  %v590 = vpop.f32.mrf.mxu0
  %v591 = vadd.f32 0.0, %v590
  %592 = vmatmul.f32.gmra.mxu0 %v357
  %v593 = vpop.f32.mrf.mxu0
  %v594 = vadd.f32 0.0, %v593
  %595 = vmatmul.f32.gmra.mxu0 %v361
  %v596 = vpop.f32.mrf.mxu0
  %v597 = vadd.f32 0.0, %v596
  %598 = vmatmul.f32.gmra.mxu0 %v365
  %v599 = vpop.f32.mrf.mxu0
  %v600 = vadd.f32 0.0, %v599
  %601 = vmatmul.f32.gmra.mxu0 %v369
  %v602 = vpop.f32.mrf.mxu0
  %v603 = vadd.f32 0.0, %v602
  %604 = vmatmul.f32.gmra.mxu0 %v373
  %v605 = vpop.f32.mrf.mxu0
  %v606 = vadd.f32 0.0, %v605
  %607 = vmatmul.f32.gmra.mxu0 %v377
  %v608 = vpop.f32.mrf.mxu0
  %v609 = vadd.f32 0.0, %v608
  %610 = vmatmul.f32.gmra.mxu0 %v381
  %v611 = vpop.f32.mrf.mxu0
  %v612 = vadd.f32 0.0, %v611
  %613 = vmatmul.f32.gmra.mxu0 %v385
  %v614 = vpop.f32.mrf.mxu0
  %v615 = vadd.f32 0.0, %v614
  %616 = vmatmul.f32.gmra.mxu0 %v389
  %v617 = vpop.f32.mrf.mxu0
  %v618 = vadd.f32 0.0, %v617
  %619 = vmatmul.f32.gmra.mxu0 %v393
  %v620 = vpop.f32.mrf.mxu0
  %v621 = vadd.f32 0.0, %v620
  %622 = vmatmul.f32.gmra.mxu0 %v397
  %v623 = vpop.f32.mrf.mxu0
  %v624 = vadd.f32 0.0, %v623
  %625 = vmatmul.f32.gmra.mxu0 %v401
  %v626 = vpop.f32.mrf.mxu0
  %v627 = vadd.f32 0.0, %v626
  %628 = vmatmul.f32.gmra.mxu0 %v405
  %v629 = vpop.f32.mrf.mxu0
  %v630 = vadd.f32 0.0, %v629
  %631 = vmatmul.f32.gmra.mxu0 %v409
  %v632 = vpop.f32.mrf.mxu0
  %v633 = vadd.f32 0.0, %v632
  %634 = vmatmul.f32.gmra.mxu0 %v413
  %v635 = vpop.f32.mrf.mxu0
  %v636 = vadd.f32 0.0, %v635
  %637 = vmatmul.f32.gmra.mxu0 %v417
  %v638 = vpop.f32.mrf.mxu0
  %v639 = vadd.f32 0.0, %v638
  %640 = vmatmul.f32.gmra.mxu0 %v421
  %v641 = vpop.f32.mrf.mxu0
  %v642 = vadd.f32 0.0, %v641
  %643 = vmatmul.f32.gmra.mxu0 %v425
  %v644 = vpop.f32.mrf.mxu0
  %v645 = vadd.f32 0.0, %v644
  %646 = vmatmul.f32.gmra.mxu0 %v429
  %v647 = vpop.f32.mrf.mxu0
  %v648 = vadd.f32 0.0, %v647
  %649 = vmatmul.f32.gmra.mxu0 %v433
  %v650 = vpop.f32.mrf.mxu0
  %v651 = vadd.f32 0.0, %v650
  %652 = vmatmul.f32.gmra.mxu0 %v437
  %v653 = vpop.f32.mrf.mxu0
  %v654 = vadd.f32 0.0, %v653
  %655 = vmatmul.f32.gmra.mxu0 %v441
  %v656 = vpop.f32.mrf.mxu0
  %v657 = vadd.f32 0.0, %v656
  %658 = vmatmul.f32.gmra.mxu0 %v445
  %v659 = vpop.f32.mrf.mxu0
  %v660 = vadd.f32 0.0, %v659
  %661 = vmatmul.f32.gmra.mxu0 %v449
  %v662 = vpop.f32.mrf.mxu0
  %v663 = vadd.f32 0.0, %v662
  %664 = vmatmul.f32.gmra.mxu0 %v453
  %v665 = vpop.f32.mrf.mxu0
  %v666 = vadd.f32 0.0, %v665
  %667 = vmatmul.f32.gmra.mxu0 %v457
  %v668 = vpop.f32.mrf.mxu0
  %v669 = vadd.f32 0.0, %v668
  %670 = vmatmul.f32.gmra.mxu0 %v461
  %v671 = vpop.f32.mrf.mxu0
  %v672 = vadd.f32 0.0, %v671
  %673 = vdwg.mxu0
  %674 = vmatpush.msra.mxu0 %v112
  %675 = vmatpush.msra.mxu0 %v111
  %676 = vmatpush.msra.mxu0 %v110
  %677 = vmatpush.msra.mxu0 %v109
  %678 = vmatpush.msra.mxu0 %v108
  %679 = vmatpush.msra.mxu0 %v107
  %680 = vmatpush.msra.mxu0 %v106
  %681 = vmatpush.msra.mxu0 %v105
  %682 = vmatpush.msra.mxu0 %v104
  %683 = vmatpush.msra.mxu0 %v103
  %684 = vmatpush.msra.mxu0 %v102
  %685 = vmatpush.msra.mxu0 %v101
  %686 = vmatpush.msra.mxu0 %v100
  %687 = vmatpush.msra.mxu0 %v99
  %688 = vmatpush.msra.mxu0 %v98
  %689 = vmatpush.msra.mxu0 %v97
  %690 = vmatmul.f32.gmra.mxu0 %v210
  %v691 = vpop.f32.mrf.mxu0
  %v692 = vadd.f32 %v483, %v691
  %693 = vmatmul.f32.gmra.mxu0 %v214
  %v694 = vpop.f32.mrf.mxu0
  %v695 = vadd.f32 %v486, %v694
  %696 = vmatmul.f32.gmra.mxu0 %v218
  %v697 = vpop.f32.mrf.mxu0
  %v698 = vadd.f32 %v489, %v697
  %699 = vmatmul.f32.gmra.mxu0 %v222
  %v700 = vpop.f32.mrf.mxu0
  %v701 = vadd.f32 %v492, %v700
  %702 = vmatmul.f32.gmra.mxu0 %v226
  %v703 = vpop.f32.mrf.mxu0
  %v704 = vadd.f32 %v495, %v703
  %705 = vmatmul.f32.gmra.mxu0 %v230
  %v706 = vpop.f32.mrf.mxu0
  %v707 = vadd.f32 %v498, %v706
  %708 = vmatmul.f32.gmra.mxu0 %v234
  %v709 = vpop.f32.mrf.mxu0
  %v710 = vadd.f32 %v501, %v709
  %711 = vmatmul.f32.gmra.mxu0 %v238
  %v712 = vpop.f32.mrf.mxu0
  %v713 = vadd.f32 %v504, %v712
  %714 = vmatmul.f32.gmra.mxu0 %v242
  %v715 = vpop.f32.mrf.mxu0
  %v716 = vadd.f32 %v507, %v715
  %717 = vmatmul.f32.gmra.mxu0 %v246
  %v718 = vpop.f32.mrf.mxu0
  %v719 = vadd.f32 %v510, %v718
  %720 = vmatmul.f32.gmra.mxu0 %v250
  %v721 = vpop.f32.mrf.mxu0
  %v722 = vadd.f32 %v513, %v721
  %723 = vmatmul.f32.gmra.mxu0 %v254
  %v724 = vpop.f32.mrf.mxu0
  %v725 = vadd.f32 %v516, %v724
  %726 = vmatmul.f32.gmra.mxu0 %v258
  %v727 = vpop.f32.mrf.mxu0
  %v728 = vadd.f32 %v519, %v727
  %729 = vmatmul.f32.gmra.mxu0 %v262
  %v730 = vpop.f32.mrf.mxu0
  %v731 = vadd.f32 %v522, %v730
  %732 = vmatmul.f32.gmra.mxu0 %v266
  %v733 = vpop.f32.mrf.mxu0
  %v734 = vadd.f32 %v525, %v733
  %735 = vmatmul.f32.gmra.mxu0 %v270
  %v736 = vpop.f32.mrf.mxu0
  %v737 = vadd.f32 %v528, %v736
  %738 = vmatmul.f32.gmra.mxu0 %v274
  %v739 = vpop.f32.mrf.mxu0
  %v740 = vadd.f32 %v531, %v739
  %741 = vmatmul.f32.gmra.mxu0 %v278
  %v742 = vpop.f32.mrf.mxu0
  %v743 = vadd.f32 %v534, %v742
  %744 = vmatmul.f32.gmra.mxu0 %v282
  %v745 = vpop.f32.mrf.mxu0
  %v746 = vadd.f32 %v537, %v745
  %747 = vmatmul.f32.gmra.mxu0 %v286
  %v748 = vpop.f32.mrf.mxu0
  %v749 = vadd.f32 %v540, %v748
  %750 = vmatmul.f32.gmra.mxu0 %v290
  %v751 = vpop.f32.mrf.mxu0
  %v752 = vadd.f32 %v543, %v751
  %753 = vmatmul.f32.gmra.mxu0 %v294
  %v754 = vpop.f32.mrf.mxu0
  %v755 = vadd.f32 %v546, %v754
  %756 = vmatmul.f32.gmra.mxu0 %v298
  %v757 = vpop.f32.mrf.mxu0
  %v758 = vadd.f32 %v549, %v757
  %759 = vmatmul.f32.gmra.mxu0 %v302
  %v760 = vpop.f32.mrf.mxu0
  %v761 = vadd.f32 %v552, %v760
  %762 = vmatmul.f32.gmra.mxu0 %v306
  %v763 = vpop.f32.mrf.mxu0
  %v764 = vadd.f32 %v555, %v763
  %765 = vmatmul.f32.gmra.mxu0 %v310
  %v766 = vpop.f32.mrf.mxu0
  %v767 = vadd.f32 %v558, %v766
  %768 = vmatmul.f32.gmra.mxu0 %v314
  %v769 = vpop.f32.mrf.mxu0
  %v770 = vadd.f32 %v561, %v769
  %771 = vmatmul.f32.gmra.mxu0 %v318
  %v772 = vpop.f32.mrf.mxu0
  %v773 = vadd.f32 %v564, %v772
  %774 = vmatmul.f32.gmra.mxu0 %v322
  %v775 = vpop.f32.mrf.mxu0
  %v776 = vadd.f32 %v567, %v775
  %777 = vmatmul.f32.gmra.mxu0 %v326
  %v778 = vpop.f32.mrf.mxu0
  %v779 = vadd.f32 %v570, %v778
  %780 = vmatmul.f32.gmra.mxu0 %v330
  %v781 = vpop.f32.mrf.mxu0
  %v782 = vadd.f32 %v573, %v781
  %783 = vmatmul.f32.gmra.mxu0 %v334
  %v784 = vpop.f32.mrf.mxu0
  %v785 = vadd.f32 %v576, %v784
  %786 = vmatmul.f32.gmra.mxu0 %v338
  %v787 = vpop.f32.mrf.mxu0
  %v788 = vadd.f32 %v579, %v787
  %789 = vmatmul.f32.gmra.mxu0 %v342
  %v790 = vpop.f32.mrf.mxu0
  %v791 = vadd.f32 %v582, %v790
  %792 = vmatmul.f32.gmra.mxu0 %v346
  %v793 = vpop.f32.mrf.mxu0
  %v794 = vadd.f32 %v585, %v793
  %795 = vmatmul.f32.gmra.mxu0 %v350
  %v796 = vpop.f32.mrf.mxu0
  %v797 = vadd.f32 %v588, %v796
  %798 = vmatmul.f32.gmra.mxu0 %v354
  %v799 = vpop.f32.mrf.mxu0
  %v800 = vadd.f32 %v591, %v799
  %801 = vmatmul.f32.gmra.mxu0 %v358
  %v802 = vpop.f32.mrf.mxu0
  %v803 = vadd.f32 %v594, %v802
  %804 = vmatmul.f32.gmra.mxu0 %v362
  %v805 = vpop.f32.mrf.mxu0
  %v806 = vadd.f32 %v597, %v805
  %807 = vmatmul.f32.gmra.mxu0 %v366
  %v808 = vpop.f32.mrf.mxu0
  %v809 = vadd.f32 %v600, %v808
  %810 = vmatmul.f32.gmra.mxu0 %v370
  %v811 = vpop.f32.mrf.mxu0
  %v812 = vadd.f32 %v603, %v811
  %813 = vmatmul.f32.gmra.mxu0 %v374
  %v814 = vpop.f32.mrf.mxu0
  %v815 = vadd.f32 %v606, %v814
  %816 = vmatmul.f32.gmra.mxu0 %v378
  %v817 = vpop.f32.mrf.mxu0
  %v818 = vadd.f32 %v609, %v817
  %819 = vmatmul.f32.gmra.mxu0 %v382
  %v820 = vpop.f32.mrf.mxu0
  %v821 = vadd.f32 %v612, %v820
  %822 = vmatmul.f32.gmra.mxu0 %v386
  %v823 = vpop.f32.mrf.mxu0
  %v824 = vadd.f32 %v615, %v823
  %825 = vmatmul.f32.gmra.mxu0 %v390
  %v826 = vpop.f32.mrf.mxu0
  %v827 = vadd.f32 %v618, %v826
  %828 = vmatmul.f32.gmra.mxu0 %v394
  %v829 = vpop.f32.mrf.mxu0
  %v830 = vadd.f32 %v621, %v829
  %831 = vmatmul.f32.gmra.mxu0 %v398
  %v832 = vpop.f32.mrf.mxu0
  %v833 = vadd.f32 %v624, %v832
  %834 = vmatmul.f32.gmra.mxu0 %v402
  %v835 = vpop.f32.mrf.mxu0
  %v836 = vadd.f32 %v627, %v835
  %837 = vmatmul.f32.gmra.mxu0 %v406
  %v838 = vpop.f32.mrf.mxu0
  %v839 = vadd.f32 %v630, %v838
  %840 = vmatmul.f32.gmra.mxu0 %v410
  %v841 = vpop.f32.mrf.mxu0
  %v842 = vadd.f32 %v633, %v841
  %843 = vmatmul.f32.gmra.mxu0 %v414
  %v844 = vpop.f32.mrf.mxu0
  %v845 = vadd.f32 %v636, %v844
  %846 = vmatmul.f32.gmra.mxu0 %v418
  %v847 = vpop.f32.mrf.mxu0
  %v848 = vadd.f32 %v639, %v847
  %849 = vmatmul.f32.gmra.mxu0 %v422
  %v850 = vpop.f32.mrf.mxu0
  %v851 = vadd.f32 %v642, %v850
  %852 = vmatmul.f32.gmra.mxu0 %v426
  %v853 = vpop.f32.mrf.mxu0
  %v854 = vadd.f32 %v645, %v853
  %855 = vmatmul.f32.gmra.mxu0 %v430
  %v856 = vpop.f32.mrf.mxu0
  %v857 = vadd.f32 %v648, %v856
  %858 = vmatmul.f32.gmra.mxu0 %v434
  %v859 = vpop.f32.mrf.mxu0
  %v860 = vadd.f32 %v651, %v859
  %861 = vmatmul.f32.gmra.mxu0 %v438
  %v862 = vpop.f32.mrf.mxu0
  %v863 = vadd.f32 %v654, %v862
  %864 = vmatmul.f32.gmra.mxu0 %v442
  %v865 = vpop.f32.mrf.mxu0
  %v866 = vadd.f32 %v657, %v865
  %867 = vmatmul.f32.gmra.mxu0 %v446
  %v868 = vpop.f32.mrf.mxu0
  %v869 = vadd.f32 %v660, %v868
  %870 = vmatmul.f32.gmra.mxu0 %v450
  %v871 = vpop.f32.mrf.mxu0
  %v872 = vadd.f32 %v663, %v871
  %873 = vmatmul.f32.gmra.mxu0 %v454
  %v874 = vpop.f32.mrf.mxu0
  %v875 = vadd.f32 %v666, %v874
  %876 = vmatmul.f32.gmra.mxu0 %v458
  %v877 = vpop.f32.mrf.mxu0
  %v878 = vadd.f32 %v669, %v877
  %879 = vmatmul.f32.gmra.mxu0 %v462
  %v880 = vpop.f32.mrf.mxu0
  %v881 = vadd.f32 %v672, %v880
  %882 = vdwg.mxu0
  %883 = vmatpush.msra.mxu0 %v128
  %884 = vmatpush.msra.mxu0 %v127
  %885 = vmatpush.msra.mxu0 %v126
  %886 = vmatpush.msra.mxu0 %v125
  %887 = vmatpush.msra.mxu0 %v124
  %888 = vmatpush.msra.mxu0 %v123
  %889 = vmatpush.msra.mxu0 %v122
  %890 = vmatpush.msra.mxu0 %v121
  %891 = vmatpush.msra.mxu0 %v120
  %892 = vmatpush.msra.mxu0 %v119
  %893 = vmatpush.msra.mxu0 %v118
  %894 = vmatpush.msra.mxu0 %v117
  %895 = vmatpush.msra.mxu0 %v116
  %896 = vmatpush.msra.mxu0 %v115
  %897 = vmatpush.msra.mxu0 %v114
  %898 = vmatpush.msra.mxu0 %v113
  %899 = vmatmul.f32.gmra.mxu0 %v211
  %v900 = vpop.f32.mrf.mxu0
  %v901 = vadd.f32 %v692, %v900
  %902 = vmatmul.f32.gmra.mxu0 %v215
  %v903 = vpop.f32.mrf.mxu0
  %v904 = vadd.f32 %v695, %v903
  %905 = vmatmul.f32.gmra.mxu0 %v219
  %v906 = vpop.f32.mrf.mxu0
  %v907 = vadd.f32 %v698, %v906
  %908 = vmatmul.f32.gmra.mxu0 %v223
  %v909 = vpop.f32.mrf.mxu0
  %v910 = vadd.f32 %v701, %v909
  %911 = vmatmul.f32.gmra.mxu0 %v227
  %v912 = vpop.f32.mrf.mxu0
  %v913 = vadd.f32 %v704, %v912
  %914 = vmatmul.f32.gmra.mxu0 %v231
  %v915 = vpop.f32.mrf.mxu0
  %v916 = vadd.f32 %v707, %v915
  %917 = vmatmul.f32.gmra.mxu0 %v235
  %v918 = vpop.f32.mrf.mxu0
  %v919 = vadd.f32 %v710, %v918
  %920 = vmatmul.f32.gmra.mxu0 %v239
  %v921 = vpop.f32.mrf.mxu0
  %v922 = vadd.f32 %v713, %v921
  %923 = vmatmul.f32.gmra.mxu0 %v243
  %v924 = vpop.f32.mrf.mxu0
  %v925 = vadd.f32 %v716, %v924
  %926 = vmatmul.f32.gmra.mxu0 %v247
  %v927 = vpop.f32.mrf.mxu0
  %v928 = vadd.f32 %v719, %v927
  %929 = vmatmul.f32.gmra.mxu0 %v251
  %v930 = vpop.f32.mrf.mxu0
  %v931 = vadd.f32 %v722, %v930
  %932 = vmatmul.f32.gmra.mxu0 %v255
  %v933 = vpop.f32.mrf.mxu0
  %v934 = vadd.f32 %v725, %v933
  %935 = vmatmul.f32.gmra.mxu0 %v259
  %v936 = vpop.f32.mrf.mxu0
  %v937 = vadd.f32 %v728, %v936
  %938 = vmatmul.f32.gmra.mxu0 %v263
  %v939 = vpop.f32.mrf.mxu0
  %v940 = vadd.f32 %v731, %v939
  %941 = vmatmul.f32.gmra.mxu0 %v267
  %v942 = vpop.f32.mrf.mxu0
  %v943 = vadd.f32 %v734, %v942
  %944 = vmatmul.f32.gmra.mxu0 %v271
  %v945 = vpop.f32.mrf.mxu0
  %v946 = vadd.f32 %v737, %v945
  %947 = vmatmul.f32.gmra.mxu0 %v275
  %v948 = vpop.f32.mrf.mxu0
  %v949 = vadd.f32 %v740, %v948
  %950 = vmatmul.f32.gmra.mxu0 %v279
  %v951 = vpop.f32.mrf.mxu0
  %v952 = vadd.f32 %v743, %v951
  %953 = vmatmul.f32.gmra.mxu0 %v283
  %v954 = vpop.f32.mrf.mxu0
  %v955 = vadd.f32 %v746, %v954
  %956 = vmatmul.f32.gmra.mxu0 %v287
  %v957 = vpop.f32.mrf.mxu0
  %v958 = vadd.f32 %v749, %v957
  %959 = vmatmul.f32.gmra.mxu0 %v291
  %v960 = vpop.f32.mrf.mxu0
  %v961 = vadd.f32 %v752, %v960
  %962 = vmatmul.f32.gmra.mxu0 %v295
  %v963 = vpop.f32.mrf.mxu0
  %v964 = vadd.f32 %v755, %v963
  %965 = vmatmul.f32.gmra.mxu0 %v299
  %v966 = vpop.f32.mrf.mxu0
  %v967 = vadd.f32 %v758, %v966
  %968 = vmatmul.f32.gmra.mxu0 %v303
  %v969 = vpop.f32.mrf.mxu0
  %v970 = vadd.f32 %v761, %v969
  %971 = vmatmul.f32.gmra.mxu0 %v307
  %v972 = vpop.f32.mrf.mxu0
  %v973 = vadd.f32 %v764, %v972
  %974 = vmatmul.f32.gmra.mxu0 %v311
  %v975 = vpop.f32.mrf.mxu0
  %v976 = vadd.f32 %v767, %v975
  %977 = vmatmul.f32.gmra.mxu0 %v315
  %v978 = vpop.f32.mrf.mxu0
  %v979 = vadd.f32 %v770, %v978
  %980 = vmatmul.f32.gmra.mxu0 %v319
  %v981 = vpop.f32.mrf.mxu0
  %v982 = vadd.f32 %v773, %v981
  %983 = vmatmul.f32.gmra.mxu0 %v323
  %v984 = vpop.f32.mrf.mxu0
  %v985 = vadd.f32 %v776, %v984
  %986 = vmatmul.f32.gmra.mxu0 %v327
  %v987 = vpop.f32.mrf.mxu0
  %v988 = vadd.f32 %v779, %v987
  %989 = vmatmul.f32.gmra.mxu0 %v331
  %v990 = vpop.f32.mrf.mxu0
  %v991 = vadd.f32 %v782, %v990
  %992 = vmatmul.f32.gmra.mxu0 %v335
  %v993 = vpop.f32.mrf.mxu0
  %v994 = vadd.f32 %v785, %v993
  %995 = vmatmul.f32.gmra.mxu0 %v339
  %v996 = vpop.f32.mrf.mxu0
  %v997 = vadd.f32 %v788, %v996
  %998 = vmatmul.f32.gmra.mxu0 %v343
  %v999 = vpop.f32.mrf.mxu0
  %v1000 = vadd.f32 %v791, %v999
  %1001 = vmatmul.f32.gmra.mxu0 %v347
  %v1002 = vpop.f32.mrf.mxu0
  %v1003 = vadd.f32 %v794, %v1002
  %1004 = vmatmul.f32.gmra.mxu0 %v351
  %v1005 = vpop.f32.mrf.mxu0
  %v1006 = vadd.f32 %v797, %v1005
  %1007 = vmatmul.f32.gmra.mxu0 %v355
  %v1008 = vpop.f32.mrf.mxu0
  %v1009 = vadd.f32 %v800, %v1008
  %1010 = vmatmul.f32.gmra.mxu0 %v359
  %v1011 = vpop.f32.mrf.mxu0
  %v1012 = vadd.f32 %v803, %v1011
  %1013 = vmatmul.f32.gmra.mxu0 %v363
  %v1014 = vpop.f32.mrf.mxu0
  %v1015 = vadd.f32 %v806, %v1014
  %1016 = vmatmul.f32.gmra.mxu0 %v367
  %v1017 = vpop.f32.mrf.mxu0
  %v1018 = vadd.f32 %v809, %v1017
  %1019 = vmatmul.f32.gmra.mxu0 %v371
  %v1020 = vpop.f32.mrf.mxu0
  %v1021 = vadd.f32 %v812, %v1020
  %1022 = vmatmul.f32.gmra.mxu0 %v375
  %v1023 = vpop.f32.mrf.mxu0
  %v1024 = vadd.f32 %v815, %v1023
  %1025 = vmatmul.f32.gmra.mxu0 %v379
  %v1026 = vpop.f32.mrf.mxu0
  %v1027 = vadd.f32 %v818, %v1026
  %1028 = vmatmul.f32.gmra.mxu0 %v383
  %v1029 = vpop.f32.mrf.mxu0
  %v1030 = vadd.f32 %v821, %v1029
  %1031 = vmatmul.f32.gmra.mxu0 %v387
  %v1032 = vpop.f32.mrf.mxu0
  %v1033 = vadd.f32 %v824, %v1032
  %1034 = vmatmul.f32.gmra.mxu0 %v391
  %v1035 = vpop.f32.mrf.mxu0
  %v1036 = vadd.f32 %v827, %v1035
  %1037 = vmatmul.f32.gmra.mxu0 %v395
  %v1038 = vpop.f32.mrf.mxu0
  %v1039 = vadd.f32 %v830, %v1038
  %1040 = vmatmul.f32.gmra.mxu0 %v399
  %v1041 = vpop.f32.mrf.mxu0
  %v1042 = vadd.f32 %v833, %v1041
  %1043 = vmatmul.f32.gmra.mxu0 %v403
  %v1044 = vpop.f32.mrf.mxu0
  %v1045 = vadd.f32 %v836, %v1044
  %1046 = vmatmul.f32.gmra.mxu0 %v407
  %v1047 = vpop.f32.mrf.mxu0
  %v1048 = vadd.f32 %v839, %v1047
  %1049 = vmatmul.f32.gmra.mxu0 %v411
  %v1050 = vpop.f32.mrf.mxu0
  %v1051 = vadd.f32 %v842, %v1050
  %1052 = vmatmul.f32.gmra.mxu0 %v415
  %v1053 = vpop.f32.mrf.mxu0
  %v1054 = vadd.f32 %v845, %v1053
  %1055 = vmatmul.f32.gmra.mxu0 %v419
  %v1056 = vpop.f32.mrf.mxu0
  %v1057 = vadd.f32 %v848, %v1056
  %1058 = vmatmul.f32.gmra.mxu0 %v423
  %v1059 = vpop.f32.mrf.mxu0
  %v1060 = vadd.f32 %v851, %v1059
  %1061 = vmatmul.f32.gmra.mxu0 %v427
  %v1062 = vpop.f32.mrf.mxu0
  %v1063 = vadd.f32 %v854, %v1062
  %1064 = vmatmul.f32.gmra.mxu0 %v431
  %v1065 = vpop.f32.mrf.mxu0
  %v1066 = vadd.f32 %v857, %v1065
  %1067 = vmatmul.f32.gmra.mxu0 %v435
  %v1068 = vpop.f32.mrf.mxu0
  %v1069 = vadd.f32 %v860, %v1068
  %1070 = vmatmul.f32.gmra.mxu0 %v439
  %v1071 = vpop.f32.mrf.mxu0
  %v1072 = vadd.f32 %v863, %v1071
  %1073 = vmatmul.f32.gmra.mxu0 %v443
  %v1074 = vpop.f32.mrf.mxu0
  %v1075 = vadd.f32 %v866, %v1074
  %1076 = vmatmul.f32.gmra.mxu0 %v447
  %v1077 = vpop.f32.mrf.mxu0
  %v1078 = vadd.f32 %v869, %v1077
  %1079 = vmatmul.f32.gmra.mxu0 %v451
  %v1080 = vpop.f32.mrf.mxu0
  %v1081 = vadd.f32 %v872, %v1080
  %1082 = vmatmul.f32.gmra.mxu0 %v455
  %v1083 = vpop.f32.mrf.mxu0
  %v1084 = vadd.f32 %v875, %v1083
  %1085 = vmatmul.f32.gmra.mxu0 %v459
  %v1086 = vpop.f32.mrf.mxu0
  %v1087 = vadd.f32 %v878, %v1086
  %1088 = vmatmul.f32.gmra.mxu0 %v463
  %v1089 = vpop.f32.mrf.mxu0
  %v1090 = vadd.f32 %v881, %v1089
  %1091 = vdwg.mxu0
  %1092 = vmatpush.msra.mxu0 %v144
  %1093 = vmatpush.msra.mxu0 %v143
  %1094 = vmatpush.msra.mxu0 %v142
  %1095 = vmatpush.msra.mxu0 %v141
  %1096 = vmatpush.msra.mxu0 %v140
  %1097 = vmatpush.msra.mxu0 %v139
  %1098 = vmatpush.msra.mxu0 %v138
  %1099 = vmatpush.msra.mxu0 %v137
  %1100 = vmatpush.msra.mxu0 %v136
  %1101 = vmatpush.msra.mxu0 %v135
  %1102 = vmatpush.msra.mxu0 %v134
  %1103 = vmatpush.msra.mxu0 %v133
  %1104 = vmatpush.msra.mxu0 %v132
  %1105 = vmatpush.msra.mxu0 %v131
  %1106 = vmatpush.msra.mxu0 %v130
  %1107 = vmatpush.msra.mxu0 %v129
  %1108 = vmatmul.f32.gmra.mxu0 %v212
  %v1109 = vpop.f32.mrf.mxu0
  %v1110 = vadd.f32 %v901, %v1109
  %1111 = vmatmul.f32.gmra.mxu0 %v216
  %v1112 = vpop.f32.mrf.mxu0
  %v1113 = vadd.f32 %v904, %v1112
  %1114 = vmatmul.f32.gmra.mxu0 %v220
  %v1115 = vpop.f32.mrf.mxu0
  %v1116 = vadd.f32 %v907, %v1115
  %1117 = vmatmul.f32.gmra.mxu0 %v224
  %v1118 = vpop.f32.mrf.mxu0
  %v1119 = vadd.f32 %v910, %v1118
  %1120 = vmatmul.f32.gmra.mxu0 %v228
  %v1121 = vpop.f32.mrf.mxu0
  %v1122 = vadd.f32 %v913, %v1121
  %1123 = vmatmul.f32.gmra.mxu0 %v232
  %v1124 = vpop.f32.mrf.mxu0
  %v1125 = vadd.f32 %v916, %v1124
  %1126 = vmatmul.f32.gmra.mxu0 %v236
  %v1127 = vpop.f32.mrf.mxu0
  %v1128 = vadd.f32 %v919, %v1127
  %1129 = vmatmul.f32.gmra.mxu0 %v240
  %v1130 = vpop.f32.mrf.mxu0
  %v1131 = vadd.f32 %v922, %v1130
  %1132 = vmatmul.f32.gmra.mxu0 %v244
  %v1133 = vpop.f32.mrf.mxu0
  %v1134 = vadd.f32 %v925, %v1133
  %1135 = vmatmul.f32.gmra.mxu0 %v248
  %v1136 = vpop.f32.mrf.mxu0
  %v1137 = vadd.f32 %v928, %v1136
  %1138 = vmatmul.f32.gmra.mxu0 %v252
  %v1139 = vpop.f32.mrf.mxu0
  %v1140 = vadd.f32 %v931, %v1139
  %1141 = vmatmul.f32.gmra.mxu0 %v256
  %v1142 = vpop.f32.mrf.mxu0
  %v1143 = vadd.f32 %v934, %v1142
  %1144 = vmatmul.f32.gmra.mxu0 %v260
  %v1145 = vpop.f32.mrf.mxu0
  %v1146 = vadd.f32 %v937, %v1145
  %1147 = vmatmul.f32.gmra.mxu0 %v264
  %v1148 = vpop.f32.mrf.mxu0
  %v1149 = vadd.f32 %v940, %v1148
  %1150 = vmatmul.f32.gmra.mxu0 %v268
  %v1151 = vpop.f32.mrf.mxu0
  %v1152 = vadd.f32 %v943, %v1151
  %1153 = vmatmul.f32.gmra.mxu0 %v272
  %v1154 = vpop.f32.mrf.mxu0
  %v1155 = vadd.f32 %v946, %v1154
  %1156 = vmatmul.f32.gmra.mxu0 %v276
  %v1157 = vpop.f32.mrf.mxu0
  %v1158 = vadd.f32 %v949, %v1157
  %1159 = vmatmul.f32.gmra.mxu0 %v280
  %v1160 = vpop.f32.mrf.mxu0
  %v1161 = vadd.f32 %v952, %v1160
  %1162 = vmatmul.f32.gmra.mxu0 %v284
  %v1163 = vpop.f32.mrf.mxu0
  %v1164 = vadd.f32 %v955, %v1163
  %1165 = vmatmul.f32.gmra.mxu0 %v288
  %v1166 = vpop.f32.mrf.mxu0
  %v1167 = vadd.f32 %v958, %v1166
  %1168 = vmatmul.f32.gmra.mxu0 %v292
  %v1169 = vpop.f32.mrf.mxu0
  %v1170 = vadd.f32 %v961, %v1169
  %1171 = vmatmul.f32.gmra.mxu0 %v296
  %v1172 = vpop.f32.mrf.mxu0
  %v1173 = vadd.f32 %v964, %v1172
  %1174 = vmatmul.f32.gmra.mxu0 %v300
  %v1175 = vpop.f32.mrf.mxu0
  %v1176 = vadd.f32 %v967, %v1175
  %1177 = vmatmul.f32.gmra.mxu0 %v304
  %v1178 = vpop.f32.mrf.mxu0
  %v1179 = vadd.f32 %v970, %v1178
  %1180 = vmatmul.f32.gmra.mxu0 %v308
  %v1181 = vpop.f32.mrf.mxu0
  %v1182 = vadd.f32 %v973, %v1181
  %1183 = vmatmul.f32.gmra.mxu0 %v312
  %v1184 = vpop.f32.mrf.mxu0
  %v1185 = vadd.f32 %v976, %v1184
  %1186 = vmatmul.f32.gmra.mxu0 %v316
  %v1187 = vpop.f32.mrf.mxu0
  %v1188 = vadd.f32 %v979, %v1187
  %1189 = vmatmul.f32.gmra.mxu0 %v320
  %v1190 = vpop.f32.mrf.mxu0
  %v1191 = vadd.f32 %v982, %v1190
  %1192 = vmatmul.f32.gmra.mxu0 %v324
  %v1193 = vpop.f32.mrf.mxu0
  %v1194 = vadd.f32 %v985, %v1193
  %1195 = vmatmul.f32.gmra.mxu0 %v328
  %v1196 = vpop.f32.mrf.mxu0
  %v1197 = vadd.f32 %v988, %v1196
  %1198 = vmatmul.f32.gmra.mxu0 %v332
  %v1199 = vpop.f32.mrf.mxu0
  %v1200 = vadd.f32 %v991, %v1199
  %1201 = vmatmul.f32.gmra.mxu0 %v336
  %v1202 = vpop.f32.mrf.mxu0
  %v1203 = vadd.f32 %v994, %v1202
  %1204 = vmatmul.f32.gmra.mxu0 %v340
  %v1205 = vpop.f32.mrf.mxu0
  %v1206 = vadd.f32 %v997, %v1205
  %1207 = vmatmul.f32.gmra.mxu0 %v344
  %v1208 = vpop.f32.mrf.mxu0
  %v1209 = vadd.f32 %v1000, %v1208
  %1210 = vmatmul.f32.gmra.mxu0 %v348
  %v1211 = vpop.f32.mrf.mxu0
  %v1212 = vadd.f32 %v1003, %v1211
  %1213 = vmatmul.f32.gmra.mxu0 %v352
  %v1214 = vpop.f32.mrf.mxu0
  %v1215 = vadd.f32 %v1006, %v1214
  %1216 = vmatmul.f32.gmra.mxu0 %v356
  %v1217 = vpop.f32.mrf.mxu0
  %v1218 = vadd.f32 %v1009, %v1217
  %1219 = vmatmul.f32.gmra.mxu0 %v360
  %v1220 = vpop.f32.mrf.mxu0
  %v1221 = vadd.f32 %v1012, %v1220
  %1222 = vmatmul.f32.gmra.mxu0 %v364
  %v1223 = vpop.f32.mrf.mxu0
  %v1224 = vadd.f32 %v1015, %v1223
  %1225 = vmatmul.f32.gmra.mxu0 %v368
  %v1226 = vpop.f32.mrf.mxu0
  %v1227 = vadd.f32 %v1018, %v1226
  %1228 = vmatmul.f32.gmra.mxu0 %v372
  %v1229 = vpop.f32.mrf.mxu0
  %v1230 = vadd.f32 %v1021, %v1229
  %1231 = vmatmul.f32.gmra.mxu0 %v376
  %v1232 = vpop.f32.mrf.mxu0
  %v1233 = vadd.f32 %v1024, %v1232
  %1234 = vmatmul.f32.gmra.mxu0 %v380
  %v1235 = vpop.f32.mrf.mxu0
  %v1236 = vadd.f32 %v1027, %v1235
  %1237 = vmatmul.f32.gmra.mxu0 %v384
  %v1238 = vpop.f32.mrf.mxu0
  %v1239 = vadd.f32 %v1030, %v1238
  %1240 = vmatmul.f32.gmra.mxu0 %v388
  %v1241 = vpop.f32.mrf.mxu0
  %v1242 = vadd.f32 %v1033, %v1241
  %1243 = vmatmul.f32.gmra.mxu0 %v392
  %v1244 = vpop.f32.mrf.mxu0
  %v1245 = vadd.f32 %v1036, %v1244
  %1246 = vmatmul.f32.gmra.mxu0 %v396
  %v1247 = vpop.f32.mrf.mxu0
  %v1248 = vadd.f32 %v1039, %v1247
  %1249 = vmatmul.f32.gmra.mxu0 %v400
  %v1250 = vpop.f32.mrf.mxu0
  %v1251 = vadd.f32 %v1042, %v1250
  %1252 = vmatmul.f32.gmra.mxu0 %v404
  %v1253 = vpop.f32.mrf.mxu0
  %v1254 = vadd.f32 %v1045, %v1253
  %1255 = vmatmul.f32.gmra.mxu0 %v408
  %v1256 = vpop.f32.mrf.mxu0
  %v1257 = vadd.f32 %v1048, %v1256
  %1258 = vmatmul.f32.gmra.mxu0 %v412
  %v1259 = vpop.f32.mrf.mxu0
  %v1260 = vadd.f32 %v1051, %v1259
  %1261 = vmatmul.f32.gmra.mxu0 %v416
  %v1262 = vpop.f32.mrf.mxu0
  %v1263 = vadd.f32 %v1054, %v1262
  %1264 = vmatmul.f32.gmra.mxu0 %v420
  %v1265 = vpop.f32.mrf.mxu0
  %v1266 = vadd.f32 %v1057, %v1265
  %1267 = vmatmul.f32.gmra.mxu0 %v424
  %v1268 = vpop.f32.mrf.mxu0
  %v1269 = vadd.f32 %v1060, %v1268
  %1270 = vmatmul.f32.gmra.mxu0 %v428
  %v1271 = vpop.f32.mrf.mxu0
  %v1272 = vadd.f32 %v1063, %v1271
  %1273 = vmatmul.f32.gmra.mxu0 %v432
  %v1274 = vpop.f32.mrf.mxu0
  %v1275 = vadd.f32 %v1066, %v1274
  %1276 = vmatmul.f32.gmra.mxu0 %v436
  %v1277 = vpop.f32.mrf.mxu0
  %v1278 = vadd.f32 %v1069, %v1277
  %1279 = vmatmul.f32.gmra.mxu0 %v440
  %v1280 = vpop.f32.mrf.mxu0
  %v1281 = vadd.f32 %v1072, %v1280
  %1282 = vmatmul.f32.gmra.mxu0 %v444
  %v1283 = vpop.f32.mrf.mxu0
  %v1284 = vadd.f32 %v1075, %v1283
  %1285 = vmatmul.f32.gmra.mxu0 %v448
  %v1286 = vpop.f32.mrf.mxu0
  %v1287 = vadd.f32 %v1078, %v1286
  %1288 = vmatmul.f32.gmra.mxu0 %v452
  %v1289 = vpop.f32.mrf.mxu0
  %v1290 = vadd.f32 %v1081, %v1289
  %1291 = vmatmul.f32.gmra.mxu0 %v456
  %v1292 = vpop.f32.mrf.mxu0
  %v1293 = vadd.f32 %v1084, %v1292
  %1294 = vmatmul.f32.gmra.mxu0 %v460
  %v1295 = vpop.f32.mrf.mxu0
  %v1296 = vadd.f32 %v1087, %v1295
  %1297 = vmatmul.f32.gmra.mxu0 %v464
  %v1298 = vpop.f32.mrf.mxu0
  %v1299 = vadd.f32 %v1090, %v1298
  %1300 = vdwg.mxu0
  %v1301 = vadd.f32 %v145, %v1110
  %v1302 = vadd.f32 %v146, %v1113
  %v1303 = vadd.f32 %v147, %v1116
  %v1304 = vadd.f32 %v148, %v1119
  %v1305 = vadd.f32 %v149, %v1122
  %v1306 = vadd.f32 %v150, %v1125
  %v1307 = vadd.f32 %v151, %v1128
  %v1308 = vadd.f32 %v152, %v1131
  %v1309 = vadd.f32 %v153, %v1134
  %v1310 = vadd.f32 %v154, %v1137
  %v1311 = vadd.f32 %v155, %v1140
  %v1312 = vadd.f32 %v156, %v1143
  %v1313 = vadd.f32 %v157, %v1146
  %v1314 = vadd.f32 %v158, %v1149
  %v1315 = vadd.f32 %v159, %v1152
  %v1316 = vadd.f32 %v160, %v1155
  %v1317 = vadd.f32 %v161, %v1158
  %v1318 = vadd.f32 %v162, %v1161
  %v1319 = vadd.f32 %v163, %v1164
  %v1320 = vadd.f32 %v164, %v1167
  %v1321 = vadd.f32 %v165, %v1170
  %v1322 = vadd.f32 %v166, %v1173
  %v1323 = vadd.f32 %v167, %v1176
  %v1324 = vadd.f32 %v168, %v1179
  %v1325 = vadd.f32 %v169, %v1182
  %v1326 = vadd.f32 %v170, %v1185
  %v1327 = vadd.f32 %v171, %v1188
  %v1328 = vadd.f32 %v172, %v1191
  %v1329 = vadd.f32 %v173, %v1194
  %v1330 = vadd.f32 %v174, %v1197
  %v1331 = vadd.f32 %v175, %v1200
  %v1332 = vadd.f32 %v176, %v1203
  %v1333 = vadd.f32 %v177, %v1206
  %v1334 = vadd.f32 %v178, %v1209
  %v1335 = vadd.f32 %v179, %v1212
  %v1336 = vadd.f32 %v180, %v1215
  %v1337 = vadd.f32 %v181, %v1218
  %v1338 = vadd.f32 %v182, %v1221
  %v1339 = vadd.f32 %v183, %v1224
  %v1340 = vadd.f32 %v184, %v1227
  %v1341 = vadd.f32 %v185, %v1230
  %v1342 = vadd.f32 %v186, %v1233
  %v1343 = vadd.f32 %v187, %v1236
  %v1344 = vadd.f32 %v188, %v1239
  %v1345 = vadd.f32 %v189, %v1242
  %v1346 = vadd.f32 %v190, %v1245
  %v1347 = vadd.f32 %v191, %v1248
  %v1348 = vadd.f32 %v192, %v1251
  %v1349 = vadd.f32 %v193, %v1254
  %v1350 = vadd.f32 %v194, %v1257
  %v1351 = vadd.f32 %v195, %v1260
  %v1352 = vadd.f32 %v196, %v1263
  %v1353 = vadd.f32 %v197, %v1266
  %v1354 = vadd.f32 %v198, %v1269
  %v1355 = vadd.f32 %v199, %v1272
  %v1356 = vadd.f32 %v200, %v1275
  %v1357 = vadd.f32 %v201, %v1278
  %v1358 = vadd.f32 %v202, %v1281
  %v1359 = vadd.f32 %v203, %v1284
  %v1360 = vadd.f32 %v204, %v1287
  %v1361 = vadd.f32 %v205, %v1290
  %v1362 = vadd.f32 %v206, %v1293
  %v1363 = vadd.f32 %v207, %v1296
  %v1364 = vadd.f32 %v208, %v1299
  %1365 = vst [vmem:[%s2] sm:$0xff] %v1301
  %1366 = vst [vmem:[%s2 + $0x8] sm:$0xff] %v1302
  %1367 = vst [vmem:[%s2 + $0x10] sm:$0xff] %v1303
  %1368 = vst [vmem:[%s2 + $0x18] sm:$0xff] %v1304
  %1369 = vst [vmem:[%s2 + $0x20] sm:$0xff] %v1305
  %1370 = vst [vmem:[%s2 + $0x28] sm:$0xff] %v1306
  %1371 = vst [vmem:[%s2 + $0x30] sm:$0xff] %v1307
  %1372 = vst [vmem:[%s2 + $0x38] sm:$0xff] %v1308
  %1373 = vst [vmem:[%s2 + $0x40] sm:$0xff] %v1309
  %1374 = vst [vmem:[%s2 + $0x48] sm:$0xff] %v1310
  %1375 = vst [vmem:[%s2 + $0x50] sm:$0xff] %v1311
  %1376 = vst [vmem:[%s2 + $0x58] sm:$0xff] %v1312
  %1377 = vst [vmem:[%s2 + $0x60] sm:$0xff] %v1313
  %1378 = vst [vmem:[%s2 + $0x68] sm:$0xff] %v1314
  %1379 = vst [vmem:[%s2 + $0x70] sm:$0xff] %v1315
  %1380 = vst [vmem:[%s2 + $0x78] sm:$0xff] %v1316
  %1381 = vst [vmem:[%s2 + $0x80] sm:$0xff] %v1317
  %1382 = vst [vmem:[%s2 + $0x88] sm:$0xff] %v1318
  %1383 = vst [vmem:[%s2 + $0x90] sm:$0xff] %v1319
  %1384 = vst [vmem:[%s2 + $0x98] sm:$0xff] %v1320
  %1385 = vst [vmem:[%s2 + $0xa0] sm:$0xff] %v1321
  %1386 = vst [vmem:[%s2 + $0xa8] sm:$0xff] %v1322
  %1387 = vst [vmem:[%s2 + $0xb0] sm:$0xff] %v1323
  %1388 = vst [vmem:[%s2 + $0xb8] sm:$0xff] %v1324
  %1389 = vst [vmem:[%s2 + $0xc0] sm:$0xff] %v1325
  %1390 = vst [vmem:[%s2 + $0xc8] sm:$0xff] %v1326
  %1391 = vst [vmem:[%s2 + $0xd0] sm:$0xff] %v1327
  %1392 = vst [vmem:[%s2 + $0xd8] sm:$0xff] %v1328
  %1393 = vst [vmem:[%s2 + $0xe0] sm:$0xff] %v1329
  %1394 = vst [vmem:[%s2 + $0xe8] sm:$0xff] %v1330
  %1395 = vst [vmem:[%s2 + $0xf0] sm:$0xff] %v1331
  %1396 = vst [vmem:[%s2 + $0xf8] sm:$0xff] %v1332
  %1397 = vst [vmem:[%s2 + $0x100] sm:$0xff] %v1333
  %1398 = vst [vmem:[%s2 + $0x108] sm:$0xff] %v1334
  %1399 = vst [vmem:[%s2 + $0x110] sm:$0xff] %v1335
  %1400 = vst [vmem:[%s2 + $0x118] sm:$0xff] %v1336
  %1401 = vst [vmem:[%s2 + $0x120] sm:$0xff] %v1337
  %1402 = vst [vmem:[%s2 + $0x128] sm:$0xff] %v1338
  %1403 = vst [vmem:[%s2 + $0x130] sm:$0xff] %v1339
  %1404 = vst [vmem:[%s2 + $0x138] sm:$0xff] %v1340
  %1405 = vst [vmem:[%s2 + $0x140] sm:$0xff] %v1341
  %1406 = vst [vmem:[%s2 + $0x148] sm:$0xff] %v1342
  %1407 = vst [vmem:[%s2 + $0x150] sm:$0xff] %v1343
  %1408 = vst [vmem:[%s2 + $0x158] sm:$0xff] %v1344
  %1409 = vst [vmem:[%s2 + $0x160] sm:$0xff] %v1345
  %1410 = vst [vmem:[%s2 + $0x168] sm:$0xff] %v1346
  %1411 = vst [vmem:[%s2 + $0x170] sm:$0xff] %v1347
  %1412 = vst [vmem:[%s2 + $0x178] sm:$0xff] %v1348
  %1413 = vst [vmem:[%s2 + $0x180] sm:$0xff] %v1349
  %1414 = vst [vmem:[%s2 + $0x188] sm:$0xff] %v1350
  %1415 = vst [vmem:[%s2 + $0x190] sm:$0xff] %v1351
  %1416 = vst [vmem:[%s2 + $0x198] sm:$0xff] %v1352
  %1417 = vst [vmem:[%s2 + $0x1a0] sm:$0xff] %v1353
  %1418 = vst [vmem:[%s2 + $0x1a8] sm:$0xff] %v1354
  %1419 = vst [vmem:[%s2 + $0x1b0] sm:$0xff] %v1355
  %1420 = vst [vmem:[%s2 + $0x1b8] sm:$0xff] %v1356
  %1421 = vst [vmem:[%s2 + $0x1c0] sm:$0xff] %v1357
  %1422 = vst [vmem:[%s2 + $0x1c8] sm:$0xff] %v1358
  %1423 = vst [vmem:[%s2 + $0x1d0] sm:$0xff] %v1359
  %1424 = vst [vmem:[%s2 + $0x1d8] sm:$0xff] %v1360
  %1425 = vst [vmem:[%s2 + $0x1e0] sm:$0xff] %v1361
  %1426 = vst [vmem:[%s2 + $0x1e8] sm:$0xff] %v1362
  %1427 = vst [vmem:[%s2 + $0x1f0] sm:$0xff] %v1363
  %1428 = vst [vmem:[%s2 + $0x1f8] sm:$0xff] %v1364
  // Predicated region
  $region14: #{stmgsc_forward.5} parent=0 // pred_check
    _
  $region15: #{stmgsc_forward.5} parent=0 // pred_check_branch
    %1430 = sbr.rel (0) target = $region17
  $region16: #{stmgsc_forward.5} parent=0 // pred_region
    _
  $region17: #{stmgsc_forward.5} parent=0 // pred_fallthru
    _
  // Predicated region
  $region18: #{stmgsc_forward.5} parent=0 // pred_check
    _
  $region19: #{stmgsc_forward.5} parent=0 // pred_check_branch
    %1432 = sbr.rel (0) target = $region21
  $region20: #{stmgsc_forward.5} parent=0 // pred_region
    _
  $region21: #{stmgsc_forward.5} parent=0 // pred_fallthru
    _

// kernel: stmgsc_forward.4
$region0: #{stmgsc_forward.4}
  #allocation0 [shape = 'u32[]', space=smem, size = 0x4, offset = 0x4, fixed_abs, tag = 'smem constant byte address 0x4 - core index']
  #allocation1 [shape = 'u32[72,128]{1,0:T(1,128)}', space=vmem, size = 0x9000, scoped, tag = 'internal scratch']
  %s0 = inlined_call_operand.vmem [shape: bf16[512,512], index: 0, kind: input, shape index: {}]
  %s1 = inlined_call_operand.vmem [shape: bf16[512,128], index: 1, kind: input, shape index: {}]
  %s2 = inlined_call_operand.vmem [shape: f32[512,128], index: 2, kind: output, shape index: {}]
  %s3 = sld [smem:[#allocation0]]
  $region22: #{stmgsc_forward.4} parent=0
    _
  %s5 = ssub.s32 1, %s3
  %s6 = scalar_select 0, %s5, %s3
  // Predicated region
  $region2: #{stmgsc_forward.4} parent=0 // pred_check
    _
  $region3: #{stmgsc_forward.4} parent=0 // pred_check_branch
    %8 = sbr.rel (0) target = $region5
  $region4: #{stmgsc_forward.4} parent=0 // pred_region
    _
  $region5: #{stmgsc_forward.4} parent=0 // pred_fallthru
    _
  // Predicated region
  $region6: #{stmgsc_forward.4} parent=0 // pred_check
    _
  $region7: #{stmgsc_forward.4} parent=0 // pred_check_branch
    %10 = sbr.rel (0) target = $region9
  $region8: #{stmgsc_forward.4} parent=0 // pred_region
    _
  $region9: #{stmgsc_forward.4} parent=0 // pred_fallthru
    _
  %p11 = scmp.eq.s32.totalorder 0, 0
  // Predicated region
  $region10: #{stmgsc_forward.4} parent=0 // pred_check
    %p12 = pneg %p11
  $region11: #{stmgsc_forward.4} parent=0 // pred_check_branch
    %14 = sbr.rel (%p12) target = $region13
  $region12: #{stmgsc_forward.4} parent=0 // pred_region
    %15 = vst [vmem:[%s2] sm:$0xff] 0.0
    %16 = vst [vmem:[%s2 + $0x8] sm:$0xff] 0.0
    %17 = vst [vmem:[%s2 + $0x10] sm:$0xff] 0.0
    %18 = vst [vmem:[%s2 + $0x18] sm:$0xff] 0.0
    %19 = vst [vmem:[%s2 + $0x20] sm:$0xff] 0.0
    %20 = vst [vmem:[%s2 + $0x28] sm:$0xff] 0.0
    %21 = vst [vmem:[%s2 + $0x30] sm:$0xff] 0.0
    %22 = vst [vmem:[%s2 + $0x38] sm:$0xff] 0.0
    %23 = vst [vmem:[%s2 + $0x40] sm:$0xff] 0.0
    %24 = vst [vmem:[%s2 + $0x48] sm:$0xff] 0.0
    %25 = vst [vmem:[%s2 + $0x50] sm:$0xff] 0.0
    %26 = vst [vmem:[%s2 + $0x58] sm:$0xff] 0.0
    %27 = vst [vmem:[%s2 + $0x60] sm:$0xff] 0.0
    %28 = vst [vmem:[%s2 + $0x68] sm:$0xff] 0.0
    %29 = vst [vmem:[%s2 + $0x70] sm:$0xff] 0.0
    %30 = vst [vmem:[%s2 + $0x78] sm:$0xff] 0.0
    %31 = vst [vmem:[%s2 + $0x80] sm:$0xff] 0.0
    %32 = vst [vmem:[%s2 + $0x88] sm:$0xff] 0.0
    %33 = vst [vmem:[%s2 + $0x90] sm:$0xff] 0.0
    %34 = vst [vmem:[%s2 + $0x98] sm:$0xff] 0.0
    %35 = vst [vmem:[%s2 + $0xa0] sm:$0xff] 0.0
    %36 = vst [vmem:[%s2 + $0xa8] sm:$0xff] 0.0
    %37 = vst [vmem:[%s2 + $0xb0] sm:$0xff] 0.0
    %38 = vst [vmem:[%s2 + $0xb8] sm:$0xff] 0.0
    %39 = vst [vmem:[%s2 + $0xc0] sm:$0xff] 0.0
    %40 = vst [vmem:[%s2 + $0xc8] sm:$0xff] 0.0
    %41 = vst [vmem:[%s2 + $0xd0] sm:$0xff] 0.0
    %42 = vst [vmem:[%s2 + $0xd8] sm:$0xff] 0.0
    %43 = vst [vmem:[%s2 + $0xe0] sm:$0xff] 0.0
    %44 = vst [vmem:[%s2 + $0xe8] sm:$0xff] 0.0
    %45 = vst [vmem:[%s2 + $0xf0] sm:$0xff] 0.0
    %46 = vst [vmem:[%s2 + $0xf8] sm:$0xff] 0.0
    %47 = vst [vmem:[%s2 + $0x100] sm:$0xff] 0.0
    %48 = vst [vmem:[%s2 + $0x108] sm:$0xff] 0.0
    %49 = vst [vmem:[%s2 + $0x110] sm:$0xff] 0.0
    %50 = vst [vmem:[%s2 + $0x118] sm:$0xff] 0.0
    %51 = vst [vmem:[%s2 + $0x120] sm:$0xff] 0.0
    %52 = vst [vmem:[%s2 + $0x128] sm:$0xff] 0.0
    %53 = vst [vmem:[%s2 + $0x130] sm:$0xff] 0.0
    %54 = vst [vmem:[%s2 + $0x138] sm:$0xff] 0.0
    %55 = vst [vmem:[%s2 + $0x140] sm:$0xff] 0.0
    %56 = vst [vmem:[%s2 + $0x148] sm:$0xff] 0.0
    %57 = vst [vmem:[%s2 + $0x150] sm:$0xff] 0.0
    %58 = vst [vmem:[%s2 + $0x158] sm:$0xff] 0.0
    %59 = vst [vmem:[%s2 + $0x160] sm:$0xff] 0.0
    %60 = vst [vmem:[%s2 + $0x168] sm:$0xff] 0.0
    %61 = vst [vmem:[%s2 + $0x170] sm:$0xff] 0.0
    %62 = vst [vmem:[%s2 + $0x178] sm:$0xff] 0.0
    %63 = vst [vmem:[%s2 + $0x180] sm:$0xff] 0.0
    %64 = vst [vmem:[%s2 + $0x188] sm:$0xff] 0.0
    %65 = vst [vmem:[%s2 + $0x190] sm:$0xff] 0.0
    %66 = vst [vmem:[%s2 + $0x198] sm:$0xff] 0.0
    %67 = vst [vmem:[%s2 + $0x1a0] sm:$0xff] 0.0
    %68 = vst [vmem:[%s2 + $0x1a8] sm:$0xff] 0.0
    %69 = vst [vmem:[%s2 + $0x1b0] sm:$0xff] 0.0
    %70 = vst [vmem:[%s2 + $0x1b8] sm:$0xff] 0.0
    %71 = vst [vmem:[%s2 + $0x1c0] sm:$0xff] 0.0
    %72 = vst [vmem:[%s2 + $0x1c8] sm:$0xff] 0.0
    %73 = vst [vmem:[%s2 + $0x1d0] sm:$0xff] 0.0
    %74 = vst [vmem:[%s2 + $0x1d8] sm:$0xff] 0.0
    %75 = vst [vmem:[%s2 + $0x1e0] sm:$0xff] 0.0
    %76 = vst [vmem:[%s2 + $0x1e8] sm:$0xff] 0.0
    %77 = vst [vmem:[%s2 + $0x1f0] sm:$0xff] 0.0
    %78 = vst [vmem:[%s2 + $0x1f8] sm:$0xff] 0.0
  $region13: #{stmgsc_forward.4} parent=0 // pred_fallthru
    _
  %s79 = smul.u32 0, 512
  %s80 = sshra.s32 %s79, 3
  %s81 = sand.u32 %s79, 7
  %s82 = smul.addr %s80, 4
  %s83 = scalar_lea.vmem %s1, %s82
  %v84 = vld [vmem:[%s83] sm:$0xf]
  %v85 = vld [vmem:[%s83 + $0x4] sm:$0xf]
  %v86 = vld [vmem:[%s83 + $0x8] sm:$0xf]
  %v87 = vld [vmem:[%s83 + $0xc] sm:$0xf]
  %v88 = vld [vmem:[%s83 + $0x10] sm:$0xf]
  %v89 = vld [vmem:[%s83 + $0x14] sm:$0xf]
  %v90 = vld [vmem:[%s83 + $0x18] sm:$0xf]
  %v91 = vld [vmem:[%s83 + $0x1c] sm:$0xf]
  %v92 = vld [vmem:[%s83 + $0x20] sm:$0xf]
  %v93 = vld [vmem:[%s83 + $0x24] sm:$0xf]
  %v94 = vld [vmem:[%s83 + $0x28] sm:$0xf]
  %v95 = vld [vmem:[%s83 + $0x2c] sm:$0xf]
  %v96 = vld [vmem:[%s83 + $0x30] sm:$0xf]
  %v97 = vld [vmem:[%s83 + $0x34] sm:$0xf]
  %v98 = vld [vmem:[%s83 + $0x38] sm:$0xf]
  %v99 = vld [vmem:[%s83 + $0x3c] sm:$0xf]
  %v100 = vld [vmem:[%s83 + $0x40] sm:$0xf]
  %v101 = vld [vmem:[%s83 + $0x44] sm:$0xf]
  %v102 = vld [vmem:[%s83 + $0x48] sm:$0xf]
  %v103 = vld [vmem:[%s83 + $0x4c] sm:$0xf]
  %v104 = vld [vmem:[%s83 + $0x50] sm:$0xf]
  %v105 = vld [vmem:[%s83 + $0x54] sm:$0xf]
  %v106 = vld [vmem:[%s83 + $0x58] sm:$0xf]
  %v107 = vld [vmem:[%s83 + $0x5c] sm:$0xf]
  %v108 = vld [vmem:[%s83 + $0x60] sm:$0xf]
  %v109 = vld [vmem:[%s83 + $0x64] sm:$0xf]
  %v110 = vld [vmem:[%s83 + $0x68] sm:$0xf]
  %v111 = vld [vmem:[%s83 + $0x6c] sm:$0xf]
  %v112 = vld [vmem:[%s83 + $0x70] sm:$0xf]
  %v113 = vld [vmem:[%s83 + $0x74] sm:$0xf]
  %v114 = vld [vmem:[%s83 + $0x78] sm:$0xf]
  %v115 = vld [vmem:[%s83 + $0x7c] sm:$0xf]
  %v116 = vld [vmem:[%s83 + $0x80] sm:$0xf]
  %v117 = vld [vmem:[%s83 + $0x84] sm:$0xf]
  %v118 = vld [vmem:[%s83 + $0x88] sm:$0xf]
  %v119 = vld [vmem:[%s83 + $0x8c] sm:$0xf]
  %v120 = vld [vmem:[%s83 + $0x90] sm:$0xf]
  %v121 = vld [vmem:[%s83 + $0x94] sm:$0xf]
  %v122 = vld [vmem:[%s83 + $0x98] sm:$0xf]
  %v123 = vld [vmem:[%s83 + $0x9c] sm:$0xf]
  %v124 = vld [vmem:[%s83 + $0xa0] sm:$0xf]
  %v125 = vld [vmem:[%s83 + $0xa4] sm:$0xf]
  %v126 = vld [vmem:[%s83 + $0xa8] sm:$0xf]
  %v127 = vld [vmem:[%s83 + $0xac] sm:$0xf]
  %v128 = vld [vmem:[%s83 + $0xb0] sm:$0xf]
  %v129 = vld [vmem:[%s83 + $0xb4] sm:$0xf]
  %v130 = vld [vmem:[%s83 + $0xb8] sm:$0xf]
  %v131 = vld [vmem:[%s83 + $0xbc] sm:$0xf]
  %v132 = vld [vmem:[%s83 + $0xc0] sm:$0xf]
  %v133 = vld [vmem:[%s83 + $0xc4] sm:$0xf]
  %v134 = vld [vmem:[%s83 + $0xc8] sm:$0xf]
  %v135 = vld [vmem:[%s83 + $0xcc] sm:$0xf]
  %v136 = vld [vmem:[%s83 + $0xd0] sm:$0xf]
  %v137 = vld [vmem:[%s83 + $0xd4] sm:$0xf]
  %v138 = vld [vmem:[%s83 + $0xd8] sm:$0xf]
  %v139 = vld [vmem:[%s83 + $0xdc] sm:$0xf]
  %v140 = vld [vmem:[%s83 + $0xe0] sm:$0xf]
  %v141 = vld [vmem:[%s83 + $0xe4] sm:$0xf]
  %v142 = vld [vmem:[%s83 + $0xe8] sm:$0xf]
  %v143 = vld [vmem:[%s83 + $0xec] sm:$0xf]
  %v144 = vld [vmem:[%s83 + $0xf0] sm:$0xf]
  %v145 = vld [vmem:[%s83 + $0xf4] sm:$0xf]
  %v146 = vld [vmem:[%s83 + $0xf8] sm:$0xf]
  %v147 = vld [vmem:[%s83 + $0xfc] sm:$0xf]
  %v148 = vld [vmem:[%s2] sm:$0xff]
  %v149 = vld [vmem:[%s2 + $0x8] sm:$0xff]
  %v150 = vld [vmem:[%s2 + $0x10] sm:$0xff]
  %v151 = vld [vmem:[%s2 + $0x18] sm:$0xff]
  %v152 = vld [vmem:[%s2 + $0x20] sm:$0xff]
  %v153 = vld [vmem:[%s2 + $0x28] sm:$0xff]
  %v154 = vld [vmem:[%s2 + $0x30] sm:$0xff]
  %v155 = vld [vmem:[%s2 + $0x38] sm:$0xff]
  %v156 = vld [vmem:[%s2 + $0x40] sm:$0xff]
  %v157 = vld [vmem:[%s2 + $0x48] sm:$0xff]
  %v158 = vld [vmem:[%s2 + $0x50] sm:$0xff]
  %v159 = vld [vmem:[%s2 + $0x58] sm:$0xff]
  %v160 = vld [vmem:[%s2 + $0x60] sm:$0xff]
  %v161 = vld [vmem:[%s2 + $0x68] sm:$0xff]
  %v162 = vld [vmem:[%s2 + $0x70] sm:$0xff]
  %v163 = vld [vmem:[%s2 + $0x78] sm:$0xff]
  %v164 = vld [vmem:[%s2 + $0x80] sm:$0xff]
  %v165 = vld [vmem:[%s2 + $0x88] sm:$0xff]
  %v166 = vld [vmem:[%s2 + $0x90] sm:$0xff]
  %v167 = vld [vmem:[%s2 + $0x98] sm:$0xff]
  %v168 = vld [vmem:[%s2 + $0xa0] sm:$0xff]
  %v169 = vld [vmem:[%s2 + $0xa8] sm:$0xff]
  %v170 = vld [vmem:[%s2 + $0xb0] sm:$0xff]
  %v171 = vld [vmem:[%s2 + $0xb8] sm:$0xff]
  %v172 = vld [vmem:[%s2 + $0xc0] sm:$0xff]
  %v173 = vld [vmem:[%s2 + $0xc8] sm:$0xff]
  %v174 = vld [vmem:[%s2 + $0xd0] sm:$0xff]
  %v175 = vld [vmem:[%s2 + $0xd8] sm:$0xff]
  %v176 = vld [vmem:[%s2 + $0xe0] sm:$0xff]
  %v177 = vld [vmem:[%s2 + $0xe8] sm:$0xff]
  %v178 = vld [vmem:[%s2 + $0xf0] sm:$0xff]
  %v179 = vld [vmem:[%s2 + $0xf8] sm:$0xff]
  %v180 = vld [vmem:[%s2 + $0x100] sm:$0xff]
  %v181 = vld [vmem:[%s2 + $0x108] sm:$0xff]
  %v182 = vld [vmem:[%s2 + $0x110] sm:$0xff]
  %v183 = vld [vmem:[%s2 + $0x118] sm:$0xff]
  %v184 = vld [vmem:[%s2 + $0x120] sm:$0xff]
  %v185 = vld [vmem:[%s2 + $0x128] sm:$0xff]
  %v186 = vld [vmem:[%s2 + $0x130] sm:$0xff]
  %v187 = vld [vmem:[%s2 + $0x138] sm:$0xff]
  %v188 = vld [vmem:[%s2 + $0x140] sm:$0xff]
  %v189 = vld [vmem:[%s2 + $0x148] sm:$0xff]
  %v190 = vld [vmem:[%s2 + $0x150] sm:$0xff]
  %v191 = vld [vmem:[%s2 + $0x158] sm:$0xff]
  %v192 = vld [vmem:[%s2 + $0x160] sm:$0xff]
  %v193 = vld [vmem:[%s2 + $0x168] sm:$0xff]
  %v194 = vld [vmem:[%s2 + $0x170] sm:$0xff]
  %v195 = vld [vmem:[%s2 + $0x178] sm:$0xff]
  %v196 = vld [vmem:[%s2 + $0x180] sm:$0xff]
  %v197 = vld [vmem:[%s2 + $0x188] sm:$0xff]
  %v198 = vld [vmem:[%s2 + $0x190] sm:$0xff]
  %v199 = vld [vmem:[%s2 + $0x198] sm:$0xff]
  %v200 = vld [vmem:[%s2 + $0x1a0] sm:$0xff]
  %v201 = vld [vmem:[%s2 + $0x1a8] sm:$0xff]
  %v202 = vld [vmem:[%s2 + $0x1b0] sm:$0xff]
  %v203 = vld [vmem:[%s2 + $0x1b8] sm:$0xff]
  %v204 = vld [vmem:[%s2 + $0x1c0] sm:$0xff]
  %v205 = vld [vmem:[%s2 + $0x1c8] sm:$0xff]
  %v206 = vld [vmem:[%s2 + $0x1d0] sm:$0xff]
  %v207 = vld [vmem:[%s2 + $0x1d8] sm:$0xff]
  %v208 = vld [vmem:[%s2 + $0x1e0] sm:$0xff]
  %v209 = vld [vmem:[%s2 + $0x1e8] sm:$0xff]
  %v210 = vld [vmem:[%s2 + $0x1f0] sm:$0xff]
  %v211 = vld [vmem:[%s2 + $0x1f8] sm:$0xff]
  %v212 = vld [vmem:[%s0] sm:$0xff]
  %v213 = vld [vmem:[%s0 + $0x8] sm:$0xff]
  %v214 = vld [vmem:[%s0 + $0x10] sm:$0xff]
  %v215 = vld [vmem:[%s0 + $0x18] sm:$0xff]
  %v216 = vld [vmem:[%s0 + $0x20] sm:$0xff]
  %v217 = vld [vmem:[%s0 + $0x28] sm:$0xff]
  %v218 = vld [vmem:[%s0 + $0x30] sm:$0xff]
  %v219 = vld [vmem:[%s0 + $0x38] sm:$0xff]
  %v220 = vld [vmem:[%s0 + $0x40] sm:$0xff]
  %v221 = vld [vmem:[%s0 + $0x48] sm:$0xff]
  %v222 = vld [vmem:[%s0 + $0x50] sm:$0xff]
  %v223 = vld [vmem:[%s0 + $0x58] sm:$0xff]
  %v224 = vld [vmem:[%s0 + $0x60] sm:$0xff]
  %v225 = vld [vmem:[%s0 + $0x68] sm:$0xff]
  %v226 = vld [vmem:[%s0 + $0x70] sm:$0xff]
  %v227 = vld [vmem:[%s0 + $0x78] sm:$0xff]
  %v228 = vld [vmem:[%s0 + $0x80] sm:$0xff]
  %v229 = vld [vmem:[%s0 + $0x88] sm:$0xff]
  %v230 = vld [vmem:[%s0 + $0x90] sm:$0xff]
  %v231 = vld [vmem:[%s0 + $0x98] sm:$0xff]
  %v232 = vld [vmem:[%s0 + $0xa0] sm:$0xff]
  %v233 = vld [vmem:[%s0 + $0xa8] sm:$0xff]
  %v234 = vld [vmem:[%s0 + $0xb0] sm:$0xff]
  %v235 = vld [vmem:[%s0 + $0xb8] sm:$0xff]
  %v236 = vld [vmem:[%s0 + $0xc0] sm:$0xff]
  %v237 = vld [vmem:[%s0 + $0xc8] sm:$0xff]
  %v238 = vld [vmem:[%s0 + $0xd0] sm:$0xff]
  %v239 = vld [vmem:[%s0 + $0xd8] sm:$0xff]
  %v240 = vld [vmem:[%s0 + $0xe0] sm:$0xff]
  %v241 = vld [vmem:[%s0 + $0xe8] sm:$0xff]
  %v242 = vld [vmem:[%s0 + $0xf0] sm:$0xff]
  %v243 = vld [vmem:[%s0 + $0xf8] sm:$0xff]
  %v244 = vld [vmem:[%s0 + $0x100] sm:$0xff]
  %v245 = vld [vmem:[%s0 + $0x108] sm:$0xff]
  %v246 = vld [vmem:[%s0 + $0x110] sm:$0xff]
  %v247 = vld [vmem:[%s0 + $0x118] sm:$0xff]
  %v248 = vld [vmem:[%s0 + $0x120] sm:$0xff]
  %v249 = vld [vmem:[%s0 + $0x128] sm:$0xff]
  %v250 = vld [vmem:[%s0 + $0x130] sm:$0xff]
  %v251 = vld [vmem:[%s0 + $0x138] sm:$0xff]
  %v252 = vld [vmem:[%s0 + $0x140] sm:$0xff]
  %v253 = vld [vmem:[%s0 + $0x148] sm:$0xff]
  %v254 = vld [vmem:[%s0 + $0x150] sm:$0xff]
  %v255 = vld [vmem:[%s0 + $0x158] sm:$0xff]
  %v256 = vld [vmem:[%s0 + $0x160] sm:$0xff]
  %v257 = vld [vmem:[%s0 + $0x168] sm:$0xff]
  %v258 = vld [vmem:[%s0 + $0x170] sm:$0xff]
  %v259 = vld [vmem:[%s0 + $0x178] sm:$0xff]
  %v260 = vld [vmem:[%s0 + $0x180] sm:$0xff]
  %v261 = vld [vmem:[%s0 + $0x188] sm:$0xff]
  %v262 = vld [vmem:[%s0 + $0x190] sm:$0xff]
  %v263 = vld [vmem:[%s0 + $0x198] sm:$0xff]
  %v264 = vld [vmem:[%s0 + $0x1a0] sm:$0xff]
  %v265 = vld [vmem:[%s0 + $0x1a8] sm:$0xff]
  %v266 = vld [vmem:[%s0 + $0x1b0] sm:$0xff]
  %v267 = vld [vmem:[%s0 + $0x1b8] sm:$0xff]
  %v268 = vld [vmem:[%s0 + $0x1c0] sm:$0xff]
  %v269 = vld [vmem:[%s0 + $0x1c8] sm:$0xff]
  %v270 = vld [vmem:[%s0 + $0x1d0] sm:$0xff]
  %v271 = vld [vmem:[%s0 + $0x1d8] sm:$0xff]
  %v272 = vld [vmem:[%s0 + $0x1e0] sm:$0xff]
  %v273 = vld [vmem:[%s0 + $0x1e8] sm:$0xff]
  %v274 = vld [vmem:[%s0 + $0x1f0] sm:$0xff]
  %v275 = vld [vmem:[%s0 + $0x1f8] sm:$0xff]
  %v276 = vld [vmem:[%s0 + $0x200] sm:$0xff]
  %v277 = vld [vmem:[%s0 + $0x208] sm:$0xff]
  %v278 = vld [vmem:[%s0 + $0x210] sm:$0xff]
  %v279 = vld [vmem:[%s0 + $0x218] sm:$0xff]
  %v280 = vld [vmem:[%s0 + $0x220] sm:$0xff]
  %v281 = vld [vmem:[%s0 + $0x228] sm:$0xff]
  %v282 = vld [vmem:[%s0 + $0x230] sm:$0xff]
  %v283 = vld [vmem:[%s0 + $0x238] sm:$0xff]
  %v284 = vld [vmem:[%s0 + $0x240] sm:$0xff]
  %v285 = vld [vmem:[%s0 + $0x248] sm:$0xff]
  %v286 = vld [vmem:[%s0 + $0x250] sm:$0xff]
  %v287 = vld [vmem:[%s0 + $0x258] sm:$0xff]
  %v288 = vld [vmem:[%s0 + $0x260] sm:$0xff]
  %v289 = vld [vmem:[%s0 + $0x268] sm:$0xff]
  %v290 = vld [vmem:[%s0 + $0x270] sm:$0xff]
  %v291 = vld [vmem:[%s0 + $0x278] sm:$0xff]
  %v292 = vld [vmem:[%s0 + $0x280] sm:$0xff]
  %v293 = vld [vmem:[%s0 + $0x288] sm:$0xff]
  %v294 = vld [vmem:[%s0 + $0x290] sm:$0xff]
  %v295 = vld [vmem:[%s0 + $0x298] sm:$0xff]
  %v296 = vld [vmem:[%s0 + $0x2a0] sm:$0xff]
  %v297 = vld [vmem:[%s0 + $0x2a8] sm:$0xff]
  %v298 = vld [vmem:[%s0 + $0x2b0] sm:$0xff]
  %v299 = vld [vmem:[%s0 + $0x2b8] sm:$0xff]
  %v300 = vld [vmem:[%s0 + $0x2c0] sm:$0xff]
  %v301 = vld [vmem:[%s0 + $0x2c8] sm:$0xff]
  %v302 = vld [vmem:[%s0 + $0x2d0] sm:$0xff]
  %v303 = vld [vmem:[%s0 + $0x2d8] sm:$0xff]
  %v304 = vld [vmem:[%s0 + $0x2e0] sm:$0xff]
  %v305 = vld [vmem:[%s0 + $0x2e8] sm:$0xff]
  %v306 = vld [vmem:[%s0 + $0x2f0] sm:$0xff]
  %v307 = vld [vmem:[%s0 + $0x2f8] sm:$0xff]
  %v308 = vld [vmem:[%s0 + $0x300] sm:$0xff]
  %v309 = vld [vmem:[%s0 + $0x308] sm:$0xff]
  %v310 = vld [vmem:[%s0 + $0x310] sm:$0xff]
  %v311 = vld [vmem:[%s0 + $0x318] sm:$0xff]
  %v312 = vld [vmem:[%s0 + $0x320] sm:$0xff]
  %v313 = vld [vmem:[%s0 + $0x328] sm:$0xff]
  %v314 = vld [vmem:[%s0 + $0x330] sm:$0xff]
  %v315 = vld [vmem:[%s0 + $0x338] sm:$0xff]
  %v316 = vld [vmem:[%s0 + $0x340] sm:$0xff]
  %v317 = vld [vmem:[%s0 + $0x348] sm:$0xff]
  %v318 = vld [vmem:[%s0 + $0x350] sm:$0xff]
  %v319 = vld [vmem:[%s0 + $0x358] sm:$0xff]
  %v320 = vld [vmem:[%s0 + $0x360] sm:$0xff]
  %v321 = vld [vmem:[%s0 + $0x368] sm:$0xff]
  %v322 = vld [vmem:[%s0 + $0x370] sm:$0xff]
  %v323 = vld [vmem:[%s0 + $0x378] sm:$0xff]
  %v324 = vld [vmem:[%s0 + $0x380] sm:$0xff]
  %v325 = vld [vmem:[%s0 + $0x388] sm:$0xff]
  %v326 = vld [vmem:[%s0 + $0x390] sm:$0xff]
  %v327 = vld [vmem:[%s0 + $0x398] sm:$0xff]
  %v328 = vld [vmem:[%s0 + $0x3a0] sm:$0xff]
  %v329 = vld [vmem:[%s0 + $0x3a8] sm:$0xff]
  %v330 = vld [vmem:[%s0 + $0x3b0] sm:$0xff]
  %v331 = vld [vmem:[%s0 + $0x3b8] sm:$0xff]
  %v332 = vld [vmem:[%s0 + $0x3c0] sm:$0xff]
  %v333 = vld [vmem:[%s0 + $0x3c8] sm:$0xff]
  %v334 = vld [vmem:[%s0 + $0x3d0] sm:$0xff]
  %v335 = vld [vmem:[%s0 + $0x3d8] sm:$0xff]
  %v336 = vld [vmem:[%s0 + $0x3e0] sm:$0xff]
  %v337 = vld [vmem:[%s0 + $0x3e8] sm:$0xff]
  %v338 = vld [vmem:[%s0 + $0x3f0] sm:$0xff]
  %v339 = vld [vmem:[%s0 + $0x3f8] sm:$0xff]
  %v468 = vunpack.c.l.b16 %v212
  %v469 = vunpack.c.h.b16 %v212
  %v470 = vunpack.c.l.b16 %v213
  %v471 = vunpack.c.h.b16 %v213
  %v472 = vunpack.c.l.b16 %v214
  %v473 = vunpack.c.h.b16 %v214
  %v474 = vunpack.c.l.b16 %v215
  %v475 = vunpack.c.h.b16 %v215
  %v476 = vunpack.c.l.b16 %v216
  %v477 = vunpack.c.h.b16 %v216
  %v478 = vunpack.c.l.b16 %v217
  %v479 = vunpack.c.h.b16 %v217
  %v480 = vunpack.c.l.b16 %v218
  %v481 = vunpack.c.h.b16 %v218
  %v482 = vunpack.c.l.b16 %v219
  %v483 = vunpack.c.h.b16 %v219
  %v484 = vunpack.c.l.b16 %v220
  %v485 = vunpack.c.h.b16 %v220
  %v486 = vunpack.c.l.b16 %v221
  %v487 = vunpack.c.h.b16 %v221
  %v488 = vunpack.c.l.b16 %v222
  %v489 = vunpack.c.h.b16 %v222
  %v490 = vunpack.c.l.b16 %v223
  %v491 = vunpack.c.h.b16 %v223
  %v492 = vunpack.c.l.b16 %v224
  %v493 = vunpack.c.h.b16 %v224
  %v494 = vunpack.c.l.b16 %v225
  %v495 = vunpack.c.h.b16 %v225
  %v496 = vunpack.c.l.b16 %v226
  %v497 = vunpack.c.h.b16 %v226
  %v498 = vunpack.c.l.b16 %v227
  %v499 = vunpack.c.h.b16 %v227
  %v500 = vunpack.c.l.b16 %v228
  %v501 = vunpack.c.h.b16 %v228
  %v502 = vunpack.c.l.b16 %v229
  %v503 = vunpack.c.h.b16 %v229
  %v504 = vunpack.c.l.b16 %v230
  %v505 = vunpack.c.h.b16 %v230
  %v506 = vunpack.c.l.b16 %v231
  %v507 = vunpack.c.h.b16 %v231
  %v508 = vunpack.c.l.b16 %v232
  %v509 = vunpack.c.h.b16 %v232
  %v510 = vunpack.c.l.b16 %v233
  %v511 = vunpack.c.h.b16 %v233
  %v512 = vunpack.c.l.b16 %v234
  %v513 = vunpack.c.h.b16 %v234
  %v514 = vunpack.c.l.b16 %v235
  %v515 = vunpack.c.h.b16 %v235
  %v516 = vunpack.c.l.b16 %v236
  %v517 = vunpack.c.h.b16 %v236
  %v518 = vunpack.c.l.b16 %v237
  %v519 = vunpack.c.h.b16 %v237
  %v520 = vunpack.c.l.b16 %v238
  %v521 = vunpack.c.h.b16 %v238
  %v522 = vunpack.c.l.b16 %v239
  %v523 = vunpack.c.h.b16 %v239
  %v524 = vunpack.c.l.b16 %v240
  %v525 = vunpack.c.h.b16 %v240
  %v526 = vunpack.c.l.b16 %v241
  %v527 = vunpack.c.h.b16 %v241
  %v528 = vunpack.c.l.b16 %v242
  %v529 = vunpack.c.h.b16 %v242
  %v530 = vunpack.c.l.b16 %v243
  %v531 = vunpack.c.h.b16 %v243
  %v532 = vunpack.c.l.b16 %v244
  %v533 = vunpack.c.h.b16 %v244
  %v534 = vunpack.c.l.b16 %v245
  %v535 = vunpack.c.h.b16 %v245
  %v536 = vunpack.c.l.b16 %v246
  %v537 = vunpack.c.h.b16 %v246
  %v538 = vunpack.c.l.b16 %v247
  %v539 = vunpack.c.h.b16 %v247
  %v540 = vunpack.c.l.b16 %v248
  %v541 = vunpack.c.h.b16 %v248
  %v542 = vunpack.c.l.b16 %v249
  %v543 = vunpack.c.h.b16 %v249
  %v544 = vunpack.c.l.b16 %v250
  %v545 = vunpack.c.h.b16 %v250
  %v546 = vunpack.c.l.b16 %v251
  %v547 = vunpack.c.h.b16 %v251
  %v548 = vunpack.c.l.b16 %v252
  %v549 = vunpack.c.h.b16 %v252
  %v550 = vunpack.c.l.b16 %v253
  %v551 = vunpack.c.h.b16 %v253
  %v552 = vunpack.c.l.b16 %v254
  %v553 = vunpack.c.h.b16 %v254
  %v554 = vunpack.c.l.b16 %v255
  %v555 = vunpack.c.h.b16 %v255
  %v556 = vunpack.c.l.b16 %v256
  %v557 = vunpack.c.h.b16 %v256
  %v558 = vunpack.c.l.b16 %v257
  %v559 = vunpack.c.h.b16 %v257
  %v560 = vunpack.c.l.b16 %v258
  %v561 = vunpack.c.h.b16 %v258
  %v562 = vunpack.c.l.b16 %v259
  %v563 = vunpack.c.h.b16 %v259
  %v564 = vunpack.c.l.b16 %v260
  %v565 = vunpack.c.h.b16 %v260
  %v566 = vunpack.c.l.b16 %v261
  %v567 = vunpack.c.h.b16 %v261
  %v568 = vunpack.c.l.b16 %v262
  %v569 = vunpack.c.h.b16 %v262
  %v570 = vunpack.c.l.b16 %v263
  %v571 = vunpack.c.h.b16 %v263
  %v572 = vunpack.c.l.b16 %v264
  %v573 = vunpack.c.h.b16 %v264
  %v574 = vunpack.c.l.b16 %v265
  %v575 = vunpack.c.h.b16 %v265
  %v576 = vunpack.c.l.b16 %v266
  %v577 = vunpack.c.h.b16 %v266
  %v578 = vunpack.c.l.b16 %v267
  %v579 = vunpack.c.h.b16 %v267
  %v580 = vunpack.c.l.b16 %v268
  %v581 = vunpack.c.h.b16 %v268
  %v582 = vunpack.c.l.b16 %v269
  %v583 = vunpack.c.h.b16 %v269
  %v584 = vunpack.c.l.b16 %v270
  %v585 = vunpack.c.h.b16 %v270
  %v586 = vunpack.c.l.b16 %v271
  %v587 = vunpack.c.h.b16 %v271
  %v588 = vunpack.c.l.b16 %v272
  %v589 = vunpack.c.h.b16 %v272
  %v590 = vunpack.c.l.b16 %v273
  %v591 = vunpack.c.h.b16 %v273
  %v592 = vunpack.c.l.b16 %v274
  %v593 = vunpack.c.h.b16 %v274
  %v594 = vunpack.c.l.b16 %v275
  %v595 = vunpack.c.h.b16 %v275
  %v596 = vunpack.c.l.b16 %v276
  %v597 = vunpack.c.h.b16 %v276
  %v598 = vunpack.c.l.b16 %v277
  %v599 = vunpack.c.h.b16 %v277
  %v600 = vunpack.c.l.b16 %v278
  %v601 = vunpack.c.h.b16 %v278
  %v602 = vunpack.c.l.b16 %v279
  %v603 = vunpack.c.h.b16 %v279
  %v604 = vunpack.c.l.b16 %v280
  %v605 = vunpack.c.h.b16 %v280
  %v606 = vunpack.c.l.b16 %v281
  %v607 = vunpack.c.h.b16 %v281
  %v608 = vunpack.c.l.b16 %v282
  %v609 = vunpack.c.h.b16 %v282
  %v610 = vunpack.c.l.b16 %v283
  %v611 = vunpack.c.h.b16 %v283
  %v612 = vunpack.c.l.b16 %v284
  %v613 = vunpack.c.h.b16 %v284
  %v614 = vunpack.c.l.b16 %v285
  %v615 = vunpack.c.h.b16 %v285
  %v616 = vunpack.c.l.b16 %v286
  %v617 = vunpack.c.h.b16 %v286
  %v618 = vunpack.c.l.b16 %v287
  %v619 = vunpack.c.h.b16 %v287
  %v620 = vunpack.c.l.b16 %v288
  %v621 = vunpack.c.h.b16 %v288
  %v622 = vunpack.c.l.b16 %v289
  %v623 = vunpack.c.h.b16 %v289
  %v624 = vunpack.c.l.b16 %v290
  %v625 = vunpack.c.h.b16 %v290
  %v626 = vunpack.c.l.b16 %v291
  %v627 = vunpack.c.h.b16 %v291
  %v628 = vunpack.c.l.b16 %v292
  %v629 = vunpack.c.h.b16 %v292
  %v630 = vunpack.c.l.b16 %v293
  %v631 = vunpack.c.h.b16 %v293
  %v632 = vunpack.c.l.b16 %v294
  %v633 = vunpack.c.h.b16 %v294
  %v634 = vunpack.c.l.b16 %v295
  %v635 = vunpack.c.h.b16 %v295
  %v636 = vunpack.c.l.b16 %v296
  %v637 = vunpack.c.h.b16 %v296
  %v638 = vunpack.c.l.b16 %v297
  %v639 = vunpack.c.h.b16 %v297
  %v640 = vunpack.c.l.b16 %v298
  %v641 = vunpack.c.h.b16 %v298
  %v642 = vunpack.c.l.b16 %v299
  %v643 = vunpack.c.h.b16 %v299
  %v644 = vunpack.c.l.b16 %v300
  %v645 = vunpack.c.h.b16 %v300
  %v646 = vunpack.c.l.b16 %v301
  %v647 = vunpack.c.h.b16 %v301
  %v648 = vunpack.c.l.b16 %v302
  %v649 = vunpack.c.h.b16 %v302
  %v650 = vunpack.c.l.b16 %v303
  %v651 = vunpack.c.h.b16 %v303
  %v652 = vunpack.c.l.b16 %v304
  %v653 = vunpack.c.h.b16 %v304
  %v654 = vunpack.c.l.b16 %v305
  %v655 = vunpack.c.h.b16 %v305
  %v656 = vunpack.c.l.b16 %v306
  %v657 = vunpack.c.h.b16 %v306
  %v658 = vunpack.c.l.b16 %v307
  %v659 = vunpack.c.h.b16 %v307
  %v660 = vunpack.c.l.b16 %v308
  %v661 = vunpack.c.h.b16 %v308
  %v662 = vunpack.c.l.b16 %v309
  %v663 = vunpack.c.h.b16 %v309
  %v664 = vunpack.c.l.b16 %v310
  %v665 = vunpack.c.h.b16 %v310
  %v666 = vunpack.c.l.b16 %v311
  %v667 = vunpack.c.h.b16 %v311
  %v668 = vunpack.c.l.b16 %v312
  %v669 = vunpack.c.h.b16 %v312
  %v670 = vunpack.c.l.b16 %v313
  %v671 = vunpack.c.h.b16 %v313
  %v672 = vunpack.c.l.b16 %v314
  %v673 = vunpack.c.h.b16 %v314
  %v674 = vunpack.c.l.b16 %v315
  %v675 = vunpack.c.h.b16 %v315
  %v676 = vunpack.c.l.b16 %v316
  %v677 = vunpack.c.h.b16 %v316
  %v678 = vunpack.c.l.b16 %v317
  %v679 = vunpack.c.h.b16 %v317
  %v680 = vunpack.c.l.b16 %v318
  %v681 = vunpack.c.h.b16 %v318
  %v682 = vunpack.c.l.b16 %v319
  %v683 = vunpack.c.h.b16 %v319
  %v684 = vunpack.c.l.b16 %v320
  %v685 = vunpack.c.h.b16 %v320
  %v686 = vunpack.c.l.b16 %v321
  %v687 = vunpack.c.h.b16 %v321
  %v688 = vunpack.c.l.b16 %v322
  %v689 = vunpack.c.h.b16 %v322
  %v690 = vunpack.c.l.b16 %v323
  %v691 = vunpack.c.h.b16 %v323
  %v692 = vunpack.c.l.b16 %v324
  %v693 = vunpack.c.h.b16 %v324
  %v694 = vunpack.c.l.b16 %v325
  %v695 = vunpack.c.h.b16 %v325
  %v696 = vunpack.c.l.b16 %v326
  %v697 = vunpack.c.h.b16 %v326
  %v698 = vunpack.c.l.b16 %v327
  %v699 = vunpack.c.h.b16 %v327
  %v700 = vunpack.c.l.b16 %v328
  %v701 = vunpack.c.h.b16 %v328
  %v702 = vunpack.c.l.b16 %v329
  %v703 = vunpack.c.h.b16 %v329
  %v704 = vunpack.c.l.b16 %v330
  %v705 = vunpack.c.h.b16 %v330
  %v706 = vunpack.c.l.b16 %v331
  %v707 = vunpack.c.h.b16 %v331
  %v708 = vunpack.c.l.b16 %v332
  %v709 = vunpack.c.h.b16 %v332
  %v710 = vunpack.c.l.b16 %v333
  %v711 = vunpack.c.h.b16 %v333
  %v712 = vunpack.c.l.b16 %v334
  %v713 = vunpack.c.h.b16 %v334
  %v714 = vunpack.c.l.b16 %v335
  %v715 = vunpack.c.h.b16 %v335
  %v716 = vunpack.c.l.b16 %v336
  %v717 = vunpack.c.h.b16 %v336
  %v718 = vunpack.c.l.b16 %v337
  %v719 = vunpack.c.h.b16 %v337
  %v720 = vunpack.c.l.b16 %v338
  %v721 = vunpack.c.h.b16 %v338
  %v722 = vunpack.c.l.b16 %v339
  %v723 = vunpack.c.h.b16 %v339
  %v724 = vpack.c.b16 %v472, %v468
  %v725 = vpack.c.b16 %v473, %v469
  %v726 = vpack.c.b16 %v474, %v470
  %v727 = vpack.c.b16 %v475, %v471
  %v728 = vpack.c.b16 %v480, %v476
  %v729 = vpack.c.b16 %v481, %v477
  %v730 = vpack.c.b16 %v482, %v478
  %v731 = vpack.c.b16 %v483, %v479
  %v732 = vpack.c.b16 %v488, %v484
  %v733 = vpack.c.b16 %v489, %v485
  %v734 = vpack.c.b16 %v490, %v486
  %v735 = vpack.c.b16 %v491, %v487
  %v736 = vpack.c.b16 %v496, %v492
  %v737 = vpack.c.b16 %v497, %v493
  %v738 = vpack.c.b16 %v498, %v494
  %v739 = vpack.c.b16 %v499, %v495
  %v740 = vpack.c.b16 %v504, %v500
  %v741 = vpack.c.b16 %v505, %v501
  %v742 = vpack.c.b16 %v506, %v502
  %v743 = vpack.c.b16 %v507, %v503
  %v744 = vpack.c.b16 %v512, %v508
  %v745 = vpack.c.b16 %v513, %v509
  %v746 = vpack.c.b16 %v514, %v510
  %v747 = vpack.c.b16 %v515, %v511
  %v748 = vpack.c.b16 %v520, %v516
  %v749 = vpack.c.b16 %v521, %v517
  %v750 = vpack.c.b16 %v522, %v518
  %v751 = vpack.c.b16 %v523, %v519
  %v752 = vpack.c.b16 %v528, %v524
  %v753 = vpack.c.b16 %v529, %v525
  %v754 = vpack.c.b16 %v530, %v526
  %v755 = vpack.c.b16 %v531, %v527
  %v756 = vpack.c.b16 %v536, %v532
  %v757 = vpack.c.b16 %v537, %v533
  %v758 = vpack.c.b16 %v538, %v534
  %v759 = vpack.c.b16 %v539, %v535
  %v760 = vpack.c.b16 %v544, %v540
  %v761 = vpack.c.b16 %v545, %v541
  %v762 = vpack.c.b16 %v546, %v542
  %v763 = vpack.c.b16 %v547, %v543
  %v764 = vpack.c.b16 %v552, %v548
  %v765 = vpack.c.b16 %v553, %v549
  %v766 = vpack.c.b16 %v554, %v550
  %v767 = vpack.c.b16 %v555, %v551
  %v768 = vpack.c.b16 %v560, %v556
  %v769 = vpack.c.b16 %v561, %v557
  %v770 = vpack.c.b16 %v562, %v558
  %v771 = vpack.c.b16 %v563, %v559
  %v772 = vpack.c.b16 %v568, %v564
  %v773 = vpack.c.b16 %v569, %v565
  %v774 = vpack.c.b16 %v570, %v566
  %v775 = vpack.c.b16 %v571, %v567
  %v776 = vpack.c.b16 %v576, %v572
  %v777 = vpack.c.b16 %v577, %v573
  %v778 = vpack.c.b16 %v578, %v574
  %v779 = vpack.c.b16 %v579, %v575
  %v780 = vpack.c.b16 %v584, %v580
  %v781 = vpack.c.b16 %v585, %v581
  %v782 = vpack.c.b16 %v586, %v582
  %v783 = vpack.c.b16 %v587, %v583
  %v784 = vpack.c.b16 %v592, %v588
  %v785 = vpack.c.b16 %v593, %v589
  %v786 = vpack.c.b16 %v594, %v590
  %v787 = vpack.c.b16 %v595, %v591
  %v788 = vpack.c.b16 %v600, %v596
  %v789 = vpack.c.b16 %v601, %v597
  %v790 = vpack.c.b16 %v602, %v598
  %v791 = vpack.c.b16 %v603, %v599
  %v792 = vpack.c.b16 %v608, %v604
  %v793 = vpack.c.b16 %v609, %v605
  %v794 = vpack.c.b16 %v610, %v606
  %v795 = vpack.c.b16 %v611, %v607
  %v796 = vpack.c.b16 %v616, %v612
  %v797 = vpack.c.b16 %v617, %v613
  %v798 = vpack.c.b16 %v618, %v614
  %v799 = vpack.c.b16 %v619, %v615
  %v800 = vpack.c.b16 %v624, %v620
  %v801 = vpack.c.b16 %v625, %v621
  %v802 = vpack.c.b16 %v626, %v622
  %v803 = vpack.c.b16 %v627, %v623
  %v804 = vpack.c.b16 %v632, %v628
  %v805 = vpack.c.b16 %v633, %v629
  %v806 = vpack.c.b16 %v634, %v630
  %v807 = vpack.c.b16 %v635, %v631
  %v808 = vpack.c.b16 %v640, %v636
  %v809 = vpack.c.b16 %v641, %v637
  %v810 = vpack.c.b16 %v642, %v638
  %v811 = vpack.c.b16 %v643, %v639
  %v812 = vpack.c.b16 %v648, %v644
  %v813 = vpack.c.b16 %v649, %v645
  %v814 = vpack.c.b16 %v650, %v646
  %v815 = vpack.c.b16 %v651, %v647
  %v816 = vpack.c.b16 %v656, %v652
  %v817 = vpack.c.b16 %v657, %v653
  %v818 = vpack.c.b16 %v658, %v654
  %v819 = vpack.c.b16 %v659, %v655
  %v820 = vpack.c.b16 %v664, %v660
  %v821 = vpack.c.b16 %v665, %v661
  %v822 = vpack.c.b16 %v666, %v662
  %v823 = vpack.c.b16 %v667, %v663
  %v824 = vpack.c.b16 %v672, %v668
  %v825 = vpack.c.b16 %v673, %v669
  %v826 = vpack.c.b16 %v674, %v670
  %v827 = vpack.c.b16 %v675, %v671
  %v828 = vpack.c.b16 %v680, %v676
  %v829 = vpack.c.b16 %v681, %v677
  %v830 = vpack.c.b16 %v682, %v678
  %v831 = vpack.c.b16 %v683, %v679
  %v832 = vpack.c.b16 %v688, %v684
  %v833 = vpack.c.b16 %v689, %v685
  %v834 = vpack.c.b16 %v690, %v686
  %v835 = vpack.c.b16 %v691, %v687
  %v836 = vpack.c.b16 %v696, %v692
  %v837 = vpack.c.b16 %v697, %v693
  %v838 = vpack.c.b16 %v698, %v694
  %v839 = vpack.c.b16 %v699, %v695
  %v840 = vpack.c.b16 %v704, %v700
  %v841 = vpack.c.b16 %v705, %v701
  %v842 = vpack.c.b16 %v706, %v702
  %v843 = vpack.c.b16 %v707, %v703
  %v844 = vpack.c.b16 %v712, %v708
  %v845 = vpack.c.b16 %v713, %v709
  %v846 = vpack.c.b16 %v714, %v710
  %v847 = vpack.c.b16 %v715, %v711
  %v848 = vpack.c.b16 %v720, %v716
  %v849 = vpack.c.b16 %v721, %v717
  %v850 = vpack.c.b16 %v722, %v718
  %v851 = vpack.c.b16 %v723, %v719
  %v1044 = vunpack.c.l.b16 %v84
  %v1045 = vunpack.c.l.b16 %v85
  %v1046 = vunpack.c.l.b16 %v86
  %v1047 = vunpack.c.l.b16 %v87
  %v1048 = vunpack.c.l.b16 %v88
  %v1049 = vunpack.c.l.b16 %v89
  %v1050 = vunpack.c.l.b16 %v90
  %v1051 = vunpack.c.l.b16 %v91
  %v1052 = vunpack.c.l.b16 %v92
  %v1053 = vunpack.c.l.b16 %v93
  %v1054 = vunpack.c.l.b16 %v94
  %v1055 = vunpack.c.l.b16 %v95
  %v1056 = vunpack.c.l.b16 %v96
  %v1057 = vunpack.c.l.b16 %v97
  %v1058 = vunpack.c.l.b16 %v98
  %v1059 = vunpack.c.l.b16 %v99
  %v1060 = vunpack.c.l.b16 %v100
  %v1061 = vunpack.c.l.b16 %v101
  %v1062 = vunpack.c.l.b16 %v102
  %v1063 = vunpack.c.l.b16 %v103
  %v1064 = vunpack.c.l.b16 %v104
  %v1065 = vunpack.c.l.b16 %v105
  %v1066 = vunpack.c.l.b16 %v106
  %v1067 = vunpack.c.l.b16 %v107
  %v1068 = vunpack.c.l.b16 %v108
  %v1069 = vunpack.c.l.b16 %v109
  %v1070 = vunpack.c.l.b16 %v110
  %v1071 = vunpack.c.l.b16 %v111
  %v1072 = vunpack.c.l.b16 %v112
  %v1073 = vunpack.c.l.b16 %v113
  %v1074 = vunpack.c.l.b16 %v114
  %v1075 = vunpack.c.l.b16 %v115
  %v1076 = vunpack.c.l.b16 %v116
  %v1077 = vunpack.c.l.b16 %v117
  %v1078 = vunpack.c.l.b16 %v118
  %v1079 = vunpack.c.l.b16 %v119
  %v1080 = vunpack.c.l.b16 %v120
  %v1081 = vunpack.c.l.b16 %v121
  %v1082 = vunpack.c.l.b16 %v122
  %v1083 = vunpack.c.l.b16 %v123
  %v1084 = vunpack.c.l.b16 %v124
  %v1085 = vunpack.c.l.b16 %v125
  %v1086 = vunpack.c.l.b16 %v126
  %v1087 = vunpack.c.l.b16 %v127
  %v1088 = vunpack.c.l.b16 %v128
  %v1089 = vunpack.c.l.b16 %v129
  %v1090 = vunpack.c.l.b16 %v130
  %v1091 = vunpack.c.l.b16 %v131
  %v1092 = vunpack.c.l.b16 %v132
  %v1093 = vunpack.c.l.b16 %v133
  %v1094 = vunpack.c.l.b16 %v134
  %v1095 = vunpack.c.l.b16 %v135
  %v1096 = vunpack.c.l.b16 %v136
  %v1097 = vunpack.c.l.b16 %v137
  %v1098 = vunpack.c.l.b16 %v138
  %v1099 = vunpack.c.l.b16 %v139
  %v1100 = vunpack.c.l.b16 %v140
  %v1101 = vunpack.c.l.b16 %v141
  %v1102 = vunpack.c.l.b16 %v142
  %v1103 = vunpack.c.l.b16 %v143
  %v1104 = vunpack.c.l.b16 %v144
  %v1105 = vunpack.c.l.b16 %v145
  %v1106 = vunpack.c.l.b16 %v146
  %v1107 = vunpack.c.l.b16 %v147
  %v1108 = vpack.c.b16 %v1045, %v1044
  %v1109 = vpack.c.b16 %v1047, %v1046
  %v1110 = vpack.c.b16 %v1049, %v1048
  %v1111 = vpack.c.b16 %v1051, %v1050
  %v1112 = vpack.c.b16 %v1053, %v1052
  %v1113 = vpack.c.b16 %v1055, %v1054
  %v1114 = vpack.c.b16 %v1057, %v1056
  %v1115 = vpack.c.b16 %v1059, %v1058
  %v1116 = vpack.c.b16 %v1061, %v1060
  %v1117 = vpack.c.b16 %v1063, %v1062
  %v1118 = vpack.c.b16 %v1065, %v1064
  %v1119 = vpack.c.b16 %v1067, %v1066
  %v1120 = vpack.c.b16 %v1069, %v1068
  %v1121 = vpack.c.b16 %v1071, %v1070
  %v1122 = vpack.c.b16 %v1073, %v1072
  %v1123 = vpack.c.b16 %v1075, %v1074
  %v1124 = vpack.c.b16 %v1077, %v1076
  %v1125 = vpack.c.b16 %v1079, %v1078
  %v1126 = vpack.c.b16 %v1081, %v1080
  %v1127 = vpack.c.b16 %v1083, %v1082
  %v1128 = vpack.c.b16 %v1085, %v1084
  %v1129 = vpack.c.b16 %v1087, %v1086
  %v1130 = vpack.c.b16 %v1089, %v1088
  %v1131 = vpack.c.b16 %v1091, %v1090
  %v1132 = vpack.c.b16 %v1093, %v1092
  %v1133 = vpack.c.b16 %v1095, %v1094
  %v1134 = vpack.c.b16 %v1097, %v1096
  %v1135 = vpack.c.b16 %v1099, %v1098
  %v1136 = vpack.c.b16 %v1101, %v1100
  %v1137 = vpack.c.b16 %v1103, %v1102
  %v1138 = vpack.c.b16 %v1105, %v1104
  %v1139 = vpack.c.b16 %v1107, %v1106
  %1172 = vmatpush.bf16.msra.mxu0 %v1115
  %1173 = vmatpush.bf16.msra.mxu0 %v1114
  %1174 = vmatpush.bf16.msra.mxu0 %v1113
  %1175 = vmatpush.bf16.msra.mxu0 %v1112
  %1176 = vmatpush.bf16.msra.mxu0 %v1111
  %1177 = vmatpush.bf16.msra.mxu0 %v1110
  %1178 = vmatpush.bf16.msra.mxu0 %v1109
  %1179 = vmatpush.bf16.msra.mxu0 %v1108
  %1180 = vmatmul.bf16.gmra.mxu0 %v724
  %v1181 = vpop.f32.mrf.mxu0
  %v1182 = vadd.f32 0.0, %v1181
  %v1183 = vpop.f32.mrf.mxu0
  %v1184 = vadd.f32 0.0, %v1183
  %1185 = vmatmul.bf16.gmra.mxu0 %v728
  %v1186 = vpop.f32.mrf.mxu0
  %v1187 = vadd.f32 0.0, %v1186
  %v1188 = vpop.f32.mrf.mxu0
  %v1189 = vadd.f32 0.0, %v1188
  %1190 = vmatmul.bf16.gmra.mxu0 %v732
  %v1191 = vpop.f32.mrf.mxu0
  %v1192 = vadd.f32 0.0, %v1191
  %v1193 = vpop.f32.mrf.mxu0
  %v1194 = vadd.f32 0.0, %v1193
  %1195 = vmatmul.bf16.gmra.mxu0 %v736
  %v1196 = vpop.f32.mrf.mxu0
  %v1197 = vadd.f32 0.0, %v1196
  %v1198 = vpop.f32.mrf.mxu0
  %v1199 = vadd.f32 0.0, %v1198
  %1200 = vmatmul.bf16.gmra.mxu0 %v740
  %v1201 = vpop.f32.mrf.mxu0
  %v1202 = vadd.f32 0.0, %v1201
  %v1203 = vpop.f32.mrf.mxu0
  %v1204 = vadd.f32 0.0, %v1203
  %1205 = vmatmul.bf16.gmra.mxu0 %v744
  %v1206 = vpop.f32.mrf.mxu0
  %v1207 = vadd.f32 0.0, %v1206
  %v1208 = vpop.f32.mrf.mxu0
  %v1209 = vadd.f32 0.0, %v1208
  %1210 = vmatmul.bf16.gmra.mxu0 %v748
  %v1211 = vpop.f32.mrf.mxu0
  %v1212 = vadd.f32 0.0, %v1211
  %v1213 = vpop.f32.mrf.mxu0
  %v1214 = vadd.f32 0.0, %v1213
  %1215 = vmatmul.bf16.gmra.mxu0 %v752
  %v1216 = vpop.f32.mrf.mxu0
  %v1217 = vadd.f32 0.0, %v1216
  %v1218 = vpop.f32.mrf.mxu0
  %v1219 = vadd.f32 0.0, %v1218
  %1220 = vmatmul.bf16.gmra.mxu0 %v756
  %v1221 = vpop.f32.mrf.mxu0
  %v1222 = vadd.f32 0.0, %v1221
  %v1223 = vpop.f32.mrf.mxu0
  %v1224 = vadd.f32 0.0, %v1223
  %1225 = vmatmul.bf16.gmra.mxu0 %v760
  %v1226 = vpop.f32.mrf.mxu0
  %v1227 = vadd.f32 0.0, %v1226
  %v1228 = vpop.f32.mrf.mxu0
  %v1229 = vadd.f32 0.0, %v1228
  %1230 = vmatmul.bf16.gmra.mxu0 %v764
  %v1231 = vpop.f32.mrf.mxu0
  %v1232 = vadd.f32 0.0, %v1231
  %v1233 = vpop.f32.mrf.mxu0
  %v1234 = vadd.f32 0.0, %v1233
  %1235 = vmatmul.bf16.gmra.mxu0 %v768
  %v1236 = vpop.f32.mrf.mxu0
  %v1237 = vadd.f32 0.0, %v1236
  %v1238 = vpop.f32.mrf.mxu0
  %v1239 = vadd.f32 0.0, %v1238
  %1240 = vmatmul.bf16.gmra.mxu0 %v772
  %v1241 = vpop.f32.mrf.mxu0
  %v1242 = vadd.f32 0.0, %v1241
  %v1243 = vpop.f32.mrf.mxu0
  %v1244 = vadd.f32 0.0, %v1243
  %1245 = vmatmul.bf16.gmra.mxu0 %v776
  %v1246 = vpop.f32.mrf.mxu0
  %v1247 = vadd.f32 0.0, %v1246
  %v1248 = vpop.f32.mrf.mxu0
  %v1249 = vadd.f32 0.0, %v1248
  %1250 = vmatmul.bf16.gmra.mxu0 %v780
  %v1251 = vpop.f32.mrf.mxu0
  %v1252 = vadd.f32 0.0, %v1251
  %v1253 = vpop.f32.mrf.mxu0
  %v1254 = vadd.f32 0.0, %v1253
  %1255 = vmatmul.bf16.gmra.mxu0 %v784
  %v1256 = vpop.f32.mrf.mxu0
  %v1257 = vadd.f32 0.0, %v1256
  %v1258 = vpop.f32.mrf.mxu0
  %v1259 = vadd.f32 0.0, %v1258
  %1260 = vmatmul.bf16.gmra.mxu0 %v788
  %v1261 = vpop.f32.mrf.mxu0
  %v1262 = vadd.f32 0.0, %v1261
  %v1263 = vpop.f32.mrf.mxu0
  %v1264 = vadd.f32 0.0, %v1263
  %1265 = vmatmul.bf16.gmra.mxu0 %v792
  %v1266 = vpop.f32.mrf.mxu0
  %v1267 = vadd.f32 0.0, %v1266
  %v1268 = vpop.f32.mrf.mxu0
  %v1269 = vadd.f32 0.0, %v1268
  %1270 = vmatmul.bf16.gmra.mxu0 %v796
  %v1271 = vpop.f32.mrf.mxu0
  %v1272 = vadd.f32 0.0, %v1271
  %v1273 = vpop.f32.mrf.mxu0
  %v1274 = vadd.f32 0.0, %v1273
  %1275 = vmatmul.bf16.gmra.mxu0 %v800
  %v1276 = vpop.f32.mrf.mxu0
  %v1277 = vadd.f32 0.0, %v1276
  %v1278 = vpop.f32.mrf.mxu0
  %v1279 = vadd.f32 0.0, %v1278
  %1280 = vmatmul.bf16.gmra.mxu0 %v804
  %v1281 = vpop.f32.mrf.mxu0
  %v1282 = vadd.f32 0.0, %v1281
  %v1283 = vpop.f32.mrf.mxu0
  %v1284 = vadd.f32 0.0, %v1283
  %1285 = vmatmul.bf16.gmra.mxu0 %v808
  %v1286 = vpop.f32.mrf.mxu0
  %v1287 = vadd.f32 0.0, %v1286
  %v1288 = vpop.f32.mrf.mxu0
  %v1289 = vadd.f32 0.0, %v1288
  %1290 = vmatmul.bf16.gmra.mxu0 %v812
  %v1291 = vpop.f32.mrf.mxu0
  %v1292 = vadd.f32 0.0, %v1291
  %v1293 = vpop.f32.mrf.mxu0
  %v1294 = vadd.f32 0.0, %v1293
  %1295 = vmatmul.bf16.gmra.mxu0 %v816
  %v1296 = vpop.f32.mrf.mxu0
  %v1297 = vadd.f32 0.0, %v1296
  %v1298 = vpop.f32.mrf.mxu0
  %v1299 = vadd.f32 0.0, %v1298
  %1300 = vmatmul.bf16.gmra.mxu0 %v820
  %v1301 = vpop.f32.mrf.mxu0
  %v1302 = vadd.f32 0.0, %v1301
  %v1303 = vpop.f32.mrf.mxu0
  %v1304 = vadd.f32 0.0, %v1303
  %1305 = vmatmul.bf16.gmra.mxu0 %v824
  %v1306 = vpop.f32.mrf.mxu0
  %v1307 = vadd.f32 0.0, %v1306
  %v1308 = vpop.f32.mrf.mxu0
  %v1309 = vadd.f32 0.0, %v1308
  %1310 = vmatmul.bf16.gmra.mxu0 %v828
  %v1311 = vpop.f32.mrf.mxu0
  %v1312 = vadd.f32 0.0, %v1311
  %v1313 = vpop.f32.mrf.mxu0
  %v1314 = vadd.f32 0.0, %v1313
  %1315 = vmatmul.bf16.gmra.mxu0 %v832
  %v1316 = vpop.f32.mrf.mxu0
  %v1317 = vadd.f32 0.0, %v1316
  %v1318 = vpop.f32.mrf.mxu0
  %v1319 = vadd.f32 0.0, %v1318
  %1320 = vmatmul.bf16.gmra.mxu0 %v836
  %v1321 = vpop.f32.mrf.mxu0
  %v1322 = vadd.f32 0.0, %v1321
  %v1323 = vpop.f32.mrf.mxu0
  %v1324 = vadd.f32 0.0, %v1323
  %1325 = vmatmul.bf16.gmra.mxu0 %v840
  %v1326 = vpop.f32.mrf.mxu0
  %v1327 = vadd.f32 0.0, %v1326
  %v1328 = vpop.f32.mrf.mxu0
  %v1329 = vadd.f32 0.0, %v1328
  %1330 = vmatmul.bf16.gmra.mxu0 %v844
  %v1331 = vpop.f32.mrf.mxu0
  %v1332 = vadd.f32 0.0, %v1331
  %v1333 = vpop.f32.mrf.mxu0
  %v1334 = vadd.f32 0.0, %v1333
  %1335 = vmatmul.bf16.gmra.mxu0 %v848
  %v1336 = vpop.f32.mrf.mxu0
  %v1337 = vadd.f32 0.0, %v1336
  %v1338 = vpop.f32.mrf.mxu0
  %v1339 = vadd.f32 0.0, %v1338
  %1340 = vdwg.mxu0
  %1341 = vmatpush.bf16.msra.mxu0 %v1123
  %1342 = vmatpush.bf16.msra.mxu0 %v1122
  %1343 = vmatpush.bf16.msra.mxu0 %v1121
  %1344 = vmatpush.bf16.msra.mxu0 %v1120
  %1345 = vmatpush.bf16.msra.mxu0 %v1119
  %1346 = vmatpush.bf16.msra.mxu0 %v1118
  %1347 = vmatpush.bf16.msra.mxu0 %v1117
  %1348 = vmatpush.bf16.msra.mxu0 %v1116
  %1349 = vmatmul.bf16.gmra.mxu0 %v725
  %v1350 = vpop.f32.mrf.mxu0
  %v1351 = vadd.f32 %v1182, %v1350
  %v1352 = vpop.f32.mrf.mxu0
  %v1353 = vadd.f32 %v1184, %v1352
  %1354 = vmatmul.bf16.gmra.mxu0 %v729
  %v1355 = vpop.f32.mrf.mxu0
  %v1356 = vadd.f32 %v1187, %v1355
  %v1357 = vpop.f32.mrf.mxu0
  %v1358 = vadd.f32 %v1189, %v1357
  %1359 = vmatmul.bf16.gmra.mxu0 %v733
  %v1360 = vpop.f32.mrf.mxu0
  %v1361 = vadd.f32 %v1192, %v1360
  %v1362 = vpop.f32.mrf.mxu0
  %v1363 = vadd.f32 %v1194, %v1362
  %1364 = vmatmul.bf16.gmra.mxu0 %v737
  %v1365 = vpop.f32.mrf.mxu0
  %v1366 = vadd.f32 %v1197, %v1365
  %v1367 = vpop.f32.mrf.mxu0
  %v1368 = vadd.f32 %v1199, %v1367
  %1369 = vmatmul.bf16.gmra.mxu0 %v741
  %v1370 = vpop.f32.mrf.mxu0
  %v1371 = vadd.f32 %v1202, %v1370
  %v1372 = vpop.f32.mrf.mxu0
  %v1373 = vadd.f32 %v1204, %v1372
  %1374 = vmatmul.bf16.gmra.mxu0 %v745
  %v1375 = vpop.f32.mrf.mxu0
  %v1376 = vadd.f32 %v1207, %v1375
  %v1377 = vpop.f32.mrf.mxu0
  %v1378 = vadd.f32 %v1209, %v1377
  %1379 = vmatmul.bf16.gmra.mxu0 %v749
  %v1380 = vpop.f32.mrf.mxu0
  %v1381 = vadd.f32 %v1212, %v1380
  %v1382 = vpop.f32.mrf.mxu0
  %v1383 = vadd.f32 %v1214, %v1382
  %1384 = vmatmul.bf16.gmra.mxu0 %v753
  %v1385 = vpop.f32.mrf.mxu0
  %v1386 = vadd.f32 %v1217, %v1385
  %v1387 = vpop.f32.mrf.mxu0
  %v1388 = vadd.f32 %v1219, %v1387
  %1389 = vmatmul.bf16.gmra.mxu0 %v757
  %v1390 = vpop.f32.mrf.mxu0
  %v1391 = vadd.f32 %v1222, %v1390
  %v1392 = vpop.f32.mrf.mxu0
  %v1393 = vadd.f32 %v1224, %v1392
  %1394 = vmatmul.bf16.gmra.mxu0 %v761
  %v1395 = vpop.f32.mrf.mxu0
  %v1396 = vadd.f32 %v1227, %v1395
  %v1397 = vpop.f32.mrf.mxu0
  %v1398 = vadd.f32 %v1229, %v1397
  %1399 = vmatmul.bf16.gmra.mxu0 %v765
  %v1400 = vpop.f32.mrf.mxu0
  %v1401 = vadd.f32 %v1232, %v1400
  %v1402 = vpop.f32.mrf.mxu0
  %v1403 = vadd.f32 %v1234, %v1402
  %1404 = vmatmul.bf16.gmra.mxu0 %v769
  %v1405 = vpop.f32.mrf.mxu0
  %v1406 = vadd.f32 %v1237, %v1405
  %v1407 = vpop.f32.mrf.mxu0
  %v1408 = vadd.f32 %v1239, %v1407
  %1409 = vmatmul.bf16.gmra.mxu0 %v773
  %v1410 = vpop.f32.mrf.mxu0
  %v1411 = vadd.f32 %v1242, %v1410
  %v1412 = vpop.f32.mrf.mxu0
  %v1413 = vadd.f32 %v1244, %v1412
  %1414 = vmatmul.bf16.gmra.mxu0 %v777
  %v1415 = vpop.f32.mrf.mxu0
  %v1416 = vadd.f32 %v1247, %v1415
  %v1417 = vpop.f32.mrf.mxu0
  %v1418 = vadd.f32 %v1249, %v1417
  %1419 = vmatmul.bf16.gmra.mxu0 %v781
  %v1420 = vpop.f32.mrf.mxu0
  %v1421 = vadd.f32 %v1252, %v1420
  %v1422 = vpop.f32.mrf.mxu0
  %v1423 = vadd.f32 %v1254, %v1422
  %1424 = vmatmul.bf16.gmra.mxu0 %v785
  %v1425 = vpop.f32.mrf.mxu0
  %v1426 = vadd.f32 %v1257, %v1425
  %v1427 = vpop.f32.mrf.mxu0
  %v1428 = vadd.f32 %v1259, %v1427
  %1429 = vmatmul.bf16.gmra.mxu0 %v789
  %v1430 = vpop.f32.mrf.mxu0
  %v1431 = vadd.f32 %v1262, %v1430
  %v1432 = vpop.f32.mrf.mxu0
  %v1433 = vadd.f32 %v1264, %v1432
  %1434 = vmatmul.bf16.gmra.mxu0 %v793
  %v1435 = vpop.f32.mrf.mxu0
  %v1436 = vadd.f32 %v1267, %v1435
  %v1437 = vpop.f32.mrf.mxu0
  %v1438 = vadd.f32 %v1269, %v1437
  %1439 = vmatmul.bf16.gmra.mxu0 %v797
  %v1440 = vpop.f32.mrf.mxu0
  %v1441 = vadd.f32 %v1272, %v1440
  %v1442 = vpop.f32.mrf.mxu0
  %v1443 = vadd.f32 %v1274, %v1442
  %1444 = vmatmul.bf16.gmra.mxu0 %v801
  %v1445 = vpop.f32.mrf.mxu0
  %v1446 = vadd.f32 %v1277, %v1445
  %v1447 = vpop.f32.mrf.mxu0
  %v1448 = vadd.f32 %v1279, %v1447
  %1449 = vmatmul.bf16.gmra.mxu0 %v805
  %v1450 = vpop.f32.mrf.mxu0
  %v1451 = vadd.f32 %v1282, %v1450
  %v1452 = vpop.f32.mrf.mxu0
  %v1453 = vadd.f32 %v1284, %v1452
  %1454 = vmatmul.bf16.gmra.mxu0 %v809
  %v1455 = vpop.f32.mrf.mxu0
  %v1456 = vadd.f32 %v1287, %v1455
  %v1457 = vpop.f32.mrf.mxu0
  %v1458 = vadd.f32 %v1289, %v1457
  %1459 = vmatmul.bf16.gmra.mxu0 %v813
  %v1460 = vpop.f32.mrf.mxu0
  %v1461 = vadd.f32 %v1292, %v1460
  %v1462 = vpop.f32.mrf.mxu0
  %v1463 = vadd.f32 %v1294, %v1462
  %1464 = vmatmul.bf16.gmra.mxu0 %v817
  %v1465 = vpop.f32.mrf.mxu0
  %v1466 = vadd.f32 %v1297, %v1465
  %v1467 = vpop.f32.mrf.mxu0
  %v1468 = vadd.f32 %v1299, %v1467
  %1469 = vmatmul.bf16.gmra.mxu0 %v821
  %v1470 = vpop.f32.mrf.mxu0
  %v1471 = vadd.f32 %v1302, %v1470
  %v1472 = vpop.f32.mrf.mxu0
  %v1473 = vadd.f32 %v1304, %v1472
  %1474 = vmatmul.bf16.gmra.mxu0 %v825
  %v1475 = vpop.f32.mrf.mxu0
  %v1476 = vadd.f32 %v1307, %v1475
  %v1477 = vpop.f32.mrf.mxu0
  %v1478 = vadd.f32 %v1309, %v1477
  %1479 = vmatmul.bf16.gmra.mxu0 %v829
  %v1480 = vpop.f32.mrf.mxu0
  %v1481 = vadd.f32 %v1312, %v1480
  %v1482 = vpop.f32.mrf.mxu0
  %v1483 = vadd.f32 %v1314, %v1482
  %1484 = vmatmul.bf16.gmra.mxu0 %v833
  %v1485 = vpop.f32.mrf.mxu0
  %v1486 = vadd.f32 %v1317, %v1485
  %v1487 = vpop.f32.mrf.mxu0
  %v1488 = vadd.f32 %v1319, %v1487
  %1489 = vmatmul.bf16.gmra.mxu0 %v837
  %v1490 = vpop.f32.mrf.mxu0
  %v1491 = vadd.f32 %v1322, %v1490
  %v1492 = vpop.f32.mrf.mxu0
  %v1493 = vadd.f32 %v1324, %v1492
  %1494 = vmatmul.bf16.gmra.mxu0 %v841
  %v1495 = vpop.f32.mrf.mxu0
  %v1496 = vadd.f32 %v1327, %v1495
  %v1497 = vpop.f32.mrf.mxu0
  %v1498 = vadd.f32 %v1329, %v1497
  %1499 = vmatmul.bf16.gmra.mxu0 %v845
  %v1500 = vpop.f32.mrf.mxu0
  %v1501 = vadd.f32 %v1332, %v1500
  %v1502 = vpop.f32.mrf.mxu0
  %v1503 = vadd.f32 %v1334, %v1502
  %1504 = vmatmul.bf16.gmra.mxu0 %v849
  %v1505 = vpop.f32.mrf.mxu0
  %v1506 = vadd.f32 %v1337, %v1505
  %v1507 = vpop.f32.mrf.mxu0
  %v1508 = vadd.f32 %v1339, %v1507
  %1509 = vdwg.mxu0
  %1510 = vmatpush.bf16.msra.mxu0 %v1131
  %1511 = vmatpush.bf16.msra.mxu0 %v1130
  %1512 = vmatpush.bf16.msra.mxu0 %v1129
  %1513 = vmatpush.bf16.msra.mxu0 %v1128
  %1514 = vmatpush.bf16.msra.mxu0 %v1127
  %1515 = vmatpush.bf16.msra.mxu0 %v1126
  %1516 = vmatpush.bf16.msra.mxu0 %v1125
  %1517 = vmatpush.bf16.msra.mxu0 %v1124
  %1518 = vmatmul.bf16.gmra.mxu0 %v726
  %v1519 = vpop.f32.mrf.mxu0
  %v1520 = vadd.f32 %v1351, %v1519
  %v1521 = vpop.f32.mrf.mxu0
  %v1522 = vadd.f32 %v1353, %v1521
  %1523 = vmatmul.bf16.gmra.mxu0 %v730
  %v1524 = vpop.f32.mrf.mxu0
  %v1525 = vadd.f32 %v1356, %v1524
  %v1526 = vpop.f32.mrf.mxu0
  %v1527 = vadd.f32 %v1358, %v1526
  %1528 = vmatmul.bf16.gmra.mxu0 %v734
  %v1529 = vpop.f32.mrf.mxu0
  %v1530 = vadd.f32 %v1361, %v1529
  %v1531 = vpop.f32.mrf.mxu0
  %v1532 = vadd.f32 %v1363, %v1531
  %1533 = vmatmul.bf16.gmra.mxu0 %v738
  %v1534 = vpop.f32.mrf.mxu0
  %v1535 = vadd.f32 %v1366, %v1534
  %v1536 = vpop.f32.mrf.mxu0
  %v1537 = vadd.f32 %v1368, %v1536
  %1538 = vmatmul.bf16.gmra.mxu0 %v742
  %v1539 = vpop.f32.mrf.mxu0
  %v1540 = vadd.f32 %v1371, %v1539
  %v1541 = vpop.f32.mrf.mxu0
  %v1542 = vadd.f32 %v1373, %v1541
  %1543 = vmatmul.bf16.gmra.mxu0 %v746
  %v1544 = vpop.f32.mrf.mxu0
  %v1545 = vadd.f32 %v1376, %v1544
  %v1546 = vpop.f32.mrf.mxu0
  %v1547 = vadd.f32 %v1378, %v1546
  %1548 = vmatmul.bf16.gmra.mxu0 %v750
  %v1549 = vpop.f32.mrf.mxu0
  %v1550 = vadd.f32 %v1381, %v1549
  %v1551 = vpop.f32.mrf.mxu0
  %v1552 = vadd.f32 %v1383, %v1551
  %1553 = vmatmul.bf16.gmra.mxu0 %v754
  %v1554 = vpop.f32.mrf.mxu0
  %v1555 = vadd.f32 %v1386, %v1554
  %v1556 = vpop.f32.mrf.mxu0
  %v1557 = vadd.f32 %v1388, %v1556
  %1558 = vmatmul.bf16.gmra.mxu0 %v758
  %v1559 = vpop.f32.mrf.mxu0
  %v1560 = vadd.f32 %v1391, %v1559
  %v1561 = vpop.f32.mrf.mxu0
  %v1562 = vadd.f32 %v1393, %v1561
  %1563 = vmatmul.bf16.gmra.mxu0 %v762
  %v1564 = vpop.f32.mrf.mxu0
  %v1565 = vadd.f32 %v1396, %v1564
  %v1566 = vpop.f32.mrf.mxu0
  %v1567 = vadd.f32 %v1398, %v1566
  %1568 = vmatmul.bf16.gmra.mxu0 %v766
  %v1569 = vpop.f32.mrf.mxu0
  %v1570 = vadd.f32 %v1401, %v1569
  %v1571 = vpop.f32.mrf.mxu0
  %v1572 = vadd.f32 %v1403, %v1571
  %1573 = vmatmul.bf16.gmra.mxu0 %v770
  %v1574 = vpop.f32.mrf.mxu0
  %v1575 = vadd.f32 %v1406, %v1574
  %v1576 = vpop.f32.mrf.mxu0
  %v1577 = vadd.f32 %v1408, %v1576
  %1578 = vmatmul.bf16.gmra.mxu0 %v774
  %v1579 = vpop.f32.mrf.mxu0
  %v1580 = vadd.f32 %v1411, %v1579
  %v1581 = vpop.f32.mrf.mxu0
  %v1582 = vadd.f32 %v1413, %v1581
  %1583 = vmatmul.bf16.gmra.mxu0 %v778
  %v1584 = vpop.f32.mrf.mxu0
  %v1585 = vadd.f32 %v1416, %v1584
  %v1586 = vpop.f32.mrf.mxu0
  %v1587 = vadd.f32 %v1418, %v1586
  %1588 = vmatmul.bf16.gmra.mxu0 %v782
  %v1589 = vpop.f32.mrf.mxu0
  %v1590 = vadd.f32 %v1421, %v1589
  %v1591 = vpop.f32.mrf.mxu0
  %v1592 = vadd.f32 %v1423, %v1591
  %1593 = vmatmul.bf16.gmra.mxu0 %v786
  %v1594 = vpop.f32.mrf.mxu0
  %v1595 = vadd.f32 %v1426, %v1594
  %v1596 = vpop.f32.mrf.mxu0
  %v1597 = vadd.f32 %v1428, %v1596
  %1598 = vmatmul.bf16.gmra.mxu0 %v790
  %v1599 = vpop.f32.mrf.mxu0
  %v1600 = vadd.f32 %v1431, %v1599
  %v1601 = vpop.f32.mrf.mxu0
  %v1602 = vadd.f32 %v1433, %v1601
  %1603 = vmatmul.bf16.gmra.mxu0 %v794
  %v1604 = vpop.f32.mrf.mxu0
  %v1605 = vadd.f32 %v1436, %v1604
  %v1606 = vpop.f32.mrf.mxu0
  %v1607 = vadd.f32 %v1438, %v1606
  %1608 = vmatmul.bf16.gmra.mxu0 %v798
  %v1609 = vpop.f32.mrf.mxu0
  %v1610 = vadd.f32 %v1441, %v1609
  %v1611 = vpop.f32.mrf.mxu0
  %v1612 = vadd.f32 %v1443, %v1611
  %1613 = vmatmul.bf16.gmra.mxu0 %v802
  %v1614 = vpop.f32.mrf.mxu0
  %v1615 = vadd.f32 %v1446, %v1614
  %v1616 = vpop.f32.mrf.mxu0
  %v1617 = vadd.f32 %v1448, %v1616
  %1618 = vmatmul.bf16.gmra.mxu0 %v806
  %v1619 = vpop.f32.mrf.mxu0
  %v1620 = vadd.f32 %v1451, %v1619
  %v1621 = vpop.f32.mrf.mxu0
  %v1622 = vadd.f32 %v1453, %v1621
  %1623 = vmatmul.bf16.gmra.mxu0 %v810
  %v1624 = vpop.f32.mrf.mxu0
  %v1625 = vadd.f32 %v1456, %v1624
  %v1626 = vpop.f32.mrf.mxu0
  %v1627 = vadd.f32 %v1458, %v1626
  %1628 = vmatmul.bf16.gmra.mxu0 %v814
  %v1629 = vpop.f32.mrf.mxu0
  %v1630 = vadd.f32 %v1461, %v1629
  %v1631 = vpop.f32.mrf.mxu0
  %v1632 = vadd.f32 %v1463, %v1631
  %1633 = vmatmul.bf16.gmra.mxu0 %v818
  %v1634 = vpop.f32.mrf.mxu0
  %v1635 = vadd.f32 %v1466, %v1634
  %v1636 = vpop.f32.mrf.mxu0
  %v1637 = vadd.f32 %v1468, %v1636
  %1638 = vmatmul.bf16.gmra.mxu0 %v822
  %v1639 = vpop.f32.mrf.mxu0
  %v1640 = vadd.f32 %v1471, %v1639
  %v1641 = vpop.f32.mrf.mxu0
  %v1642 = vadd.f32 %v1473, %v1641
  %1643 = vmatmul.bf16.gmra.mxu0 %v826
  %v1644 = vpop.f32.mrf.mxu0
  %v1645 = vadd.f32 %v1476, %v1644
  %v1646 = vpop.f32.mrf.mxu0
  %v1647 = vadd.f32 %v1478, %v1646
  %1648 = vmatmul.bf16.gmra.mxu0 %v830
  %v1649 = vpop.f32.mrf.mxu0
  %v1650 = vadd.f32 %v1481, %v1649
  %v1651 = vpop.f32.mrf.mxu0
  %v1652 = vadd.f32 %v1483, %v1651
  %1653 = vmatmul.bf16.gmra.mxu0 %v834
  %v1654 = vpop.f32.mrf.mxu0
  %v1655 = vadd.f32 %v1486, %v1654
  %v1656 = vpop.f32.mrf.mxu0
  %v1657 = vadd.f32 %v1488, %v1656
  %1658 = vmatmul.bf16.gmra.mxu0 %v838
  %v1659 = vpop.f32.mrf.mxu0
  %v1660 = vadd.f32 %v1491, %v1659
  %v1661 = vpop.f32.mrf.mxu0
  %v1662 = vadd.f32 %v1493, %v1661
  %1663 = vmatmul.bf16.gmra.mxu0 %v842
  %v1664 = vpop.f32.mrf.mxu0
  %v1665 = vadd.f32 %v1496, %v1664
  %v1666 = vpop.f32.mrf.mxu0
  %v1667 = vadd.f32 %v1498, %v1666
  %1668 = vmatmul.bf16.gmra.mxu0 %v846
  %v1669 = vpop.f32.mrf.mxu0
  %v1670 = vadd.f32 %v1501, %v1669
  %v1671 = vpop.f32.mrf.mxu0
  %v1672 = vadd.f32 %v1503, %v1671
  %1673 = vmatmul.bf16.gmra.mxu0 %v850
  %v1674 = vpop.f32.mrf.mxu0
  %v1675 = vadd.f32 %v1506, %v1674
  %v1676 = vpop.f32.mrf.mxu0
  %v1677 = vadd.f32 %v1508, %v1676
  %1678 = vdwg.mxu0
  %1679 = vmatpush.bf16.msra.mxu0 %v1139
  %1680 = vmatpush.bf16.msra.mxu0 %v1138
  %1681 = vmatpush.bf16.msra.mxu0 %v1137
  %1682 = vmatpush.bf16.msra.mxu0 %v1136
  %1683 = vmatpush.bf16.msra.mxu0 %v1135
  %1684 = vmatpush.bf16.msra.mxu0 %v1134
  %1685 = vmatpush.bf16.msra.mxu0 %v1133
  %1686 = vmatpush.bf16.msra.mxu0 %v1132
  %1687 = vmatmul.bf16.gmra.mxu0 %v727
  %v1688 = vpop.f32.mrf.mxu0
  %v1689 = vadd.f32 %v1520, %v1688
  %v1690 = vpop.f32.mrf.mxu0
  %v1691 = vadd.f32 %v1522, %v1690
  %1692 = vmatmul.bf16.gmra.mxu0 %v731
  %v1693 = vpop.f32.mrf.mxu0
  %v1694 = vadd.f32 %v1525, %v1693
  %v1695 = vpop.f32.mrf.mxu0
  %v1696 = vadd.f32 %v1527, %v1695
  %1697 = vmatmul.bf16.gmra.mxu0 %v735
  %v1698 = vpop.f32.mrf.mxu0
  %v1699 = vadd.f32 %v1530, %v1698
  %v1700 = vpop.f32.mrf.mxu0
  %v1701 = vadd.f32 %v1532, %v1700
  %1702 = vmatmul.bf16.gmra.mxu0 %v739
  %v1703 = vpop.f32.mrf.mxu0
  %v1704 = vadd.f32 %v1535, %v1703
  %v1705 = vpop.f32.mrf.mxu0
  %v1706 = vadd.f32 %v1537, %v1705
  %1707 = vmatmul.bf16.gmra.mxu0 %v743
  %v1708 = vpop.f32.mrf.mxu0
  %v1709 = vadd.f32 %v1540, %v1708
  %v1710 = vpop.f32.mrf.mxu0
  %v1711 = vadd.f32 %v1542, %v1710
  %1712 = vmatmul.bf16.gmra.mxu0 %v747
  %v1713 = vpop.f32.mrf.mxu0
  %v1714 = vadd.f32 %v1545, %v1713
  %v1715 = vpop.f32.mrf.mxu0
  %v1716 = vadd.f32 %v1547, %v1715
  %1717 = vmatmul.bf16.gmra.mxu0 %v751
  %v1718 = vpop.f32.mrf.mxu0
  %v1719 = vadd.f32 %v1550, %v1718
  %v1720 = vpop.f32.mrf.mxu0
  %v1721 = vadd.f32 %v1552, %v1720
  %1722 = vmatmul.bf16.gmra.mxu0 %v755
  %v1723 = vpop.f32.mrf.mxu0
  %v1724 = vadd.f32 %v1555, %v1723
  %v1725 = vpop.f32.mrf.mxu0
  %v1726 = vadd.f32 %v1557, %v1725
  %1727 = vmatmul.bf16.gmra.mxu0 %v759
  %v1728 = vpop.f32.mrf.mxu0
  %v1729 = vadd.f32 %v1560, %v1728
  %v1730 = vpop.f32.mrf.mxu0
  %v1731 = vadd.f32 %v1562, %v1730
  %1732 = vmatmul.bf16.gmra.mxu0 %v763
  %v1733 = vpop.f32.mrf.mxu0
  %v1734 = vadd.f32 %v1565, %v1733
  %v1735 = vpop.f32.mrf.mxu0
  %v1736 = vadd.f32 %v1567, %v1735
  %1737 = vmatmul.bf16.gmra.mxu0 %v767
  %v1738 = vpop.f32.mrf.mxu0
  %v1739 = vadd.f32 %v1570, %v1738
  %v1740 = vpop.f32.mrf.mxu0
  %v1741 = vadd.f32 %v1572, %v1740
  %1742 = vmatmul.bf16.gmra.mxu0 %v771
  %v1743 = vpop.f32.mrf.mxu0
  %v1744 = vadd.f32 %v1575, %v1743
  %v1745 = vpop.f32.mrf.mxu0
  %v1746 = vadd.f32 %v1577, %v1745
  %1747 = vmatmul.bf16.gmra.mxu0 %v775
  %v1748 = vpop.f32.mrf.mxu0
  %v1749 = vadd.f32 %v1580, %v1748
  %v1750 = vpop.f32.mrf.mxu0
  %v1751 = vadd.f32 %v1582, %v1750
  %1752 = vmatmul.bf16.gmra.mxu0 %v779
  %v1753 = vpop.f32.mrf.mxu0
  %v1754 = vadd.f32 %v1585, %v1753
  %v1755 = vpop.f32.mrf.mxu0
  %v1756 = vadd.f32 %v1587, %v1755
  %1757 = vmatmul.bf16.gmra.mxu0 %v783
  %v1758 = vpop.f32.mrf.mxu0
  %v1759 = vadd.f32 %v1590, %v1758
  %v1760 = vpop.f32.mrf.mxu0
  %v1761 = vadd.f32 %v1592, %v1760
  %1762 = vmatmul.bf16.gmra.mxu0 %v787
  %v1763 = vpop.f32.mrf.mxu0
  %v1764 = vadd.f32 %v1595, %v1763
  %v1765 = vpop.f32.mrf.mxu0
  %v1766 = vadd.f32 %v1597, %v1765
  %1767 = vmatmul.bf16.gmra.mxu0 %v791
  %v1768 = vpop.f32.mrf.mxu0
  %v1769 = vadd.f32 %v1600, %v1768
  %v1770 = vpop.f32.mrf.mxu0
  %v1771 = vadd.f32 %v1602, %v1770
  %1772 = vmatmul.bf16.gmra.mxu0 %v795
  %v1773 = vpop.f32.mrf.mxu0
  %v1774 = vadd.f32 %v1605, %v1773
  %v1775 = vpop.f32.mrf.mxu0
  %v1776 = vadd.f32 %v1607, %v1775
  %1777 = vmatmul.bf16.gmra.mxu0 %v799
  %v1778 = vpop.f32.mrf.mxu0
  %v1779 = vadd.f32 %v1610, %v1778
  %v1780 = vpop.f32.mrf.mxu0
  %v1781 = vadd.f32 %v1612, %v1780
  %1782 = vmatmul.bf16.gmra.mxu0 %v803
  %v1783 = vpop.f32.mrf.mxu0
  %v1784 = vadd.f32 %v1615, %v1783
  %v1785 = vpop.f32.mrf.mxu0
  %v1786 = vadd.f32 %v1617, %v1785
  %1787 = vmatmul.bf16.gmra.mxu0 %v807
  %v1788 = vpop.f32.mrf.mxu0
  %v1789 = vadd.f32 %v1620, %v1788
  %v1790 = vpop.f32.mrf.mxu0
  %v1791 = vadd.f32 %v1622, %v1790
  %1792 = vmatmul.bf16.gmra.mxu0 %v811
  %v1793 = vpop.f32.mrf.mxu0
  %v1794 = vadd.f32 %v1625, %v1793
  %v1795 = vpop.f32.mrf.mxu0
  %v1796 = vadd.f32 %v1627, %v1795
  %1797 = vmatmul.bf16.gmra.mxu0 %v815
  %v1798 = vpop.f32.mrf.mxu0
  %v1799 = vadd.f32 %v1630, %v1798
  %v1800 = vpop.f32.mrf.mxu0
  %v1801 = vadd.f32 %v1632, %v1800
  %1802 = vmatmul.bf16.gmra.mxu0 %v819
  %v1803 = vpop.f32.mrf.mxu0
  %v1804 = vadd.f32 %v1635, %v1803
  %v1805 = vpop.f32.mrf.mxu0
  %v1806 = vadd.f32 %v1637, %v1805
  %1807 = vmatmul.bf16.gmra.mxu0 %v823
  %v1808 = vpop.f32.mrf.mxu0
  %v1809 = vadd.f32 %v1640, %v1808
  %v1810 = vpop.f32.mrf.mxu0
  %v1811 = vadd.f32 %v1642, %v1810
  %1812 = vmatmul.bf16.gmra.mxu0 %v827
  %v1813 = vpop.f32.mrf.mxu0
  %v1814 = vadd.f32 %v1645, %v1813
  %v1815 = vpop.f32.mrf.mxu0
  %v1816 = vadd.f32 %v1647, %v1815
  %1817 = vmatmul.bf16.gmra.mxu0 %v831
  %v1818 = vpop.f32.mrf.mxu0
  %v1819 = vadd.f32 %v1650, %v1818
  %v1820 = vpop.f32.mrf.mxu0
  %v1821 = vadd.f32 %v1652, %v1820
  %1822 = vmatmul.bf16.gmra.mxu0 %v835
  %v1823 = vpop.f32.mrf.mxu0
  %v1824 = vadd.f32 %v1655, %v1823
  %v1825 = vpop.f32.mrf.mxu0
  %v1826 = vadd.f32 %v1657, %v1825
  %1827 = vmatmul.bf16.gmra.mxu0 %v839
  %v1828 = vpop.f32.mrf.mxu0
  %v1829 = vadd.f32 %v1660, %v1828
  %v1830 = vpop.f32.mrf.mxu0
  %v1831 = vadd.f32 %v1662, %v1830
  %1832 = vmatmul.bf16.gmra.mxu0 %v843
  %v1833 = vpop.f32.mrf.mxu0
  %v1834 = vadd.f32 %v1665, %v1833
  %v1835 = vpop.f32.mrf.mxu0
  %v1836 = vadd.f32 %v1667, %v1835
  %1837 = vmatmul.bf16.gmra.mxu0 %v847
  %v1838 = vpop.f32.mrf.mxu0
  %v1839 = vadd.f32 %v1670, %v1838
  %v1840 = vpop.f32.mrf.mxu0
  %v1841 = vadd.f32 %v1672, %v1840
  %1842 = vmatmul.bf16.gmra.mxu0 %v851
  %v1843 = vpop.f32.mrf.mxu0
  %v1844 = vadd.f32 %v1675, %v1843
  %v1845 = vpop.f32.mrf.mxu0
  %v1846 = vadd.f32 %v1677, %v1845
  %1847 = vdwg.mxu0
  %v1848 = vadd.f32 %v148, %v1689
  %v1849 = vadd.f32 %v149, %v1691
  %v1850 = vadd.f32 %v150, %v1694
  %v1851 = vadd.f32 %v151, %v1696
  %v1852 = vadd.f32 %v152, %v1699
  %v1853 = vadd.f32 %v153, %v1701
  %v1854 = vadd.f32 %v154, %v1704
  %v1855 = vadd.f32 %v155, %v1706
  %v1856 = vadd.f32 %v156, %v1709
  %v1857 = vadd.f32 %v157, %v1711
  %v1858 = vadd.f32 %v158, %v1714
  %v1859 = vadd.f32 %v159, %v1716
  %v1860 = vadd.f32 %v160, %v1719
  %v1861 = vadd.f32 %v161, %v1721
  %v1862 = vadd.f32 %v162, %v1724
  %v1863 = vadd.f32 %v163, %v1726
  %v1864 = vadd.f32 %v164, %v1729
  %v1865 = vadd.f32 %v165, %v1731
  %v1866 = vadd.f32 %v166, %v1734
  %v1867 = vadd.f32 %v167, %v1736
  %v1868 = vadd.f32 %v168, %v1739
  %v1869 = vadd.f32 %v169, %v1741
  %v1870 = vadd.f32 %v170, %v1744
  %v1871 = vadd.f32 %v171, %v1746
  %v1872 = vadd.f32 %v172, %v1749
  %v1873 = vadd.f32 %v173, %v1751
  %v1874 = vadd.f32 %v174, %v1754
  %v1875 = vadd.f32 %v175, %v1756
  %v1876 = vadd.f32 %v176, %v1759
  %v1877 = vadd.f32 %v177, %v1761
  %v1878 = vadd.f32 %v178, %v1764
  %v1879 = vadd.f32 %v179, %v1766
  %v1880 = vadd.f32 %v180, %v1769
  %v1881 = vadd.f32 %v181, %v1771
  %v1882 = vadd.f32 %v182, %v1774
  %v1883 = vadd.f32 %v183, %v1776
  %v1884 = vadd.f32 %v184, %v1779
  %v1885 = vadd.f32 %v185, %v1781
  %v1886 = vadd.f32 %v186, %v1784
  %v1887 = vadd.f32 %v187, %v1786
  %v1888 = vadd.f32 %v188, %v1789
  %v1889 = vadd.f32 %v189, %v1791
  %v1890 = vadd.f32 %v190, %v1794
  %v1891 = vadd.f32 %v191, %v1796
  %v1892 = vadd.f32 %v192, %v1799
  %v1893 = vadd.f32 %v193, %v1801
  %v1894 = vadd.f32 %v194, %v1804
  %v1895 = vadd.f32 %v195, %v1806
  %v1896 = vadd.f32 %v196, %v1809
  %v1897 = vadd.f32 %v197, %v1811
  %v1898 = vadd.f32 %v198, %v1814
  %v1899 = vadd.f32 %v199, %v1816
  %v1900 = vadd.f32 %v200, %v1819
  %v1901 = vadd.f32 %v201, %v1821
  %v1902 = vadd.f32 %v202, %v1824
  %v1903 = vadd.f32 %v203, %v1826
  %v1904 = vadd.f32 %v204, %v1829
  %v1905 = vadd.f32 %v205, %v1831
  %v1906 = vadd.f32 %v206, %v1834
  %v1907 = vadd.f32 %v207, %v1836
  %v1908 = vadd.f32 %v208, %v1839
  %v1909 = vadd.f32 %v209, %v1841
  %v1910 = vadd.f32 %v210, %v1844
  %v1911 = vadd.f32 %v211, %v1846
  %1912 = vst [vmem:[%s2] sm:$0xff] %v1848
  %1913 = vst [vmem:[%s2 + $0x8] sm:$0xff] %v1849
  %1914 = vst [vmem:[%s2 + $0x10] sm:$0xff] %v1850
  %1915 = vst [vmem:[%s2 + $0x18] sm:$0xff] %v1851
  %1916 = vst [vmem:[%s2 + $0x20] sm:$0xff] %v1852
  %1917 = vst [vmem:[%s2 + $0x28] sm:$0xff] %v1853
  %1918 = vst [vmem:[%s2 + $0x30] sm:$0xff] %v1854
  %1919 = vst [vmem:[%s2 + $0x38] sm:$0xff] %v1855
  %1920 = vst [vmem:[%s2 + $0x40] sm:$0xff] %v1856
  %1921 = vst [vmem:[%s2 + $0x48] sm:$0xff] %v1857
  %1922 = vst [vmem:[%s2 + $0x50] sm:$0xff] %v1858
  %1923 = vst [vmem:[%s2 + $0x58] sm:$0xff] %v1859
  %1924 = vst [vmem:[%s2 + $0x60] sm:$0xff] %v1860
  %1925 = vst [vmem:[%s2 + $0x68] sm:$0xff] %v1861
  %1926 = vst [vmem:[%s2 + $0x70] sm:$0xff] %v1862
  %1927 = vst [vmem:[%s2 + $0x78] sm:$0xff] %v1863
  %1928 = vst [vmem:[%s2 + $0x80] sm:$0xff] %v1864
  %1929 = vst [vmem:[%s2 + $0x88] sm:$0xff] %v1865
  %1930 = vst [vmem:[%s2 + $0x90] sm:$0xff] %v1866
  %1931 = vst [vmem:[%s2 + $0x98] sm:$0xff] %v1867
  %1932 = vst [vmem:[%s2 + $0xa0] sm:$0xff] %v1868
  %1933 = vst [vmem:[%s2 + $0xa8] sm:$0xff] %v1869
  %1934 = vst [vmem:[%s2 + $0xb0] sm:$0xff] %v1870
  %1935 = vst [vmem:[%s2 + $0xb8] sm:$0xff] %v1871
  %1936 = vst [vmem:[%s2 + $0xc0] sm:$0xff] %v1872
  %1937 = vst [vmem:[%s2 + $0xc8] sm:$0xff] %v1873
  %1938 = vst [vmem:[%s2 + $0xd0] sm:$0xff] %v1874
  %1939 = vst [vmem:[%s2 + $0xd8] sm:$0xff] %v1875
  %1940 = vst [vmem:[%s2 + $0xe0] sm:$0xff] %v1876
  %1941 = vst [vmem:[%s2 + $0xe8] sm:$0xff] %v1877
  %1942 = vst [vmem:[%s2 + $0xf0] sm:$0xff] %v1878
  %1943 = vst [vmem:[%s2 + $0xf8] sm:$0xff] %v1879
  %1944 = vst [vmem:[%s2 + $0x100] sm:$0xff] %v1880
  %1945 = vst [vmem:[%s2 + $0x108] sm:$0xff] %v1881
  %1946 = vst [vmem:[%s2 + $0x110] sm:$0xff] %v1882
  %1947 = vst [vmem:[%s2 + $0x118] sm:$0xff] %v1883
  %1948 = vst [vmem:[%s2 + $0x120] sm:$0xff] %v1884
  %1949 = vst [vmem:[%s2 + $0x128] sm:$0xff] %v1885
  %1950 = vst [vmem:[%s2 + $0x130] sm:$0xff] %v1886
  %1951 = vst [vmem:[%s2 + $0x138] sm:$0xff] %v1887
  %1952 = vst [vmem:[%s2 + $0x140] sm:$0xff] %v1888
  %1953 = vst [vmem:[%s2 + $0x148] sm:$0xff] %v1889
  %1954 = vst [vmem:[%s2 + $0x150] sm:$0xff] %v1890
  %1955 = vst [vmem:[%s2 + $0x158] sm:$0xff] %v1891
  %1956 = vst [vmem:[%s2 + $0x160] sm:$0xff] %v1892
  %1957 = vst [vmem:[%s2 + $0x168] sm:$0xff] %v1893
  %1958 = vst [vmem:[%s2 + $0x170] sm:$0xff] %v1894
  %1959 = vst [vmem:[%s2 + $0x178] sm:$0xff] %v1895
  %1960 = vst [vmem:[%s2 + $0x180] sm:$0xff] %v1896
  %1961 = vst [vmem:[%s2 + $0x188] sm:$0xff] %v1897
  %1962 = vst [vmem:[%s2 + $0x190] sm:$0xff] %v1898
  %1963 = vst [vmem:[%s2 + $0x198] sm:$0xff] %v1899
  %1964 = vst [vmem:[%s2 + $0x1a0] sm:$0xff] %v1900
  %1965 = vst [vmem:[%s2 + $0x1a8] sm:$0xff] %v1901
  %1966 = vst [vmem:[%s2 + $0x1b0] sm:$0xff] %v1902
  %1967 = vst [vmem:[%s2 + $0x1b8] sm:$0xff] %v1903
  %1968 = vst [vmem:[%s2 + $0x1c0] sm:$0xff] %v1904
  %1969 = vst [vmem:[%s2 + $0x1c8] sm:$0xff] %v1905
  %1970 = vst [vmem:[%s2 + $0x1d0] sm:$0xff] %v1906
  %1971 = vst [vmem:[%s2 + $0x1d8] sm:$0xff] %v1907
  %1972 = vst [vmem:[%s2 + $0x1e0] sm:$0xff] %v1908
  %1973 = vst [vmem:[%s2 + $0x1e8] sm:$0xff] %v1909
  %1974 = vst [vmem:[%s2 + $0x1f0] sm:$0xff] %v1910
  %1975 = vst [vmem:[%s2 + $0x1f8] sm:$0xff] %v1911
  // Predicated region
  $region14: #{stmgsc_forward.4} parent=0 // pred_check
    _
  $region15: #{stmgsc_forward.4} parent=0 // pred_check_branch
    %1977 = sbr.rel (0) target = $region17
  $region16: #{stmgsc_forward.4} parent=0 // pred_region
    _
  $region17: #{stmgsc_forward.4} parent=0 // pred_fallthru
    _
  // Predicated region
  $region18: #{stmgsc_forward.4} parent=0 // pred_check
    _
  $region19: #{stmgsc_forward.4} parent=0 // pred_check_branch
    %1979 = sbr.rel (0) target = $region21
  $region20: #{stmgsc_forward.4} parent=0 // pred_region
    _
  $region21: #{stmgsc_forward.4} parent=0 // pred_fallthru
    _

// kernel: stmgsc_forward.3
$region0: #{stmgsc_forward.3}
  #allocation0 [shape = 'u32[]', space=smem, size = 0x4, offset = 0x4, fixed_abs, tag = 'smem constant byte address 0x4 - core index']
  #allocation1 [shape = 'u32[72,128]{1,0:T(1,128)}', space=vmem, size = 0x9000, scoped, tag = 'internal scratch']
  #allocation2 [shape = 'f32[512,128]{1,0:T(8,128)}', space=vmem, size = 0x40000, scoped, tag = 'scratch operand']
  %s0 = inlined_call_operand.vmem [shape: bf16[512,512], index: 0, kind: input, shape index: {}]
  %s1 = inlined_call_operand.vmem [shape: bf16[512,128], index: 1, kind: input, shape index: {}]
  %s2 = inlined_call_operand.vmem [shape: bf16[128,128], index: 2, kind: input, shape index: {}]
  %s3 = inlined_call_operand.vmem [shape: bf16[512,128], index: 3, kind: output, shape index: {}]
  %s4 = sld [smem:[#allocation0]]
  $region30: #{stmgsc_forward.3} parent=0
    _
  %s6 = ssub.s32 1, %s4
  %s7 = scalar_select 0, %s6, %s4
  // Predicated region
  $region2: #{stmgsc_forward.3} parent=0 // pred_check
    _
  $region3: #{stmgsc_forward.3} parent=0 // pred_check_branch
    %9 = sbr.rel (0) target = $region5
  $region4: #{stmgsc_forward.3} parent=0 // pred_region
    _
  $region5: #{stmgsc_forward.3} parent=0 // pred_fallthru
    _
  // Predicated region
  $region6: #{stmgsc_forward.3} parent=0 // pred_check
    _
  $region7: #{stmgsc_forward.3} parent=0 // pred_check_branch
    %11 = sbr.rel (0) target = $region9
  $region8: #{stmgsc_forward.3} parent=0 // pred_region
    _
  $region9: #{stmgsc_forward.3} parent=0 // pred_fallthru
    _
  // Predicated region
  $region10: #{stmgsc_forward.3} parent=0 // pred_check
    _
  $region11: #{stmgsc_forward.3} parent=0 // pred_check_branch
    %13 = sbr.rel (0) target = $region13
  $region12: #{stmgsc_forward.3} parent=0 // pred_region
    _
  $region13: #{stmgsc_forward.3} parent=0 // pred_fallthru
    _
  %p14 = scmp.eq.s32.totalorder 0, 0
  // Predicated region
  $region14: #{stmgsc_forward.3} parent=0 // pred_check
    %p15 = pneg %p14
  $region15: #{stmgsc_forward.3} parent=0 // pred_check_branch
    %17 = sbr.rel (%p15) target = $region17
  $region16: #{stmgsc_forward.3} parent=0 // pred_region
    %18 = vst [vmem:[#allocation2] sm:$0xff] 0.0
    %19 = vst [vmem:[#allocation2 + $0x8] sm:$0xff] 0.0
    %20 = vst [vmem:[#allocation2 + $0x10] sm:$0xff] 0.0
    %21 = vst [vmem:[#allocation2 + $0x18] sm:$0xff] 0.0
    %22 = vst [vmem:[#allocation2 + $0x20] sm:$0xff] 0.0
    %23 = vst [vmem:[#allocation2 + $0x28] sm:$0xff] 0.0
    %24 = vst [vmem:[#allocation2 + $0x30] sm:$0xff] 0.0
    %25 = vst [vmem:[#allocation2 + $0x38] sm:$0xff] 0.0
    %26 = vst [vmem:[#allocation2 + $0x40] sm:$0xff] 0.0
    %27 = vst [vmem:[#allocation2 + $0x48] sm:$0xff] 0.0
    %28 = vst [vmem:[#allocation2 + $0x50] sm:$0xff] 0.0
    %29 = vst [vmem:[#allocation2 + $0x58] sm:$0xff] 0.0
    %30 = vst [vmem:[#allocation2 + $0x60] sm:$0xff] 0.0
    %31 = vst [vmem:[#allocation2 + $0x68] sm:$0xff] 0.0
    %32 = vst [vmem:[#allocation2 + $0x70] sm:$0xff] 0.0
    %33 = vst [vmem:[#allocation2 + $0x78] sm:$0xff] 0.0
    %34 = vst [vmem:[#allocation2 + $0x80] sm:$0xff] 0.0
    %35 = vst [vmem:[#allocation2 + $0x88] sm:$0xff] 0.0
    %36 = vst [vmem:[#allocation2 + $0x90] sm:$0xff] 0.0
    %37 = vst [vmem:[#allocation2 + $0x98] sm:$0xff] 0.0
    %38 = vst [vmem:[#allocation2 + $0xa0] sm:$0xff] 0.0
    %39 = vst [vmem:[#allocation2 + $0xa8] sm:$0xff] 0.0
    %40 = vst [vmem:[#allocation2 + $0xb0] sm:$0xff] 0.0
    %41 = vst [vmem:[#allocation2 + $0xb8] sm:$0xff] 0.0
    %42 = vst [vmem:[#allocation2 + $0xc0] sm:$0xff] 0.0
    %43 = vst [vmem:[#allocation2 + $0xc8] sm:$0xff] 0.0
    %44 = vst [vmem:[#allocation2 + $0xd0] sm:$0xff] 0.0
    %45 = vst [vmem:[#allocation2 + $0xd8] sm:$0xff] 0.0
    %46 = vst [vmem:[#allocation2 + $0xe0] sm:$0xff] 0.0
    %47 = vst [vmem:[#allocation2 + $0xe8] sm:$0xff] 0.0
    %48 = vst [vmem:[#allocation2 + $0xf0] sm:$0xff] 0.0
    %49 = vst [vmem:[#allocation2 + $0xf8] sm:$0xff] 0.0
    %50 = vst [vmem:[#allocation2 + $0x100] sm:$0xff] 0.0
    %51 = vst [vmem:[#allocation2 + $0x108] sm:$0xff] 0.0
    %52 = vst [vmem:[#allocation2 + $0x110] sm:$0xff] 0.0
    %53 = vst [vmem:[#allocation2 + $0x118] sm:$0xff] 0.0
    %54 = vst [vmem:[#allocation2 + $0x120] sm:$0xff] 0.0
    %55 = vst [vmem:[#allocation2 + $0x128] sm:$0xff] 0.0
    %56 = vst [vmem:[#allocation2 + $0x130] sm:$0xff] 0.0
    %57 = vst [vmem:[#allocation2 + $0x138] sm:$0xff] 0.0
    %58 = vst [vmem:[#allocation2 + $0x140] sm:$0xff] 0.0
    %59 = vst [vmem:[#allocation2 + $0x148] sm:$0xff] 0.0
    %60 = vst [vmem:[#allocation2 + $0x150] sm:$0xff] 0.0
    %61 = vst [vmem:[#allocation2 + $0x158] sm:$0xff] 0.0
    %62 = vst [vmem:[#allocation2 + $0x160] sm:$0xff] 0.0
    %63 = vst [vmem:[#allocation2 + $0x168] sm:$0xff] 0.0
    %64 = vst [vmem:[#allocation2 + $0x170] sm:$0xff] 0.0
    %65 = vst [vmem:[#allocation2 + $0x178] sm:$0xff] 0.0
    %66 = vst [vmem:[#allocation2 + $0x180] sm:$0xff] 0.0
    %67 = vst [vmem:[#allocation2 + $0x188] sm:$0xff] 0.0
    %68 = vst [vmem:[#allocation2 + $0x190] sm:$0xff] 0.0
    %69 = vst [vmem:[#allocation2 + $0x198] sm:$0xff] 0.0
    %70 = vst [vmem:[#allocation2 + $0x1a0] sm:$0xff] 0.0
    %71 = vst [vmem:[#allocation2 + $0x1a8] sm:$0xff] 0.0
    %72 = vst [vmem:[#allocation2 + $0x1b0] sm:$0xff] 0.0
    %73 = vst [vmem:[#allocation2 + $0x1b8] sm:$0xff] 0.0
    %74 = vst [vmem:[#allocation2 + $0x1c0] sm:$0xff] 0.0
    %75 = vst [vmem:[#allocation2 + $0x1c8] sm:$0xff] 0.0
    %76 = vst [vmem:[#allocation2 + $0x1d0] sm:$0xff] 0.0
    %77 = vst [vmem:[#allocation2 + $0x1d8] sm:$0xff] 0.0
    %78 = vst [vmem:[#allocation2 + $0x1e0] sm:$0xff] 0.0
    %79 = vst [vmem:[#allocation2 + $0x1e8] sm:$0xff] 0.0
    %80 = vst [vmem:[#allocation2 + $0x1f0] sm:$0xff] 0.0
    %81 = vst [vmem:[#allocation2 + $0x1f8] sm:$0xff] 0.0
  $region17: #{stmgsc_forward.3} parent=0 // pred_fallthru
    _
  %s82 = smul.u32 0, 512
  %s83 = sshra.s32 %s82, 3
  %s84 = sand.u32 %s82, 7
  %s85 = smul.addr %s83, 4
  %s86 = scalar_lea.vmem %s1, %s85
  %v87 = vld [vmem:[%s86] sm:$0xf]
  %v88 = vld [vmem:[%s86 + $0x4] sm:$0xf]
  %v89 = vld [vmem:[%s86 + $0x8] sm:$0xf]
  %v90 = vld [vmem:[%s86 + $0xc] sm:$0xf]
  %v91 = vld [vmem:[%s86 + $0x10] sm:$0xf]
  %v92 = vld [vmem:[%s86 + $0x14] sm:$0xf]
  %v93 = vld [vmem:[%s86 + $0x18] sm:$0xf]
  %v94 = vld [vmem:[%s86 + $0x1c] sm:$0xf]
  %v95 = vld [vmem:[%s86 + $0x20] sm:$0xf]
  %v96 = vld [vmem:[%s86 + $0x24] sm:$0xf]
  %v97 = vld [vmem:[%s86 + $0x28] sm:$0xf]
  %v98 = vld [vmem:[%s86 + $0x2c] sm:$0xf]
  %v99 = vld [vmem:[%s86 + $0x30] sm:$0xf]
  %v100 = vld [vmem:[%s86 + $0x34] sm:$0xf]
  %v101 = vld [vmem:[%s86 + $0x38] sm:$0xf]
  %v102 = vld [vmem:[%s86 + $0x3c] sm:$0xf]
  %v103 = vld [vmem:[%s86 + $0x40] sm:$0xf]
  %v104 = vld [vmem:[%s86 + $0x44] sm:$0xf]
  %v105 = vld [vmem:[%s86 + $0x48] sm:$0xf]
  %v106 = vld [vmem:[%s86 + $0x4c] sm:$0xf]
  %v107 = vld [vmem:[%s86 + $0x50] sm:$0xf]
  %v108 = vld [vmem:[%s86 + $0x54] sm:$0xf]
  %v109 = vld [vmem:[%s86 + $0x58] sm:$0xf]
  %v110 = vld [vmem:[%s86 + $0x5c] sm:$0xf]
  %v111 = vld [vmem:[%s86 + $0x60] sm:$0xf]
  %v112 = vld [vmem:[%s86 + $0x64] sm:$0xf]
  %v113 = vld [vmem:[%s86 + $0x68] sm:$0xf]
  %v114 = vld [vmem:[%s86 + $0x6c] sm:$0xf]
  %v115 = vld [vmem:[%s86 + $0x70] sm:$0xf]
  %v116 = vld [vmem:[%s86 + $0x74] sm:$0xf]
  %v117 = vld [vmem:[%s86 + $0x78] sm:$0xf]
  %v118 = vld [vmem:[%s86 + $0x7c] sm:$0xf]
  %v119 = vld [vmem:[%s86 + $0x80] sm:$0xf]
  %v120 = vld [vmem:[%s86 + $0x84] sm:$0xf]
  %v121 = vld [vmem:[%s86 + $0x88] sm:$0xf]
  %v122 = vld [vmem:[%s86 + $0x8c] sm:$0xf]
  %v123 = vld [vmem:[%s86 + $0x90] sm:$0xf]
  %v124 = vld [vmem:[%s86 + $0x94] sm:$0xf]
  %v125 = vld [vmem:[%s86 + $0x98] sm:$0xf]
  %v126 = vld [vmem:[%s86 + $0x9c] sm:$0xf]
  %v127 = vld [vmem:[%s86 + $0xa0] sm:$0xf]
  %v128 = vld [vmem:[%s86 + $0xa4] sm:$0xf]
  %v129 = vld [vmem:[%s86 + $0xa8] sm:$0xf]
  %v130 = vld [vmem:[%s86 + $0xac] sm:$0xf]
  %v131 = vld [vmem:[%s86 + $0xb0] sm:$0xf]
  %v132 = vld [vmem:[%s86 + $0xb4] sm:$0xf]
  %v133 = vld [vmem:[%s86 + $0xb8] sm:$0xf]
  %v134 = vld [vmem:[%s86 + $0xbc] sm:$0xf]
  %v135 = vld [vmem:[%s86 + $0xc0] sm:$0xf]
  %v136 = vld [vmem:[%s86 + $0xc4] sm:$0xf]
  %v137 = vld [vmem:[%s86 + $0xc8] sm:$0xf]
  %v138 = vld [vmem:[%s86 + $0xcc] sm:$0xf]
  %v139 = vld [vmem:[%s86 + $0xd0] sm:$0xf]
  %v140 = vld [vmem:[%s86 + $0xd4] sm:$0xf]
  %v141 = vld [vmem:[%s86 + $0xd8] sm:$0xf]
  %v142 = vld [vmem:[%s86 + $0xdc] sm:$0xf]
  %v143 = vld [vmem:[%s86 + $0xe0] sm:$0xf]
  %v144 = vld [vmem:[%s86 + $0xe4] sm:$0xf]
  %v145 = vld [vmem:[%s86 + $0xe8] sm:$0xf]
  %v146 = vld [vmem:[%s86 + $0xec] sm:$0xf]
  %v147 = vld [vmem:[%s86 + $0xf0] sm:$0xf]
  %v148 = vld [vmem:[%s86 + $0xf4] sm:$0xf]
  %v149 = vld [vmem:[%s86 + $0xf8] sm:$0xf]
  %v150 = vld [vmem:[%s86 + $0xfc] sm:$0xf]
  %v151 = vld [vmem:[#allocation2] sm:$0xff]
  %v152 = vld [vmem:[#allocation2 + $0x8] sm:$0xff]
  %v153 = vld [vmem:[#allocation2 + $0x10] sm:$0xff]
  %v154 = vld [vmem:[#allocation2 + $0x18] sm:$0xff]
  %v155 = vld [vmem:[#allocation2 + $0x20] sm:$0xff]
  %v156 = vld [vmem:[#allocation2 + $0x28] sm:$0xff]
  %v157 = vld [vmem:[#allocation2 + $0x30] sm:$0xff]
  %v158 = vld [vmem:[#allocation2 + $0x38] sm:$0xff]
  %v159 = vld [vmem:[#allocation2 + $0x40] sm:$0xff]
  %v160 = vld [vmem:[#allocation2 + $0x48] sm:$0xff]
  %v161 = vld [vmem:[#allocation2 + $0x50] sm:$0xff]
  %v162 = vld [vmem:[#allocation2 + $0x58] sm:$0xff]
  %v163 = vld [vmem:[#allocation2 + $0x60] sm:$0xff]
  %v164 = vld [vmem:[#allocation2 + $0x68] sm:$0xff]
  %v165 = vld [vmem:[#allocation2 + $0x70] sm:$0xff]
  %v166 = vld [vmem:[#allocation2 + $0x78] sm:$0xff]
  %v167 = vld [vmem:[#allocation2 + $0x80] sm:$0xff]
  %v168 = vld [vmem:[#allocation2 + $0x88] sm:$0xff]
  %v169 = vld [vmem:[#allocation2 + $0x90] sm:$0xff]
  %v170 = vld [vmem:[#allocation2 + $0x98] sm:$0xff]
  %v171 = vld [vmem:[#allocation2 + $0xa0] sm:$0xff]
  %v172 = vld [vmem:[#allocation2 + $0xa8] sm:$0xff]
  %v173 = vld [vmem:[#allocation2 + $0xb0] sm:$0xff]
  %v174 = vld [vmem:[#allocation2 + $0xb8] sm:$0xff]
  %v175 = vld [vmem:[#allocation2 + $0xc0] sm:$0xff]
  %v176 = vld [vmem:[#allocation2 + $0xc8] sm:$0xff]
  %v177 = vld [vmem:[#allocation2 + $0xd0] sm:$0xff]
  %v178 = vld [vmem:[#allocation2 + $0xd8] sm:$0xff]
  %v179 = vld [vmem:[#allocation2 + $0xe0] sm:$0xff]
  %v180 = vld [vmem:[#allocation2 + $0xe8] sm:$0xff]
  %v181 = vld [vmem:[#allocation2 + $0xf0] sm:$0xff]
  %v182 = vld [vmem:[#allocation2 + $0xf8] sm:$0xff]
  %v183 = vld [vmem:[#allocation2 + $0x100] sm:$0xff]
  %v184 = vld [vmem:[#allocation2 + $0x108] sm:$0xff]
  %v185 = vld [vmem:[#allocation2 + $0x110] sm:$0xff]
  %v186 = vld [vmem:[#allocation2 + $0x118] sm:$0xff]
  %v187 = vld [vmem:[#allocation2 + $0x120] sm:$0xff]
  %v188 = vld [vmem:[#allocation2 + $0x128] sm:$0xff]
  %v189 = vld [vmem:[#allocation2 + $0x130] sm:$0xff]
  %v190 = vld [vmem:[#allocation2 + $0x138] sm:$0xff]
  %v191 = vld [vmem:[#allocation2 + $0x140] sm:$0xff]
  %v192 = vld [vmem:[#allocation2 + $0x148] sm:$0xff]
  %v193 = vld [vmem:[#allocation2 + $0x150] sm:$0xff]
  %v194 = vld [vmem:[#allocation2 + $0x158] sm:$0xff]
  %v195 = vld [vmem:[#allocation2 + $0x160] sm:$0xff]
  %v196 = vld [vmem:[#allocation2 + $0x168] sm:$0xff]
  %v197 = vld [vmem:[#allocation2 + $0x170] sm:$0xff]
  %v198 = vld [vmem:[#allocation2 + $0x178] sm:$0xff]
  %v199 = vld [vmem:[#allocation2 + $0x180] sm:$0xff]
  %v200 = vld [vmem:[#allocation2 + $0x188] sm:$0xff]
  %v201 = vld [vmem:[#allocation2 + $0x190] sm:$0xff]
  %v202 = vld [vmem:[#allocation2 + $0x198] sm:$0xff]
  %v203 = vld [vmem:[#allocation2 + $0x1a0] sm:$0xff]
  %v204 = vld [vmem:[#allocation2 + $0x1a8] sm:$0xff]
  %v205 = vld [vmem:[#allocation2 + $0x1b0] sm:$0xff]
  %v206 = vld [vmem:[#allocation2 + $0x1b8] sm:$0xff]
  %v207 = vld [vmem:[#allocation2 + $0x1c0] sm:$0xff]
  %v208 = vld [vmem:[#allocation2 + $0x1c8] sm:$0xff]
  %v209 = vld [vmem:[#allocation2 + $0x1d0] sm:$0xff]
  %v210 = vld [vmem:[#allocation2 + $0x1d8] sm:$0xff]
  %v211 = vld [vmem:[#allocation2 + $0x1e0] sm:$0xff]
  %v212 = vld [vmem:[#allocation2 + $0x1e8] sm:$0xff]
  %v213 = vld [vmem:[#allocation2 + $0x1f0] sm:$0xff]
  %v214 = vld [vmem:[#allocation2 + $0x1f8] sm:$0xff]
  %v215 = vld [vmem:[%s0] sm:$0xff]
  %v216 = vld [vmem:[%s0 + $0x8] sm:$0xff]
  %v217 = vld [vmem:[%s0 + $0x10] sm:$0xff]
  %v218 = vld [vmem:[%s0 + $0x18] sm:$0xff]
  %v219 = vld [vmem:[%s0 + $0x20] sm:$0xff]
  %v220 = vld [vmem:[%s0 + $0x28] sm:$0xff]
  %v221 = vld [vmem:[%s0 + $0x30] sm:$0xff]
  %v222 = vld [vmem:[%s0 + $0x38] sm:$0xff]
  %v223 = vld [vmem:[%s0 + $0x40] sm:$0xff]
  %v224 = vld [vmem:[%s0 + $0x48] sm:$0xff]
  %v225 = vld [vmem:[%s0 + $0x50] sm:$0xff]
  %v226 = vld [vmem:[%s0 + $0x58] sm:$0xff]
  %v227 = vld [vmem:[%s0 + $0x60] sm:$0xff]
  %v228 = vld [vmem:[%s0 + $0x68] sm:$0xff]
  %v229 = vld [vmem:[%s0 + $0x70] sm:$0xff]
  %v230 = vld [vmem:[%s0 + $0x78] sm:$0xff]
  %v231 = vld [vmem:[%s0 + $0x80] sm:$0xff]
  %v232 = vld [vmem:[%s0 + $0x88] sm:$0xff]
  %v233 = vld [vmem:[%s0 + $0x90] sm:$0xff]
  %v234 = vld [vmem:[%s0 + $0x98] sm:$0xff]
  %v235 = vld [vmem:[%s0 + $0xa0] sm:$0xff]
  %v236 = vld [vmem:[%s0 + $0xa8] sm:$0xff]
  %v237 = vld [vmem:[%s0 + $0xb0] sm:$0xff]
  %v238 = vld [vmem:[%s0 + $0xb8] sm:$0xff]
  %v239 = vld [vmem:[%s0 + $0xc0] sm:$0xff]
  %v240 = vld [vmem:[%s0 + $0xc8] sm:$0xff]
  %v241 = vld [vmem:[%s0 + $0xd0] sm:$0xff]
  %v242 = vld [vmem:[%s0 + $0xd8] sm:$0xff]
  %v243 = vld [vmem:[%s0 + $0xe0] sm:$0xff]
  %v244 = vld [vmem:[%s0 + $0xe8] sm:$0xff]
  %v245 = vld [vmem:[%s0 + $0xf0] sm:$0xff]
  %v246 = vld [vmem:[%s0 + $0xf8] sm:$0xff]
  %v247 = vld [vmem:[%s0 + $0x100] sm:$0xff]
  %v248 = vld [vmem:[%s0 + $0x108] sm:$0xff]
  %v249 = vld [vmem:[%s0 + $0x110] sm:$0xff]
  %v250 = vld [vmem:[%s0 + $0x118] sm:$0xff]
  %v251 = vld [vmem:[%s0 + $0x120] sm:$0xff]
  %v252 = vld [vmem:[%s0 + $0x128] sm:$0xff]
  %v253 = vld [vmem:[%s0 + $0x130] sm:$0xff]
  %v254 = vld [vmem:[%s0 + $0x138] sm:$0xff]
  %v255 = vld [vmem:[%s0 + $0x140] sm:$0xff]
  %v256 = vld [vmem:[%s0 + $0x148] sm:$0xff]
  %v257 = vld [vmem:[%s0 + $0x150] sm:$0xff]
  %v258 = vld [vmem:[%s0 + $0x158] sm:$0xff]
  %v259 = vld [vmem:[%s0 + $0x160] sm:$0xff]
  %v260 = vld [vmem:[%s0 + $0x168] sm:$0xff]
  %v261 = vld [vmem:[%s0 + $0x170] sm:$0xff]
  %v262 = vld [vmem:[%s0 + $0x178] sm:$0xff]
  %v263 = vld [vmem:[%s0 + $0x180] sm:$0xff]
  %v264 = vld [vmem:[%s0 + $0x188] sm:$0xff]
  %v265 = vld [vmem:[%s0 + $0x190] sm:$0xff]
  %v266 = vld [vmem:[%s0 + $0x198] sm:$0xff]
  %v267 = vld [vmem:[%s0 + $0x1a0] sm:$0xff]
  %v268 = vld [vmem:[%s0 + $0x1a8] sm:$0xff]
  %v269 = vld [vmem:[%s0 + $0x1b0] sm:$0xff]
  %v270 = vld [vmem:[%s0 + $0x1b8] sm:$0xff]
  %v271 = vld [vmem:[%s0 + $0x1c0] sm:$0xff]
  %v272 = vld [vmem:[%s0 + $0x1c8] sm:$0xff]
  %v273 = vld [vmem:[%s0 + $0x1d0] sm:$0xff]
  %v274 = vld [vmem:[%s0 + $0x1d8] sm:$0xff]
  %v275 = vld [vmem:[%s0 + $0x1e0] sm:$0xff]
  %v276 = vld [vmem:[%s0 + $0x1e8] sm:$0xff]
  %v277 = vld [vmem:[%s0 + $0x1f0] sm:$0xff]
  %v278 = vld [vmem:[%s0 + $0x1f8] sm:$0xff]
  %v279 = vld [vmem:[%s0 + $0x200] sm:$0xff]
  %v280 = vld [vmem:[%s0 + $0x208] sm:$0xff]
  %v281 = vld [vmem:[%s0 + $0x210] sm:$0xff]
  %v282 = vld [vmem:[%s0 + $0x218] sm:$0xff]
  %v283 = vld [vmem:[%s0 + $0x220] sm:$0xff]
  %v284 = vld [vmem:[%s0 + $0x228] sm:$0xff]
  %v285 = vld [vmem:[%s0 + $0x230] sm:$0xff]
  %v286 = vld [vmem:[%s0 + $0x238] sm:$0xff]
  %v287 = vld [vmem:[%s0 + $0x240] sm:$0xff]
  %v288 = vld [vmem:[%s0 + $0x248] sm:$0xff]
  %v289 = vld [vmem:[%s0 + $0x250] sm:$0xff]
  %v290 = vld [vmem:[%s0 + $0x258] sm:$0xff]
  %v291 = vld [vmem:[%s0 + $0x260] sm:$0xff]
  %v292 = vld [vmem:[%s0 + $0x268] sm:$0xff]
  %v293 = vld [vmem:[%s0 + $0x270] sm:$0xff]
  %v294 = vld [vmem:[%s0 + $0x278] sm:$0xff]
  %v295 = vld [vmem:[%s0 + $0x280] sm:$0xff]
  %v296 = vld [vmem:[%s0 + $0x288] sm:$0xff]
  %v297 = vld [vmem:[%s0 + $0x290] sm:$0xff]
  %v298 = vld [vmem:[%s0 + $0x298] sm:$0xff]
  %v299 = vld [vmem:[%s0 + $0x2a0] sm:$0xff]
  %v300 = vld [vmem:[%s0 + $0x2a8] sm:$0xff]
  %v301 = vld [vmem:[%s0 + $0x2b0] sm:$0xff]
  %v302 = vld [vmem:[%s0 + $0x2b8] sm:$0xff]
  %v303 = vld [vmem:[%s0 + $0x2c0] sm:$0xff]
  %v304 = vld [vmem:[%s0 + $0x2c8] sm:$0xff]
  %v305 = vld [vmem:[%s0 + $0x2d0] sm:$0xff]
  %v306 = vld [vmem:[%s0 + $0x2d8] sm:$0xff]
  %v307 = vld [vmem:[%s0 + $0x2e0] sm:$0xff]
  %v308 = vld [vmem:[%s0 + $0x2e8] sm:$0xff]
  %v309 = vld [vmem:[%s0 + $0x2f0] sm:$0xff]
  %v310 = vld [vmem:[%s0 + $0x2f8] sm:$0xff]
  %v311 = vld [vmem:[%s0 + $0x300] sm:$0xff]
  %v312 = vld [vmem:[%s0 + $0x308] sm:$0xff]
  %v313 = vld [vmem:[%s0 + $0x310] sm:$0xff]
  %v314 = vld [vmem:[%s0 + $0x318] sm:$0xff]
  %v315 = vld [vmem:[%s0 + $0x320] sm:$0xff]
  %v316 = vld [vmem:[%s0 + $0x328] sm:$0xff]
  %v317 = vld [vmem:[%s0 + $0x330] sm:$0xff]
  %v318 = vld [vmem:[%s0 + $0x338] sm:$0xff]
  %v319 = vld [vmem:[%s0 + $0x340] sm:$0xff]
  %v320 = vld [vmem:[%s0 + $0x348] sm:$0xff]
  %v321 = vld [vmem:[%s0 + $0x350] sm:$0xff]
  %v322 = vld [vmem:[%s0 + $0x358] sm:$0xff]
  %v323 = vld [vmem:[%s0 + $0x360] sm:$0xff]
  %v324 = vld [vmem:[%s0 + $0x368] sm:$0xff]
  %v325 = vld [vmem:[%s0 + $0x370] sm:$0xff]
  %v326 = vld [vmem:[%s0 + $0x378] sm:$0xff]
  %v327 = vld [vmem:[%s0 + $0x380] sm:$0xff]
  %v328 = vld [vmem:[%s0 + $0x388] sm:$0xff]
  %v329 = vld [vmem:[%s0 + $0x390] sm:$0xff]
  %v330 = vld [vmem:[%s0 + $0x398] sm:$0xff]
  %v331 = vld [vmem:[%s0 + $0x3a0] sm:$0xff]
  %v332 = vld [vmem:[%s0 + $0x3a8] sm:$0xff]
  %v333 = vld [vmem:[%s0 + $0x3b0] sm:$0xff]
  %v334 = vld [vmem:[%s0 + $0x3b8] sm:$0xff]
  %v335 = vld [vmem:[%s0 + $0x3c0] sm:$0xff]
  %v336 = vld [vmem:[%s0 + $0x3c8] sm:$0xff]
  %v337 = vld [vmem:[%s0 + $0x3d0] sm:$0xff]
  %v338 = vld [vmem:[%s0 + $0x3d8] sm:$0xff]
  %v339 = vld [vmem:[%s0 + $0x3e0] sm:$0xff]
  %v340 = vld [vmem:[%s0 + $0x3e8] sm:$0xff]
  %v341 = vld [vmem:[%s0 + $0x3f0] sm:$0xff]
  %v342 = vld [vmem:[%s0 + $0x3f8] sm:$0xff]
  %v471 = vunpack.c.l.b16 %v215
  %v472 = vunpack.c.h.b16 %v215
  %v473 = vunpack.c.l.b16 %v216
  %v474 = vunpack.c.h.b16 %v216
  %v475 = vunpack.c.l.b16 %v217
  %v476 = vunpack.c.h.b16 %v217
  %v477 = vunpack.c.l.b16 %v218
  %v478 = vunpack.c.h.b16 %v218
  %v479 = vunpack.c.l.b16 %v219
  %v480 = vunpack.c.h.b16 %v219
  %v481 = vunpack.c.l.b16 %v220
  %v482 = vunpack.c.h.b16 %v220
  %v483 = vunpack.c.l.b16 %v221
  %v484 = vunpack.c.h.b16 %v221
  %v485 = vunpack.c.l.b16 %v222
  %v486 = vunpack.c.h.b16 %v222
  %v487 = vunpack.c.l.b16 %v223
  %v488 = vunpack.c.h.b16 %v223
  %v489 = vunpack.c.l.b16 %v224
  %v490 = vunpack.c.h.b16 %v224
  %v491 = vunpack.c.l.b16 %v225
  %v492 = vunpack.c.h.b16 %v225
  %v493 = vunpack.c.l.b16 %v226
  %v494 = vunpack.c.h.b16 %v226
  %v495 = vunpack.c.l.b16 %v227
  %v496 = vunpack.c.h.b16 %v227
  %v497 = vunpack.c.l.b16 %v228
  %v498 = vunpack.c.h.b16 %v228
  %v499 = vunpack.c.l.b16 %v229
  %v500 = vunpack.c.h.b16 %v229
  %v501 = vunpack.c.l.b16 %v230
  %v502 = vunpack.c.h.b16 %v230
  %v503 = vunpack.c.l.b16 %v231
  %v504 = vunpack.c.h.b16 %v231
  %v505 = vunpack.c.l.b16 %v232
  %v506 = vunpack.c.h.b16 %v232
  %v507 = vunpack.c.l.b16 %v233
  %v508 = vunpack.c.h.b16 %v233
  %v509 = vunpack.c.l.b16 %v234
  %v510 = vunpack.c.h.b16 %v234
  %v511 = vunpack.c.l.b16 %v235
  %v512 = vunpack.c.h.b16 %v235
  %v513 = vunpack.c.l.b16 %v236
  %v514 = vunpack.c.h.b16 %v236
  %v515 = vunpack.c.l.b16 %v237
  %v516 = vunpack.c.h.b16 %v237
  %v517 = vunpack.c.l.b16 %v238
  %v518 = vunpack.c.h.b16 %v238
  %v519 = vunpack.c.l.b16 %v239
  %v520 = vunpack.c.h.b16 %v239
  %v521 = vunpack.c.l.b16 %v240
  %v522 = vunpack.c.h.b16 %v240
  %v523 = vunpack.c.l.b16 %v241
  %v524 = vunpack.c.h.b16 %v241
  %v525 = vunpack.c.l.b16 %v242
  %v526 = vunpack.c.h.b16 %v242
  %v527 = vunpack.c.l.b16 %v243
  %v528 = vunpack.c.h.b16 %v243
  %v529 = vunpack.c.l.b16 %v244
  %v530 = vunpack.c.h.b16 %v244
  %v531 = vunpack.c.l.b16 %v245
  %v532 = vunpack.c.h.b16 %v245
  %v533 = vunpack.c.l.b16 %v246
  %v534 = vunpack.c.h.b16 %v246
  %v535 = vunpack.c.l.b16 %v247
  %v536 = vunpack.c.h.b16 %v247
  %v537 = vunpack.c.l.b16 %v248
  %v538 = vunpack.c.h.b16 %v248
  %v539 = vunpack.c.l.b16 %v249
  %v540 = vunpack.c.h.b16 %v249
  %v541 = vunpack.c.l.b16 %v250
  %v542 = vunpack.c.h.b16 %v250
  %v543 = vunpack.c.l.b16 %v251
  %v544 = vunpack.c.h.b16 %v251
  %v545 = vunpack.c.l.b16 %v252
  %v546 = vunpack.c.h.b16 %v252
  %v547 = vunpack.c.l.b16 %v253
  %v548 = vunpack.c.h.b16 %v253
  %v549 = vunpack.c.l.b16 %v254
  %v550 = vunpack.c.h.b16 %v254
  %v551 = vunpack.c.l.b16 %v255
  %v552 = vunpack.c.h.b16 %v255
  %v553 = vunpack.c.l.b16 %v256
  %v554 = vunpack.c.h.b16 %v256
  %v555 = vunpack.c.l.b16 %v257
  %v556 = vunpack.c.h.b16 %v257
  %v557 = vunpack.c.l.b16 %v258
  %v558 = vunpack.c.h.b16 %v258
  %v559 = vunpack.c.l.b16 %v259
  %v560 = vunpack.c.h.b16 %v259
  %v561 = vunpack.c.l.b16 %v260
  %v562 = vunpack.c.h.b16 %v260
  %v563 = vunpack.c.l.b16 %v261
  %v564 = vunpack.c.h.b16 %v261
  %v565 = vunpack.c.l.b16 %v262
  %v566 = vunpack.c.h.b16 %v262
  %v567 = vunpack.c.l.b16 %v263
  %v568 = vunpack.c.h.b16 %v263
  %v569 = vunpack.c.l.b16 %v264
  %v570 = vunpack.c.h.b16 %v264
  %v571 = vunpack.c.l.b16 %v265
  %v572 = vunpack.c.h.b16 %v265
  %v573 = vunpack.c.l.b16 %v266
  %v574 = vunpack.c.h.b16 %v266
  %v575 = vunpack.c.l.b16 %v267
  %v576 = vunpack.c.h.b16 %v267
  %v577 = vunpack.c.l.b16 %v268
  %v578 = vunpack.c.h.b16 %v268
  %v579 = vunpack.c.l.b16 %v269
  %v580 = vunpack.c.h.b16 %v269
  %v581 = vunpack.c.l.b16 %v270
  %v582 = vunpack.c.h.b16 %v270
  %v583 = vunpack.c.l.b16 %v271
  %v584 = vunpack.c.h.b16 %v271
  %v585 = vunpack.c.l.b16 %v272
  %v586 = vunpack.c.h.b16 %v272
  %v587 = vunpack.c.l.b16 %v273
  %v588 = vunpack.c.h.b16 %v273
  %v589 = vunpack.c.l.b16 %v274
  %v590 = vunpack.c.h.b16 %v274
  %v591 = vunpack.c.l.b16 %v275
  %v592 = vunpack.c.h.b16 %v275
  %v593 = vunpack.c.l.b16 %v276
  %v594 = vunpack.c.h.b16 %v276
  %v595 = vunpack.c.l.b16 %v277
  %v596 = vunpack.c.h.b16 %v277
  %v597 = vunpack.c.l.b16 %v278
  %v598 = vunpack.c.h.b16 %v278
  %v599 = vunpack.c.l.b16 %v279
  %v600 = vunpack.c.h.b16 %v279
  %v601 = vunpack.c.l.b16 %v280
  %v602 = vunpack.c.h.b16 %v280
  %v603 = vunpack.c.l.b16 %v281
  %v604 = vunpack.c.h.b16 %v281
  %v605 = vunpack.c.l.b16 %v282
  %v606 = vunpack.c.h.b16 %v282
  %v607 = vunpack.c.l.b16 %v283
  %v608 = vunpack.c.h.b16 %v283
  %v609 = vunpack.c.l.b16 %v284
  %v610 = vunpack.c.h.b16 %v284
  %v611 = vunpack.c.l.b16 %v285
  %v612 = vunpack.c.h.b16 %v285
  %v613 = vunpack.c.l.b16 %v286
  %v614 = vunpack.c.h.b16 %v286
  %v615 = vunpack.c.l.b16 %v287
  %v616 = vunpack.c.h.b16 %v287
  %v617 = vunpack.c.l.b16 %v288
  %v618 = vunpack.c.h.b16 %v288
  %v619 = vunpack.c.l.b16 %v289
  %v620 = vunpack.c.h.b16 %v289
  %v621 = vunpack.c.l.b16 %v290
  %v622 = vunpack.c.h.b16 %v290
  %v623 = vunpack.c.l.b16 %v291
  %v624 = vunpack.c.h.b16 %v291
  %v625 = vunpack.c.l.b16 %v292
  %v626 = vunpack.c.h.b16 %v292
  %v627 = vunpack.c.l.b16 %v293
  %v628 = vunpack.c.h.b16 %v293
  %v629 = vunpack.c.l.b16 %v294
  %v630 = vunpack.c.h.b16 %v294
  %v631 = vunpack.c.l.b16 %v295
  %v632 = vunpack.c.h.b16 %v295
  %v633 = vunpack.c.l.b16 %v296
  %v634 = vunpack.c.h.b16 %v296
  %v635 = vunpack.c.l.b16 %v297
  %v636 = vunpack.c.h.b16 %v297
  %v637 = vunpack.c.l.b16 %v298
  %v638 = vunpack.c.h.b16 %v298
  %v639 = vunpack.c.l.b16 %v299
  %v640 = vunpack.c.h.b16 %v299
  %v641 = vunpack.c.l.b16 %v300
  %v642 = vunpack.c.h.b16 %v300
  %v643 = vunpack.c.l.b16 %v301
  %v644 = vunpack.c.h.b16 %v301
  %v645 = vunpack.c.l.b16 %v302
  %v646 = vunpack.c.h.b16 %v302
  %v647 = vunpack.c.l.b16 %v303
  %v648 = vunpack.c.h.b16 %v303
  %v649 = vunpack.c.l.b16 %v304
  %v650 = vunpack.c.h.b16 %v304
  %v651 = vunpack.c.l.b16 %v305
  %v652 = vunpack.c.h.b16 %v305
  %v653 = vunpack.c.l.b16 %v306
  %v654 = vunpack.c.h.b16 %v306
  %v655 = vunpack.c.l.b16 %v307
  %v656 = vunpack.c.h.b16 %v307
  %v657 = vunpack.c.l.b16 %v308
  %v658 = vunpack.c.h.b16 %v308
  %v659 = vunpack.c.l.b16 %v309
  %v660 = vunpack.c.h.b16 %v309
  %v661 = vunpack.c.l.b16 %v310
  %v662 = vunpack.c.h.b16 %v310
  %v663 = vunpack.c.l.b16 %v311
  %v664 = vunpack.c.h.b16 %v311
  %v665 = vunpack.c.l.b16 %v312
  %v666 = vunpack.c.h.b16 %v312
  %v667 = vunpack.c.l.b16 %v313
  %v668 = vunpack.c.h.b16 %v313
  %v669 = vunpack.c.l.b16 %v314
  %v670 = vunpack.c.h.b16 %v314
  %v671 = vunpack.c.l.b16 %v315
  %v672 = vunpack.c.h.b16 %v315
  %v673 = vunpack.c.l.b16 %v316
  %v674 = vunpack.c.h.b16 %v316
  %v675 = vunpack.c.l.b16 %v317
  %v676 = vunpack.c.h.b16 %v317
  %v677 = vunpack.c.l.b16 %v318
  %v678 = vunpack.c.h.b16 %v318
  %v679 = vunpack.c.l.b16 %v319
  %v680 = vunpack.c.h.b16 %v319
  %v681 = vunpack.c.l.b16 %v320
  %v682 = vunpack.c.h.b16 %v320
  %v683 = vunpack.c.l.b16 %v321
  %v684 = vunpack.c.h.b16 %v321
  %v685 = vunpack.c.l.b16 %v322
  %v686 = vunpack.c.h.b16 %v322
  %v687 = vunpack.c.l.b16 %v323
  %v688 = vunpack.c.h.b16 %v323
  %v689 = vunpack.c.l.b16 %v324
  %v690 = vunpack.c.h.b16 %v324
  %v691 = vunpack.c.l.b16 %v325
  %v692 = vunpack.c.h.b16 %v325
  %v693 = vunpack.c.l.b16 %v326
  %v694 = vunpack.c.h.b16 %v326
  %v695 = vunpack.c.l.b16 %v327
  %v696 = vunpack.c.h.b16 %v327
  %v697 = vunpack.c.l.b16 %v328
  %v698 = vunpack.c.h.b16 %v328
  %v699 = vunpack.c.l.b16 %v329
  %v700 = vunpack.c.h.b16 %v329
  %v701 = vunpack.c.l.b16 %v330
  %v702 = vunpack.c.h.b16 %v330
  %v703 = vunpack.c.l.b16 %v331
  %v704 = vunpack.c.h.b16 %v331
  %v705 = vunpack.c.l.b16 %v332
  %v706 = vunpack.c.h.b16 %v332
  %v707 = vunpack.c.l.b16 %v333
  %v708 = vunpack.c.h.b16 %v333
  %v709 = vunpack.c.l.b16 %v334
  %v710 = vunpack.c.h.b16 %v334
  %v711 = vunpack.c.l.b16 %v335
  %v712 = vunpack.c.h.b16 %v335
  %v713 = vunpack.c.l.b16 %v336
  %v714 = vunpack.c.h.b16 %v336
  %v715 = vunpack.c.l.b16 %v337
  %v716 = vunpack.c.h.b16 %v337
  %v717 = vunpack.c.l.b16 %v338
  %v718 = vunpack.c.h.b16 %v338
  %v719 = vunpack.c.l.b16 %v339
  %v720 = vunpack.c.h.b16 %v339
  %v721 = vunpack.c.l.b16 %v340
  %v722 = vunpack.c.h.b16 %v340
  %v723 = vunpack.c.l.b16 %v341
  %v724 = vunpack.c.h.b16 %v341
  %v725 = vunpack.c.l.b16 %v342
  %v726 = vunpack.c.h.b16 %v342
  %v727 = vpack.c.b16 %v475, %v471
  %v728 = vpack.c.b16 %v476, %v472
  %v729 = vpack.c.b16 %v477, %v473
  %v730 = vpack.c.b16 %v478, %v474
  %v731 = vpack.c.b16 %v483, %v479
  %v732 = vpack.c.b16 %v484, %v480
  %v733 = vpack.c.b16 %v485, %v481
  %v734 = vpack.c.b16 %v486, %v482
  %v735 = vpack.c.b16 %v491, %v487
  %v736 = vpack.c.b16 %v492, %v488
  %v737 = vpack.c.b16 %v493, %v489
  %v738 = vpack.c.b16 %v494, %v490
  %v739 = vpack.c.b16 %v499, %v495
  %v740 = vpack.c.b16 %v500, %v496
  %v741 = vpack.c.b16 %v501, %v497
  %v742 = vpack.c.b16 %v502, %v498
  %v743 = vpack.c.b16 %v507, %v503
  %v744 = vpack.c.b16 %v508, %v504
  %v745 = vpack.c.b16 %v509, %v505
  %v746 = vpack.c.b16 %v510, %v506
  %v747 = vpack.c.b16 %v515, %v511
  %v748 = vpack.c.b16 %v516, %v512
  %v749 = vpack.c.b16 %v517, %v513
  %v750 = vpack.c.b16 %v518, %v514
  %v751 = vpack.c.b16 %v523, %v519
  %v752 = vpack.c.b16 %v524, %v520
  %v753 = vpack.c.b16 %v525, %v521
  %v754 = vpack.c.b16 %v526, %v522
  %v755 = vpack.c.b16 %v531, %v527
  %v756 = vpack.c.b16 %v532, %v528
  %v757 = vpack.c.b16 %v533, %v529
  %v758 = vpack.c.b16 %v534, %v530
  %v759 = vpack.c.b16 %v539, %v535
  %v760 = vpack.c.b16 %v540, %v536
  %v761 = vpack.c.b16 %v541, %v537
  %v762 = vpack.c.b16 %v542, %v538
  %v763 = vpack.c.b16 %v547, %v543
  %v764 = vpack.c.b16 %v548, %v544
  %v765 = vpack.c.b16 %v549, %v545
  %v766 = vpack.c.b16 %v550, %v546
  %v767 = vpack.c.b16 %v555, %v551
  %v768 = vpack.c.b16 %v556, %v552
  %v769 = vpack.c.b16 %v557, %v553
  %v770 = vpack.c.b16 %v558, %v554
  %v771 = vpack.c.b16 %v563, %v559
  %v772 = vpack.c.b16 %v564, %v560
  %v773 = vpack.c.b16 %v565, %v561
  %v774 = vpack.c.b16 %v566, %v562
  %v775 = vpack.c.b16 %v571, %v567
  %v776 = vpack.c.b16 %v572, %v568
  %v777 = vpack.c.b16 %v573, %v569
  %v778 = vpack.c.b16 %v574, %v570
  %v779 = vpack.c.b16 %v579, %v575
  %v780 = vpack.c.b16 %v580, %v576
  %v781 = vpack.c.b16 %v581, %v577
  %v782 = vpack.c.b16 %v582, %v578
  %v783 = vpack.c.b16 %v587, %v583
  %v784 = vpack.c.b16 %v588, %v584
  %v785 = vpack.c.b16 %v589, %v585
  %v786 = vpack.c.b16 %v590, %v586
  %v787 = vpack.c.b16 %v595, %v591
  %v788 = vpack.c.b16 %v596, %v592
  %v789 = vpack.c.b16 %v597, %v593
  %v790 = vpack.c.b16 %v598, %v594
  %v791 = vpack.c.b16 %v603, %v599
  %v792 = vpack.c.b16 %v604, %v600
  %v793 = vpack.c.b16 %v605, %v601
  %v794 = vpack.c.b16 %v606, %v602
  %v795 = vpack.c.b16 %v611, %v607
  %v796 = vpack.c.b16 %v612, %v608
  %v797 = vpack.c.b16 %v613, %v609
  %v798 = vpack.c.b16 %v614, %v610
  %v799 = vpack.c.b16 %v619, %v615
  %v800 = vpack.c.b16 %v620, %v616
  %v801 = vpack.c.b16 %v621, %v617
  %v802 = vpack.c.b16 %v622, %v618
  %v803 = vpack.c.b16 %v627, %v623
  %v804 = vpack.c.b16 %v628, %v624
  %v805 = vpack.c.b16 %v629, %v625
  %v806 = vpack.c.b16 %v630, %v626
  %v807 = vpack.c.b16 %v635, %v631
  %v808 = vpack.c.b16 %v636, %v632
  %v809 = vpack.c.b16 %v637, %v633
  %v810 = vpack.c.b16 %v638, %v634
  %v811 = vpack.c.b16 %v643, %v639
  %v812 = vpack.c.b16 %v644, %v640
  %v813 = vpack.c.b16 %v645, %v641
  %v814 = vpack.c.b16 %v646, %v642
  %v815 = vpack.c.b16 %v651, %v647
  %v816 = vpack.c.b16 %v652, %v648
  %v817 = vpack.c.b16 %v653, %v649
  %v818 = vpack.c.b16 %v654, %v650
  %v819 = vpack.c.b16 %v659, %v655
  %v820 = vpack.c.b16 %v660, %v656
  %v821 = vpack.c.b16 %v661, %v657
  %v822 = vpack.c.b16 %v662, %v658
  %v823 = vpack.c.b16 %v667, %v663
  %v824 = vpack.c.b16 %v668, %v664
  %v825 = vpack.c.b16 %v669, %v665
  %v826 = vpack.c.b16 %v670, %v666
  %v827 = vpack.c.b16 %v675, %v671
  %v828 = vpack.c.b16 %v676, %v672
  %v829 = vpack.c.b16 %v677, %v673
  %v830 = vpack.c.b16 %v678, %v674
  %v831 = vpack.c.b16 %v683, %v679
  %v832 = vpack.c.b16 %v684, %v680
  %v833 = vpack.c.b16 %v685, %v681
  %v834 = vpack.c.b16 %v686, %v682
  %v835 = vpack.c.b16 %v691, %v687
  %v836 = vpack.c.b16 %v692, %v688
  %v837 = vpack.c.b16 %v693, %v689
  %v838 = vpack.c.b16 %v694, %v690
  %v839 = vpack.c.b16 %v699, %v695
  %v840 = vpack.c.b16 %v700, %v696
  %v841 = vpack.c.b16 %v701, %v697
  %v842 = vpack.c.b16 %v702, %v698
  %v843 = vpack.c.b16 %v707, %v703
  %v844 = vpack.c.b16 %v708, %v704
  %v845 = vpack.c.b16 %v709, %v705
  %v846 = vpack.c.b16 %v710, %v706
  %v847 = vpack.c.b16 %v715, %v711
  %v848 = vpack.c.b16 %v716, %v712
  %v849 = vpack.c.b16 %v717, %v713
  %v850 = vpack.c.b16 %v718, %v714
  %v851 = vpack.c.b16 %v723, %v719
  %v852 = vpack.c.b16 %v724, %v720
  %v853 = vpack.c.b16 %v725, %v721
  %v854 = vpack.c.b16 %v726, %v722
  %v1047 = vunpack.c.l.b16 %v87
  %v1048 = vunpack.c.l.b16 %v88
  %v1049 = vunpack.c.l.b16 %v89
  %v1050 = vunpack.c.l.b16 %v90
  %v1051 = vunpack.c.l.b16 %v91
  %v1052 = vunpack.c.l.b16 %v92
  %v1053 = vunpack.c.l.b16 %v93
  %v1054 = vunpack.c.l.b16 %v94
  %v1055 = vunpack.c.l.b16 %v95
  %v1056 = vunpack.c.l.b16 %v96
  %v1057 = vunpack.c.l.b16 %v97
  %v1058 = vunpack.c.l.b16 %v98
  %v1059 = vunpack.c.l.b16 %v99
  %v1060 = vunpack.c.l.b16 %v100
  %v1061 = vunpack.c.l.b16 %v101
  %v1062 = vunpack.c.l.b16 %v102
  %v1063 = vunpack.c.l.b16 %v103
  %v1064 = vunpack.c.l.b16 %v104
  %v1065 = vunpack.c.l.b16 %v105
  %v1066 = vunpack.c.l.b16 %v106
  %v1067 = vunpack.c.l.b16 %v107
  %v1068 = vunpack.c.l.b16 %v108
  %v1069 = vunpack.c.l.b16 %v109
  %v1070 = vunpack.c.l.b16 %v110
  %v1071 = vunpack.c.l.b16 %v111
  %v1072 = vunpack.c.l.b16 %v112
  %v1073 = vunpack.c.l.b16 %v113
  %v1074 = vunpack.c.l.b16 %v114
  %v1075 = vunpack.c.l.b16 %v115
  %v1076 = vunpack.c.l.b16 %v116
  %v1077 = vunpack.c.l.b16 %v117
  %v1078 = vunpack.c.l.b16 %v118
  %v1079 = vunpack.c.l.b16 %v119
  %v1080 = vunpack.c.l.b16 %v120
  %v1081 = vunpack.c.l.b16 %v121
  %v1082 = vunpack.c.l.b16 %v122
  %v1083 = vunpack.c.l.b16 %v123
  %v1084 = vunpack.c.l.b16 %v124
  %v1085 = vunpack.c.l.b16 %v125
  %v1086 = vunpack.c.l.b16 %v126
  %v1087 = vunpack.c.l.b16 %v127
  %v1088 = vunpack.c.l.b16 %v128
  %v1089 = vunpack.c.l.b16 %v129
  %v1090 = vunpack.c.l.b16 %v130
  %v1091 = vunpack.c.l.b16 %v131
  %v1092 = vunpack.c.l.b16 %v132
  %v1093 = vunpack.c.l.b16 %v133
  %v1094 = vunpack.c.l.b16 %v134
  %v1095 = vunpack.c.l.b16 %v135
  %v1096 = vunpack.c.l.b16 %v136
  %v1097 = vunpack.c.l.b16 %v137
  %v1098 = vunpack.c.l.b16 %v138
  %v1099 = vunpack.c.l.b16 %v139
  %v1100 = vunpack.c.l.b16 %v140
  %v1101 = vunpack.c.l.b16 %v141
  %v1102 = vunpack.c.l.b16 %v142
  %v1103 = vunpack.c.l.b16 %v143
  %v1104 = vunpack.c.l.b16 %v144
  %v1105 = vunpack.c.l.b16 %v145
  %v1106 = vunpack.c.l.b16 %v146
  %v1107 = vunpack.c.l.b16 %v147
  %v1108 = vunpack.c.l.b16 %v148
  %v1109 = vunpack.c.l.b16 %v149
  %v1110 = vunpack.c.l.b16 %v150
  %v1111 = vpack.c.b16 %v1048, %v1047
  %v1112 = vpack.c.b16 %v1050, %v1049
  %v1113 = vpack.c.b16 %v1052, %v1051
  %v1114 = vpack.c.b16 %v1054, %v1053
  %v1115 = vpack.c.b16 %v1056, %v1055
  %v1116 = vpack.c.b16 %v1058, %v1057
  %v1117 = vpack.c.b16 %v1060, %v1059
  %v1118 = vpack.c.b16 %v1062, %v1061
  %v1119 = vpack.c.b16 %v1064, %v1063
  %v1120 = vpack.c.b16 %v1066, %v1065
  %v1121 = vpack.c.b16 %v1068, %v1067
  %v1122 = vpack.c.b16 %v1070, %v1069
  %v1123 = vpack.c.b16 %v1072, %v1071
  %v1124 = vpack.c.b16 %v1074, %v1073
  %v1125 = vpack.c.b16 %v1076, %v1075
  %v1126 = vpack.c.b16 %v1078, %v1077
  %v1127 = vpack.c.b16 %v1080, %v1079
  %v1128 = vpack.c.b16 %v1082, %v1081
  %v1129 = vpack.c.b16 %v1084, %v1083
  %v1130 = vpack.c.b16 %v1086, %v1085
  %v1131 = vpack.c.b16 %v1088, %v1087
  %v1132 = vpack.c.b16 %v1090, %v1089
  %v1133 = vpack.c.b16 %v1092, %v1091
  %v1134 = vpack.c.b16 %v1094, %v1093
  %v1135 = vpack.c.b16 %v1096, %v1095
  %v1136 = vpack.c.b16 %v1098, %v1097
  %v1137 = vpack.c.b16 %v1100, %v1099
  %v1138 = vpack.c.b16 %v1102, %v1101
  %v1139 = vpack.c.b16 %v1104, %v1103
  %v1140 = vpack.c.b16 %v1106, %v1105
  %v1141 = vpack.c.b16 %v1108, %v1107
  %v1142 = vpack.c.b16 %v1110, %v1109
  %1175 = vmatpush.bf16.msra.mxu0 %v1118
  %1176 = vmatpush.bf16.msra.mxu0 %v1117
  %1177 = vmatpush.bf16.msra.mxu0 %v1116
  %1178 = vmatpush.bf16.msra.mxu0 %v1115
  %1179 = vmatpush.bf16.msra.mxu0 %v1114
  %1180 = vmatpush.bf16.msra.mxu0 %v1113
  %1181 = vmatpush.bf16.msra.mxu0 %v1112
  %1182 = vmatpush.bf16.msra.mxu0 %v1111
  %1183 = vmatmul.bf16.gmra.mxu0 %v727
  %v1184 = vpop.f32.mrf.mxu0
  %v1185 = vadd.f32 0.0, %v1184
  %v1186 = vpop.f32.mrf.mxu0
  %v1187 = vadd.f32 0.0, %v1186
  %1188 = vmatmul.bf16.gmra.mxu0 %v731
  %v1189 = vpop.f32.mrf.mxu0
  %v1190 = vadd.f32 0.0, %v1189
  %v1191 = vpop.f32.mrf.mxu0
  %v1192 = vadd.f32 0.0, %v1191
  %1193 = vmatmul.bf16.gmra.mxu0 %v735
  %v1194 = vpop.f32.mrf.mxu0
  %v1195 = vadd.f32 0.0, %v1194
  %v1196 = vpop.f32.mrf.mxu0
  %v1197 = vadd.f32 0.0, %v1196
  %1198 = vmatmul.bf16.gmra.mxu0 %v739
  %v1199 = vpop.f32.mrf.mxu0
  %v1200 = vadd.f32 0.0, %v1199
  %v1201 = vpop.f32.mrf.mxu0
  %v1202 = vadd.f32 0.0, %v1201
  %1203 = vmatmul.bf16.gmra.mxu0 %v743
  %v1204 = vpop.f32.mrf.mxu0
  %v1205 = vadd.f32 0.0, %v1204
  %v1206 = vpop.f32.mrf.mxu0
  %v1207 = vadd.f32 0.0, %v1206
  %1208 = vmatmul.bf16.gmra.mxu0 %v747
  %v1209 = vpop.f32.mrf.mxu0
  %v1210 = vadd.f32 0.0, %v1209
  %v1211 = vpop.f32.mrf.mxu0
  %v1212 = vadd.f32 0.0, %v1211
  %1213 = vmatmul.bf16.gmra.mxu0 %v751
  %v1214 = vpop.f32.mrf.mxu0
  %v1215 = vadd.f32 0.0, %v1214
  %v1216 = vpop.f32.mrf.mxu0
  %v1217 = vadd.f32 0.0, %v1216
  %1218 = vmatmul.bf16.gmra.mxu0 %v755
  %v1219 = vpop.f32.mrf.mxu0
  %v1220 = vadd.f32 0.0, %v1219
  %v1221 = vpop.f32.mrf.mxu0
  %v1222 = vadd.f32 0.0, %v1221
  %1223 = vmatmul.bf16.gmra.mxu0 %v759
  %v1224 = vpop.f32.mrf.mxu0
  %v1225 = vadd.f32 0.0, %v1224
  %v1226 = vpop.f32.mrf.mxu0
  %v1227 = vadd.f32 0.0, %v1226
  %1228 = vmatmul.bf16.gmra.mxu0 %v763
  %v1229 = vpop.f32.mrf.mxu0
  %v1230 = vadd.f32 0.0, %v1229
  %v1231 = vpop.f32.mrf.mxu0
  %v1232 = vadd.f32 0.0, %v1231
  %1233 = vmatmul.bf16.gmra.mxu0 %v767
  %v1234 = vpop.f32.mrf.mxu0
  %v1235 = vadd.f32 0.0, %v1234
  %v1236 = vpop.f32.mrf.mxu0
  %v1237 = vadd.f32 0.0, %v1236
  %1238 = vmatmul.bf16.gmra.mxu0 %v771
  %v1239 = vpop.f32.mrf.mxu0
  %v1240 = vadd.f32 0.0, %v1239
  %v1241 = vpop.f32.mrf.mxu0
  %v1242 = vadd.f32 0.0, %v1241
  %1243 = vmatmul.bf16.gmra.mxu0 %v775
  %v1244 = vpop.f32.mrf.mxu0
  %v1245 = vadd.f32 0.0, %v1244
  %v1246 = vpop.f32.mrf.mxu0
  %v1247 = vadd.f32 0.0, %v1246
  %1248 = vmatmul.bf16.gmra.mxu0 %v779
  %v1249 = vpop.f32.mrf.mxu0
  %v1250 = vadd.f32 0.0, %v1249
  %v1251 = vpop.f32.mrf.mxu0
  %v1252 = vadd.f32 0.0, %v1251
  %1253 = vmatmul.bf16.gmra.mxu0 %v783
  %v1254 = vpop.f32.mrf.mxu0
  %v1255 = vadd.f32 0.0, %v1254
  %v1256 = vpop.f32.mrf.mxu0
  %v1257 = vadd.f32 0.0, %v1256
  %1258 = vmatmul.bf16.gmra.mxu0 %v787
  %v1259 = vpop.f32.mrf.mxu0
  %v1260 = vadd.f32 0.0, %v1259
  %v1261 = vpop.f32.mrf.mxu0
  %v1262 = vadd.f32 0.0, %v1261
  %1263 = vmatmul.bf16.gmra.mxu0 %v791
  %v1264 = vpop.f32.mrf.mxu0
  %v1265 = vadd.f32 0.0, %v1264
  %v1266 = vpop.f32.mrf.mxu0
  %v1267 = vadd.f32 0.0, %v1266
  %1268 = vmatmul.bf16.gmra.mxu0 %v795
  %v1269 = vpop.f32.mrf.mxu0
  %v1270 = vadd.f32 0.0, %v1269
  %v1271 = vpop.f32.mrf.mxu0
  %v1272 = vadd.f32 0.0, %v1271
  %1273 = vmatmul.bf16.gmra.mxu0 %v799
  %v1274 = vpop.f32.mrf.mxu0
  %v1275 = vadd.f32 0.0, %v1274
  %v1276 = vpop.f32.mrf.mxu0
  %v1277 = vadd.f32 0.0, %v1276
  %1278 = vmatmul.bf16.gmra.mxu0 %v803
  %v1279 = vpop.f32.mrf.mxu0
  %v1280 = vadd.f32 0.0, %v1279
  %v1281 = vpop.f32.mrf.mxu0
  %v1282 = vadd.f32 0.0, %v1281
  %1283 = vmatmul.bf16.gmra.mxu0 %v807
  %v1284 = vpop.f32.mrf.mxu0
  %v1285 = vadd.f32 0.0, %v1284
  %v1286 = vpop.f32.mrf.mxu0
  %v1287 = vadd.f32 0.0, %v1286
  %1288 = vmatmul.bf16.gmra.mxu0 %v811
  %v1289 = vpop.f32.mrf.mxu0
  %v1290 = vadd.f32 0.0, %v1289
  %v1291 = vpop.f32.mrf.mxu0
  %v1292 = vadd.f32 0.0, %v1291
  %1293 = vmatmul.bf16.gmra.mxu0 %v815
  %v1294 = vpop.f32.mrf.mxu0
  %v1295 = vadd.f32 0.0, %v1294
  %v1296 = vpop.f32.mrf.mxu0
  %v1297 = vadd.f32 0.0, %v1296
  %1298 = vmatmul.bf16.gmra.mxu0 %v819
  %v1299 = vpop.f32.mrf.mxu0
  %v1300 = vadd.f32 0.0, %v1299
  %v1301 = vpop.f32.mrf.mxu0
  %v1302 = vadd.f32 0.0, %v1301
  %1303 = vmatmul.bf16.gmra.mxu0 %v823
  %v1304 = vpop.f32.mrf.mxu0
  %v1305 = vadd.f32 0.0, %v1304
  %v1306 = vpop.f32.mrf.mxu0
  %v1307 = vadd.f32 0.0, %v1306
  %1308 = vmatmul.bf16.gmra.mxu0 %v827
  %v1309 = vpop.f32.mrf.mxu0
  %v1310 = vadd.f32 0.0, %v1309
  %v1311 = vpop.f32.mrf.mxu0
  %v1312 = vadd.f32 0.0, %v1311
  %1313 = vmatmul.bf16.gmra.mxu0 %v831
  %v1314 = vpop.f32.mrf.mxu0
  %v1315 = vadd.f32 0.0, %v1314
  %v1316 = vpop.f32.mrf.mxu0
  %v1317 = vadd.f32 0.0, %v1316
  %1318 = vmatmul.bf16.gmra.mxu0 %v835
  %v1319 = vpop.f32.mrf.mxu0
  %v1320 = vadd.f32 0.0, %v1319
  %v1321 = vpop.f32.mrf.mxu0
  %v1322 = vadd.f32 0.0, %v1321
  %1323 = vmatmul.bf16.gmra.mxu0 %v839
  %v1324 = vpop.f32.mrf.mxu0
  %v1325 = vadd.f32 0.0, %v1324
  %v1326 = vpop.f32.mrf.mxu0
  %v1327 = vadd.f32 0.0, %v1326
  %1328 = vmatmul.bf16.gmra.mxu0 %v843
  %v1329 = vpop.f32.mrf.mxu0
  %v1330 = vadd.f32 0.0, %v1329
  %v1331 = vpop.f32.mrf.mxu0
  %v1332 = vadd.f32 0.0, %v1331
  %1333 = vmatmul.bf16.gmra.mxu0 %v847
  %v1334 = vpop.f32.mrf.mxu0
  %v1335 = vadd.f32 0.0, %v1334
  %v1336 = vpop.f32.mrf.mxu0
  %v1337 = vadd.f32 0.0, %v1336
  %1338 = vmatmul.bf16.gmra.mxu0 %v851
  %v1339 = vpop.f32.mrf.mxu0
  %v1340 = vadd.f32 0.0, %v1339
  %v1341 = vpop.f32.mrf.mxu0
  %v1342 = vadd.f32 0.0, %v1341
  %1343 = vdwg.mxu0
  %1344 = vmatpush.bf16.msra.mxu0 %v1126
  %1345 = vmatpush.bf16.msra.mxu0 %v1125
  %1346 = vmatpush.bf16.msra.mxu0 %v1124
  %1347 = vmatpush.bf16.msra.mxu0 %v1123
  %1348 = vmatpush.bf16.msra.mxu0 %v1122
  %1349 = vmatpush.bf16.msra.mxu0 %v1121
  %1350 = vmatpush.bf16.msra.mxu0 %v1120
  %1351 = vmatpush.bf16.msra.mxu0 %v1119
  %1352 = vmatmul.bf16.gmra.mxu0 %v728
  %v1353 = vpop.f32.mrf.mxu0
  %v1354 = vadd.f32 %v1185, %v1353
  %v1355 = vpop.f32.mrf.mxu0
  %v1356 = vadd.f32 %v1187, %v1355
  %1357 = vmatmul.bf16.gmra.mxu0 %v732
  %v1358 = vpop.f32.mrf.mxu0
  %v1359 = vadd.f32 %v1190, %v1358
  %v1360 = vpop.f32.mrf.mxu0
  %v1361 = vadd.f32 %v1192, %v1360
  %1362 = vmatmul.bf16.gmra.mxu0 %v736
  %v1363 = vpop.f32.mrf.mxu0
  %v1364 = vadd.f32 %v1195, %v1363
  %v1365 = vpop.f32.mrf.mxu0
  %v1366 = vadd.f32 %v1197, %v1365
  %1367 = vmatmul.bf16.gmra.mxu0 %v740
  %v1368 = vpop.f32.mrf.mxu0
  %v1369 = vadd.f32 %v1200, %v1368
  %v1370 = vpop.f32.mrf.mxu0
  %v1371 = vadd.f32 %v1202, %v1370
  %1372 = vmatmul.bf16.gmra.mxu0 %v744
  %v1373 = vpop.f32.mrf.mxu0
  %v1374 = vadd.f32 %v1205, %v1373
  %v1375 = vpop.f32.mrf.mxu0
  %v1376 = vadd.f32 %v1207, %v1375
  %1377 = vmatmul.bf16.gmra.mxu0 %v748
  %v1378 = vpop.f32.mrf.mxu0
  %v1379 = vadd.f32 %v1210, %v1378
  %v1380 = vpop.f32.mrf.mxu0
  %v1381 = vadd.f32 %v1212, %v1380
  %1382 = vmatmul.bf16.gmra.mxu0 %v752
  %v1383 = vpop.f32.mrf.mxu0
  %v1384 = vadd.f32 %v1215, %v1383
  %v1385 = vpop.f32.mrf.mxu0
  %v1386 = vadd.f32 %v1217, %v1385
  %1387 = vmatmul.bf16.gmra.mxu0 %v756
  %v1388 = vpop.f32.mrf.mxu0
  %v1389 = vadd.f32 %v1220, %v1388
  %v1390 = vpop.f32.mrf.mxu0
  %v1391 = vadd.f32 %v1222, %v1390
  %1392 = vmatmul.bf16.gmra.mxu0 %v760
  %v1393 = vpop.f32.mrf.mxu0
  %v1394 = vadd.f32 %v1225, %v1393
  %v1395 = vpop.f32.mrf.mxu0
  %v1396 = vadd.f32 %v1227, %v1395
  %1397 = vmatmul.bf16.gmra.mxu0 %v764
  %v1398 = vpop.f32.mrf.mxu0
  %v1399 = vadd.f32 %v1230, %v1398
  %v1400 = vpop.f32.mrf.mxu0
  %v1401 = vadd.f32 %v1232, %v1400
  %1402 = vmatmul.bf16.gmra.mxu0 %v768
  %v1403 = vpop.f32.mrf.mxu0
  %v1404 = vadd.f32 %v1235, %v1403
  %v1405 = vpop.f32.mrf.mxu0
  %v1406 = vadd.f32 %v1237, %v1405
  %1407 = vmatmul.bf16.gmra.mxu0 %v772
  %v1408 = vpop.f32.mrf.mxu0
  %v1409 = vadd.f32 %v1240, %v1408
  %v1410 = vpop.f32.mrf.mxu0
  %v1411 = vadd.f32 %v1242, %v1410
  %1412 = vmatmul.bf16.gmra.mxu0 %v776
  %v1413 = vpop.f32.mrf.mxu0
  %v1414 = vadd.f32 %v1245, %v1413
  %v1415 = vpop.f32.mrf.mxu0
  %v1416 = vadd.f32 %v1247, %v1415
  %1417 = vmatmul.bf16.gmra.mxu0 %v780
  %v1418 = vpop.f32.mrf.mxu0
  %v1419 = vadd.f32 %v1250, %v1418
  %v1420 = vpop.f32.mrf.mxu0
  %v1421 = vadd.f32 %v1252, %v1420
  %1422 = vmatmul.bf16.gmra.mxu0 %v784
  %v1423 = vpop.f32.mrf.mxu0
  %v1424 = vadd.f32 %v1255, %v1423
  %v1425 = vpop.f32.mrf.mxu0
  %v1426 = vadd.f32 %v1257, %v1425
  %1427 = vmatmul.bf16.gmra.mxu0 %v788
  %v1428 = vpop.f32.mrf.mxu0
  %v1429 = vadd.f32 %v1260, %v1428
  %v1430 = vpop.f32.mrf.mxu0
  %v1431 = vadd.f32 %v1262, %v1430
  %1432 = vmatmul.bf16.gmra.mxu0 %v792
  %v1433 = vpop.f32.mrf.mxu0
  %v1434 = vadd.f32 %v1265, %v1433
  %v1435 = vpop.f32.mrf.mxu0
  %v1436 = vadd.f32 %v1267, %v1435
  %1437 = vmatmul.bf16.gmra.mxu0 %v796
  %v1438 = vpop.f32.mrf.mxu0
  %v1439 = vadd.f32 %v1270, %v1438
  %v1440 = vpop.f32.mrf.mxu0
  %v1441 = vadd.f32 %v1272, %v1440
  %1442 = vmatmul.bf16.gmra.mxu0 %v800
  %v1443 = vpop.f32.mrf.mxu0
  %v1444 = vadd.f32 %v1275, %v1443
  %v1445 = vpop.f32.mrf.mxu0
  %v1446 = vadd.f32 %v1277, %v1445
  %1447 = vmatmul.bf16.gmra.mxu0 %v804
  %v1448 = vpop.f32.mrf.mxu0
  %v1449 = vadd.f32 %v1280, %v1448
  %v1450 = vpop.f32.mrf.mxu0
  %v1451 = vadd.f32 %v1282, %v1450
  %1452 = vmatmul.bf16.gmra.mxu0 %v808
  %v1453 = vpop.f32.mrf.mxu0
  %v1454 = vadd.f32 %v1285, %v1453
  %v1455 = vpop.f32.mrf.mxu0
  %v1456 = vadd.f32 %v1287, %v1455
  %1457 = vmatmul.bf16.gmra.mxu0 %v812
  %v1458 = vpop.f32.mrf.mxu0
  %v1459 = vadd.f32 %v1290, %v1458
  %v1460 = vpop.f32.mrf.mxu0
  %v1461 = vadd.f32 %v1292, %v1460
  %1462 = vmatmul.bf16.gmra.mxu0 %v816
  %v1463 = vpop.f32.mrf.mxu0
  %v1464 = vadd.f32 %v1295, %v1463
  %v1465 = vpop.f32.mrf.mxu0
  %v1466 = vadd.f32 %v1297, %v1465
  %1467 = vmatmul.bf16.gmra.mxu0 %v820
  %v1468 = vpop.f32.mrf.mxu0
  %v1469 = vadd.f32 %v1300, %v1468
  %v1470 = vpop.f32.mrf.mxu0
  %v1471 = vadd.f32 %v1302, %v1470
  %1472 = vmatmul.bf16.gmra.mxu0 %v824
  %v1473 = vpop.f32.mrf.mxu0
  %v1474 = vadd.f32 %v1305, %v1473
  %v1475 = vpop.f32.mrf.mxu0
  %v1476 = vadd.f32 %v1307, %v1475
  %1477 = vmatmul.bf16.gmra.mxu0 %v828
  %v1478 = vpop.f32.mrf.mxu0
  %v1479 = vadd.f32 %v1310, %v1478
  %v1480 = vpop.f32.mrf.mxu0
  %v1481 = vadd.f32 %v1312, %v1480
  %1482 = vmatmul.bf16.gmra.mxu0 %v832
  %v1483 = vpop.f32.mrf.mxu0
  %v1484 = vadd.f32 %v1315, %v1483
  %v1485 = vpop.f32.mrf.mxu0
  %v1486 = vadd.f32 %v1317, %v1485
  %1487 = vmatmul.bf16.gmra.mxu0 %v836
  %v1488 = vpop.f32.mrf.mxu0
  %v1489 = vadd.f32 %v1320, %v1488
  %v1490 = vpop.f32.mrf.mxu0
  %v1491 = vadd.f32 %v1322, %v1490
  %1492 = vmatmul.bf16.gmra.mxu0 %v840
  %v1493 = vpop.f32.mrf.mxu0
  %v1494 = vadd.f32 %v1325, %v1493
  %v1495 = vpop.f32.mrf.mxu0
  %v1496 = vadd.f32 %v1327, %v1495
  %1497 = vmatmul.bf16.gmra.mxu0 %v844
  %v1498 = vpop.f32.mrf.mxu0
  %v1499 = vadd.f32 %v1330, %v1498
  %v1500 = vpop.f32.mrf.mxu0
  %v1501 = vadd.f32 %v1332, %v1500
  %1502 = vmatmul.bf16.gmra.mxu0 %v848
  %v1503 = vpop.f32.mrf.mxu0
  %v1504 = vadd.f32 %v1335, %v1503
  %v1505 = vpop.f32.mrf.mxu0
  %v1506 = vadd.f32 %v1337, %v1505
  %1507 = vmatmul.bf16.gmra.mxu0 %v852
  %v1508 = vpop.f32.mrf.mxu0
  %v1509 = vadd.f32 %v1340, %v1508
  %v1510 = vpop.f32.mrf.mxu0
  %v1511 = vadd.f32 %v1342, %v1510
  %1512 = vdwg.mxu0
  %1513 = vmatpush.bf16.msra.mxu0 %v1134
  %1514 = vmatpush.bf16.msra.mxu0 %v1133
  %1515 = vmatpush.bf16.msra.mxu0 %v1132
  %1516 = vmatpush.bf16.msra.mxu0 %v1131
  %1517 = vmatpush.bf16.msra.mxu0 %v1130
  %1518 = vmatpush.bf16.msra.mxu0 %v1129
  %1519 = vmatpush.bf16.msra.mxu0 %v1128
  %1520 = vmatpush.bf16.msra.mxu0 %v1127
  %1521 = vmatmul.bf16.gmra.mxu0 %v729
  %v1522 = vpop.f32.mrf.mxu0
  %v1523 = vadd.f32 %v1354, %v1522
  %v1524 = vpop.f32.mrf.mxu0
  %v1525 = vadd.f32 %v1356, %v1524
  %1526 = vmatmul.bf16.gmra.mxu0 %v733
  %v1527 = vpop.f32.mrf.mxu0
  %v1528 = vadd.f32 %v1359, %v1527
  %v1529 = vpop.f32.mrf.mxu0
  %v1530 = vadd.f32 %v1361, %v1529
  %1531 = vmatmul.bf16.gmra.mxu0 %v737
  %v1532 = vpop.f32.mrf.mxu0
  %v1533 = vadd.f32 %v1364, %v1532
  %v1534 = vpop.f32.mrf.mxu0
  %v1535 = vadd.f32 %v1366, %v1534
  %1536 = vmatmul.bf16.gmra.mxu0 %v741
  %v1537 = vpop.f32.mrf.mxu0
  %v1538 = vadd.f32 %v1369, %v1537
  %v1539 = vpop.f32.mrf.mxu0
  %v1540 = vadd.f32 %v1371, %v1539
  %1541 = vmatmul.bf16.gmra.mxu0 %v745
  %v1542 = vpop.f32.mrf.mxu0
  %v1543 = vadd.f32 %v1374, %v1542
  %v1544 = vpop.f32.mrf.mxu0
  %v1545 = vadd.f32 %v1376, %v1544
  %1546 = vmatmul.bf16.gmra.mxu0 %v749
  %v1547 = vpop.f32.mrf.mxu0
  %v1548 = vadd.f32 %v1379, %v1547
  %v1549 = vpop.f32.mrf.mxu0
  %v1550 = vadd.f32 %v1381, %v1549
  %1551 = vmatmul.bf16.gmra.mxu0 %v753
  %v1552 = vpop.f32.mrf.mxu0
  %v1553 = vadd.f32 %v1384, %v1552
  %v1554 = vpop.f32.mrf.mxu0
  %v1555 = vadd.f32 %v1386, %v1554
  %1556 = vmatmul.bf16.gmra.mxu0 %v757
  %v1557 = vpop.f32.mrf.mxu0
  %v1558 = vadd.f32 %v1389, %v1557
  %v1559 = vpop.f32.mrf.mxu0
  %v1560 = vadd.f32 %v1391, %v1559
  %1561 = vmatmul.bf16.gmra.mxu0 %v761
  %v1562 = vpop.f32.mrf.mxu0
  %v1563 = vadd.f32 %v1394, %v1562
  %v1564 = vpop.f32.mrf.mxu0
  %v1565 = vadd.f32 %v1396, %v1564
  %1566 = vmatmul.bf16.gmra.mxu0 %v765
  %v1567 = vpop.f32.mrf.mxu0
  %v1568 = vadd.f32 %v1399, %v1567
  %v1569 = vpop.f32.mrf.mxu0
  %v1570 = vadd.f32 %v1401, %v1569
  %1571 = vmatmul.bf16.gmra.mxu0 %v769
  %v1572 = vpop.f32.mrf.mxu0
  %v1573 = vadd.f32 %v1404, %v1572
  %v1574 = vpop.f32.mrf.mxu0
  %v1575 = vadd.f32 %v1406, %v1574
  %1576 = vmatmul.bf16.gmra.mxu0 %v773
  %v1577 = vpop.f32.mrf.mxu0
  %v1578 = vadd.f32 %v1409, %v1577
  %v1579 = vpop.f32.mrf.mxu0
  %v1580 = vadd.f32 %v1411, %v1579
  %1581 = vmatmul.bf16.gmra.mxu0 %v777
  %v1582 = vpop.f32.mrf.mxu0
  %v1583 = vadd.f32 %v1414, %v1582
  %v1584 = vpop.f32.mrf.mxu0
  %v1585 = vadd.f32 %v1416, %v1584
  %1586 = vmatmul.bf16.gmra.mxu0 %v781
  %v1587 = vpop.f32.mrf.mxu0
  %v1588 = vadd.f32 %v1419, %v1587
  %v1589 = vpop.f32.mrf.mxu0
  %v1590 = vadd.f32 %v1421, %v1589
  %1591 = vmatmul.bf16.gmra.mxu0 %v785
  %v1592 = vpop.f32.mrf.mxu0
  %v1593 = vadd.f32 %v1424, %v1592
  %v1594 = vpop.f32.mrf.mxu0
  %v1595 = vadd.f32 %v1426, %v1594
  %1596 = vmatmul.bf16.gmra.mxu0 %v789
  %v1597 = vpop.f32.mrf.mxu0
  %v1598 = vadd.f32 %v1429, %v1597
  %v1599 = vpop.f32.mrf.mxu0
  %v1600 = vadd.f32 %v1431, %v1599
  %1601 = vmatmul.bf16.gmra.mxu0 %v793
  %v1602 = vpop.f32.mrf.mxu0
  %v1603 = vadd.f32 %v1434, %v1602
  %v1604 = vpop.f32.mrf.mxu0
  %v1605 = vadd.f32 %v1436, %v1604
  %1606 = vmatmul.bf16.gmra.mxu0 %v797
  %v1607 = vpop.f32.mrf.mxu0
  %v1608 = vadd.f32 %v1439, %v1607
  %v1609 = vpop.f32.mrf.mxu0
  %v1610 = vadd.f32 %v1441, %v1609
  %1611 = vmatmul.bf16.gmra.mxu0 %v801
  %v1612 = vpop.f32.mrf.mxu0
  %v1613 = vadd.f32 %v1444, %v1612
  %v1614 = vpop.f32.mrf.mxu0
  %v1615 = vadd.f32 %v1446, %v1614
  %1616 = vmatmul.bf16.gmra.mxu0 %v805
  %v1617 = vpop.f32.mrf.mxu0
  %v1618 = vadd.f32 %v1449, %v1617
  %v1619 = vpop.f32.mrf.mxu0
  %v1620 = vadd.f32 %v1451, %v1619
  %1621 = vmatmul.bf16.gmra.mxu0 %v809
  %v1622 = vpop.f32.mrf.mxu0
  %v1623 = vadd.f32 %v1454, %v1622
  %v1624 = vpop.f32.mrf.mxu0
  %v1625 = vadd.f32 %v1456, %v1624
  %1626 = vmatmul.bf16.gmra.mxu0 %v813
  %v1627 = vpop.f32.mrf.mxu0
  %v1628 = vadd.f32 %v1459, %v1627
  %v1629 = vpop.f32.mrf.mxu0
  %v1630 = vadd.f32 %v1461, %v1629
  %1631 = vmatmul.bf16.gmra.mxu0 %v817
  %v1632 = vpop.f32.mrf.mxu0
  %v1633 = vadd.f32 %v1464, %v1632
  %v1634 = vpop.f32.mrf.mxu0
  %v1635 = vadd.f32 %v1466, %v1634
  %1636 = vmatmul.bf16.gmra.mxu0 %v821
  %v1637 = vpop.f32.mrf.mxu0
  %v1638 = vadd.f32 %v1469, %v1637
  %v1639 = vpop.f32.mrf.mxu0
  %v1640 = vadd.f32 %v1471, %v1639
  %1641 = vmatmul.bf16.gmra.mxu0 %v825
  %v1642 = vpop.f32.mrf.mxu0
  %v1643 = vadd.f32 %v1474, %v1642
  %v1644 = vpop.f32.mrf.mxu0
  %v1645 = vadd.f32 %v1476, %v1644
  %1646 = vmatmul.bf16.gmra.mxu0 %v829
  %v1647 = vpop.f32.mrf.mxu0
  %v1648 = vadd.f32 %v1479, %v1647
  %v1649 = vpop.f32.mrf.mxu0
  %v1650 = vadd.f32 %v1481, %v1649
  %1651 = vmatmul.bf16.gmra.mxu0 %v833
  %v1652 = vpop.f32.mrf.mxu0
  %v1653 = vadd.f32 %v1484, %v1652
  %v1654 = vpop.f32.mrf.mxu0
  %v1655 = vadd.f32 %v1486, %v1654
  %1656 = vmatmul.bf16.gmra.mxu0 %v837
  %v1657 = vpop.f32.mrf.mxu0
  %v1658 = vadd.f32 %v1489, %v1657
  %v1659 = vpop.f32.mrf.mxu0
  %v1660 = vadd.f32 %v1491, %v1659
  %1661 = vmatmul.bf16.gmra.mxu0 %v841
  %v1662 = vpop.f32.mrf.mxu0
  %v1663 = vadd.f32 %v1494, %v1662
  %v1664 = vpop.f32.mrf.mxu0
  %v1665 = vadd.f32 %v1496, %v1664
  %1666 = vmatmul.bf16.gmra.mxu0 %v845
  %v1667 = vpop.f32.mrf.mxu0
  %v1668 = vadd.f32 %v1499, %v1667
  %v1669 = vpop.f32.mrf.mxu0
  %v1670 = vadd.f32 %v1501, %v1669
  %1671 = vmatmul.bf16.gmra.mxu0 %v849
  %v1672 = vpop.f32.mrf.mxu0
  %v1673 = vadd.f32 %v1504, %v1672
  %v1674 = vpop.f32.mrf.mxu0
  %v1675 = vadd.f32 %v1506, %v1674
  %1676 = vmatmul.bf16.gmra.mxu0 %v853
  %v1677 = vpop.f32.mrf.mxu0
  %v1678 = vadd.f32 %v1509, %v1677
  %v1679 = vpop.f32.mrf.mxu0
  %v1680 = vadd.f32 %v1511, %v1679
  %1681 = vdwg.mxu0
  %1682 = vmatpush.bf16.msra.mxu0 %v1142
  %1683 = vmatpush.bf16.msra.mxu0 %v1141
  %1684 = vmatpush.bf16.msra.mxu0 %v1140
  %1685 = vmatpush.bf16.msra.mxu0 %v1139
  %1686 = vmatpush.bf16.msra.mxu0 %v1138
  %1687 = vmatpush.bf16.msra.mxu0 %v1137
  %1688 = vmatpush.bf16.msra.mxu0 %v1136
  %1689 = vmatpush.bf16.msra.mxu0 %v1135
  %1690 = vmatmul.bf16.gmra.mxu0 %v730
  %v1691 = vpop.f32.mrf.mxu0
  %v1692 = vadd.f32 %v1523, %v1691
  %v1693 = vpop.f32.mrf.mxu0
  %v1694 = vadd.f32 %v1525, %v1693
  %1695 = vmatmul.bf16.gmra.mxu0 %v734
  %v1696 = vpop.f32.mrf.mxu0
  %v1697 = vadd.f32 %v1528, %v1696
  %v1698 = vpop.f32.mrf.mxu0
  %v1699 = vadd.f32 %v1530, %v1698
  %1700 = vmatmul.bf16.gmra.mxu0 %v738
  %v1701 = vpop.f32.mrf.mxu0
  %v1702 = vadd.f32 %v1533, %v1701
  %v1703 = vpop.f32.mrf.mxu0
  %v1704 = vadd.f32 %v1535, %v1703
  %1705 = vmatmul.bf16.gmra.mxu0 %v742
  %v1706 = vpop.f32.mrf.mxu0
  %v1707 = vadd.f32 %v1538, %v1706
  %v1708 = vpop.f32.mrf.mxu0
  %v1709 = vadd.f32 %v1540, %v1708
  %1710 = vmatmul.bf16.gmra.mxu0 %v746
  %v1711 = vpop.f32.mrf.mxu0
  %v1712 = vadd.f32 %v1543, %v1711
  %v1713 = vpop.f32.mrf.mxu0
  %v1714 = vadd.f32 %v1545, %v1713
  %1715 = vmatmul.bf16.gmra.mxu0 %v750
  %v1716 = vpop.f32.mrf.mxu0
  %v1717 = vadd.f32 %v1548, %v1716
  %v1718 = vpop.f32.mrf.mxu0
  %v1719 = vadd.f32 %v1550, %v1718
  %1720 = vmatmul.bf16.gmra.mxu0 %v754
  %v1721 = vpop.f32.mrf.mxu0
  %v1722 = vadd.f32 %v1553, %v1721
  %v1723 = vpop.f32.mrf.mxu0
  %v1724 = vadd.f32 %v1555, %v1723
  %1725 = vmatmul.bf16.gmra.mxu0 %v758
  %v1726 = vpop.f32.mrf.mxu0
  %v1727 = vadd.f32 %v1558, %v1726
  %v1728 = vpop.f32.mrf.mxu0
  %v1729 = vadd.f32 %v1560, %v1728
  %1730 = vmatmul.bf16.gmra.mxu0 %v762
  %v1731 = vpop.f32.mrf.mxu0
  %v1732 = vadd.f32 %v1563, %v1731
  %v1733 = vpop.f32.mrf.mxu0
  %v1734 = vadd.f32 %v1565, %v1733
  %1735 = vmatmul.bf16.gmra.mxu0 %v766
  %v1736 = vpop.f32.mrf.mxu0
  %v1737 = vadd.f32 %v1568, %v1736
  %v1738 = vpop.f32.mrf.mxu0
  %v1739 = vadd.f32 %v1570, %v1738
  %1740 = vmatmul.bf16.gmra.mxu0 %v770
  %v1741 = vpop.f32.mrf.mxu0
  %v1742 = vadd.f32 %v1573, %v1741
  %v1743 = vpop.f32.mrf.mxu0
  %v1744 = vadd.f32 %v1575, %v1743
  %1745 = vmatmul.bf16.gmra.mxu0 %v774
  %v1746 = vpop.f32.mrf.mxu0
  %v1747 = vadd.f32 %v1578, %v1746
  %v1748 = vpop.f32.mrf.mxu0
  %v1749 = vadd.f32 %v1580, %v1748
  %1750 = vmatmul.bf16.gmra.mxu0 %v778
  %v1751 = vpop.f32.mrf.mxu0
  %v1752 = vadd.f32 %v1583, %v1751
  %v1753 = vpop.f32.mrf.mxu0
  %v1754 = vadd.f32 %v1585, %v1753
  %1755 = vmatmul.bf16.gmra.mxu0 %v782
  %v1756 = vpop.f32.mrf.mxu0
  %v1757 = vadd.f32 %v1588, %v1756
  %v1758 = vpop.f32.mrf.mxu0
  %v1759 = vadd.f32 %v1590, %v1758
  %1760 = vmatmul.bf16.gmra.mxu0 %v786
  %v1761 = vpop.f32.mrf.mxu0
  %v1762 = vadd.f32 %v1593, %v1761
  %v1763 = vpop.f32.mrf.mxu0
  %v1764 = vadd.f32 %v1595, %v1763
  %1765 = vmatmul.bf16.gmra.mxu0 %v790
  %v1766 = vpop.f32.mrf.mxu0
  %v1767 = vadd.f32 %v1598, %v1766
  %v1768 = vpop.f32.mrf.mxu0
  %v1769 = vadd.f32 %v1600, %v1768
  %1770 = vmatmul.bf16.gmra.mxu0 %v794
  %v1771 = vpop.f32.mrf.mxu0
  %v1772 = vadd.f32 %v1603, %v1771
  %v1773 = vpop.f32.mrf.mxu0
  %v1774 = vadd.f32 %v1605, %v1773
  %1775 = vmatmul.bf16.gmra.mxu0 %v798
  %v1776 = vpop.f32.mrf.mxu0
  %v1777 = vadd.f32 %v1608, %v1776
  %v1778 = vpop.f32.mrf.mxu0
  %v1779 = vadd.f32 %v1610, %v1778
  %1780 = vmatmul.bf16.gmra.mxu0 %v802
  %v1781 = vpop.f32.mrf.mxu0
  %v1782 = vadd.f32 %v1613, %v1781
  %v1783 = vpop.f32.mrf.mxu0
  %v1784 = vadd.f32 %v1615, %v1783
  %1785 = vmatmul.bf16.gmra.mxu0 %v806
  %v1786 = vpop.f32.mrf.mxu0
  %v1787 = vadd.f32 %v1618, %v1786
  %v1788 = vpop.f32.mrf.mxu0
  %v1789 = vadd.f32 %v1620, %v1788
  %1790 = vmatmul.bf16.gmra.mxu0 %v810
  %v1791 = vpop.f32.mrf.mxu0
  %v1792 = vadd.f32 %v1623, %v1791
  %v1793 = vpop.f32.mrf.mxu0
  %v1794 = vadd.f32 %v1625, %v1793
  %1795 = vmatmul.bf16.gmra.mxu0 %v814
  %v1796 = vpop.f32.mrf.mxu0
  %v1797 = vadd.f32 %v1628, %v1796
  %v1798 = vpop.f32.mrf.mxu0
  %v1799 = vadd.f32 %v1630, %v1798
  %1800 = vmatmul.bf16.gmra.mxu0 %v818
  %v1801 = vpop.f32.mrf.mxu0
  %v1802 = vadd.f32 %v1633, %v1801
  %v1803 = vpop.f32.mrf.mxu0
  %v1804 = vadd.f32 %v1635, %v1803
  %1805 = vmatmul.bf16.gmra.mxu0 %v822
  %v1806 = vpop.f32.mrf.mxu0
  %v1807 = vadd.f32 %v1638, %v1806
  %v1808 = vpop.f32.mrf.mxu0
  %v1809 = vadd.f32 %v1640, %v1808
  %1810 = vmatmul.bf16.gmra.mxu0 %v826
  %v1811 = vpop.f32.mrf.mxu0
  %v1812 = vadd.f32 %v1643, %v1811
  %v1813 = vpop.f32.mrf.mxu0
  %v1814 = vadd.f32 %v1645, %v1813
  %1815 = vmatmul.bf16.gmra.mxu0 %v830
  %v1816 = vpop.f32.mrf.mxu0
  %v1817 = vadd.f32 %v1648, %v1816
  %v1818 = vpop.f32.mrf.mxu0
  %v1819 = vadd.f32 %v1650, %v1818
  %1820 = vmatmul.bf16.gmra.mxu0 %v834
  %v1821 = vpop.f32.mrf.mxu0
  %v1822 = vadd.f32 %v1653, %v1821
  %v1823 = vpop.f32.mrf.mxu0
  %v1824 = vadd.f32 %v1655, %v1823
  %1825 = vmatmul.bf16.gmra.mxu0 %v838
  %v1826 = vpop.f32.mrf.mxu0
  %v1827 = vadd.f32 %v1658, %v1826
  %v1828 = vpop.f32.mrf.mxu0
  %v1829 = vadd.f32 %v1660, %v1828
  %1830 = vmatmul.bf16.gmra.mxu0 %v842
  %v1831 = vpop.f32.mrf.mxu0
  %v1832 = vadd.f32 %v1663, %v1831
  %v1833 = vpop.f32.mrf.mxu0
  %v1834 = vadd.f32 %v1665, %v1833
  %1835 = vmatmul.bf16.gmra.mxu0 %v846
  %v1836 = vpop.f32.mrf.mxu0
  %v1837 = vadd.f32 %v1668, %v1836
  %v1838 = vpop.f32.mrf.mxu0
  %v1839 = vadd.f32 %v1670, %v1838
  %1840 = vmatmul.bf16.gmra.mxu0 %v850
  %v1841 = vpop.f32.mrf.mxu0
  %v1842 = vadd.f32 %v1673, %v1841
  %v1843 = vpop.f32.mrf.mxu0
  %v1844 = vadd.f32 %v1675, %v1843
  %1845 = vmatmul.bf16.gmra.mxu0 %v854
  %v1846 = vpop.f32.mrf.mxu0
  %v1847 = vadd.f32 %v1678, %v1846
  %v1848 = vpop.f32.mrf.mxu0
  %v1849 = vadd.f32 %v1680, %v1848
  %1850 = vdwg.mxu0
  %v1851 = vadd.f32 %v151, %v1692
  %v1852 = vadd.f32 %v152, %v1694
  %v1853 = vadd.f32 %v153, %v1697
  %v1854 = vadd.f32 %v154, %v1699
  %v1855 = vadd.f32 %v155, %v1702
  %v1856 = vadd.f32 %v156, %v1704
  %v1857 = vadd.f32 %v157, %v1707
  %v1858 = vadd.f32 %v158, %v1709
  %v1859 = vadd.f32 %v159, %v1712
  %v1860 = vadd.f32 %v160, %v1714
  %v1861 = vadd.f32 %v161, %v1717
  %v1862 = vadd.f32 %v162, %v1719
  %v1863 = vadd.f32 %v163, %v1722
  %v1864 = vadd.f32 %v164, %v1724
  %v1865 = vadd.f32 %v165, %v1727
  %v1866 = vadd.f32 %v166, %v1729
  %v1867 = vadd.f32 %v167, %v1732
  %v1868 = vadd.f32 %v168, %v1734
  %v1869 = vadd.f32 %v169, %v1737
  %v1870 = vadd.f32 %v170, %v1739
  %v1871 = vadd.f32 %v171, %v1742
  %v1872 = vadd.f32 %v172, %v1744
  %v1873 = vadd.f32 %v173, %v1747
  %v1874 = vadd.f32 %v174, %v1749
  %v1875 = vadd.f32 %v175, %v1752
  %v1876 = vadd.f32 %v176, %v1754
  %v1877 = vadd.f32 %v177, %v1757
  %v1878 = vadd.f32 %v178, %v1759
  %v1879 = vadd.f32 %v179, %v1762
  %v1880 = vadd.f32 %v180, %v1764
  %v1881 = vadd.f32 %v181, %v1767
  %v1882 = vadd.f32 %v182, %v1769
  %v1883 = vadd.f32 %v183, %v1772
  %v1884 = vadd.f32 %v184, %v1774
  %v1885 = vadd.f32 %v185, %v1777
  %v1886 = vadd.f32 %v186, %v1779
  %v1887 = vadd.f32 %v187, %v1782
  %v1888 = vadd.f32 %v188, %v1784
  %v1889 = vadd.f32 %v189, %v1787
  %v1890 = vadd.f32 %v190, %v1789
  %v1891 = vadd.f32 %v191, %v1792
  %v1892 = vadd.f32 %v192, %v1794
  %v1893 = vadd.f32 %v193, %v1797
  %v1894 = vadd.f32 %v194, %v1799
  %v1895 = vadd.f32 %v195, %v1802
  %v1896 = vadd.f32 %v196, %v1804
  %v1897 = vadd.f32 %v197, %v1807
  %v1898 = vadd.f32 %v198, %v1809
  %v1899 = vadd.f32 %v199, %v1812
  %v1900 = vadd.f32 %v200, %v1814
  %v1901 = vadd.f32 %v201, %v1817
  %v1902 = vadd.f32 %v202, %v1819
  %v1903 = vadd.f32 %v203, %v1822
  %v1904 = vadd.f32 %v204, %v1824
  %v1905 = vadd.f32 %v205, %v1827
  %v1906 = vadd.f32 %v206, %v1829
  %v1907 = vadd.f32 %v207, %v1832
  %v1908 = vadd.f32 %v208, %v1834
  %v1909 = vadd.f32 %v209, %v1837
  %v1910 = vadd.f32 %v210, %v1839
  %v1911 = vadd.f32 %v211, %v1842
  %v1912 = vadd.f32 %v212, %v1844
  %v1913 = vadd.f32 %v213, %v1847
  %v1914 = vadd.f32 %v214, %v1849
  %1915 = vst [vmem:[#allocation2] sm:$0xff] %v1851
  %1916 = vst [vmem:[#allocation2 + $0x8] sm:$0xff] %v1852
  %1917 = vst [vmem:[#allocation2 + $0x10] sm:$0xff] %v1853
  %1918 = vst [vmem:[#allocation2 + $0x18] sm:$0xff] %v1854
  %1919 = vst [vmem:[#allocation2 + $0x20] sm:$0xff] %v1855
  %1920 = vst [vmem:[#allocation2 + $0x28] sm:$0xff] %v1856
  %1921 = vst [vmem:[#allocation2 + $0x30] sm:$0xff] %v1857
  %1922 = vst [vmem:[#allocation2 + $0x38] sm:$0xff] %v1858
  %1923 = vst [vmem:[#allocation2 + $0x40] sm:$0xff] %v1859
  %1924 = vst [vmem:[#allocation2 + $0x48] sm:$0xff] %v1860
  %1925 = vst [vmem:[#allocation2 + $0x50] sm:$0xff] %v1861
  %1926 = vst [vmem:[#allocation2 + $0x58] sm:$0xff] %v1862
  %1927 = vst [vmem:[#allocation2 + $0x60] sm:$0xff] %v1863
  %1928 = vst [vmem:[#allocation2 + $0x68] sm:$0xff] %v1864
  %1929 = vst [vmem:[#allocation2 + $0x70] sm:$0xff] %v1865
  %1930 = vst [vmem:[#allocation2 + $0x78] sm:$0xff] %v1866
  %1931 = vst [vmem:[#allocation2 + $0x80] sm:$0xff] %v1867
  %1932 = vst [vmem:[#allocation2 + $0x88] sm:$0xff] %v1868
  %1933 = vst [vmem:[#allocation2 + $0x90] sm:$0xff] %v1869
  %1934 = vst [vmem:[#allocation2 + $0x98] sm:$0xff] %v1870
  %1935 = vst [vmem:[#allocation2 + $0xa0] sm:$0xff] %v1871
  %1936 = vst [vmem:[#allocation2 + $0xa8] sm:$0xff] %v1872
  %1937 = vst [vmem:[#allocation2 + $0xb0] sm:$0xff] %v1873
  %1938 = vst [vmem:[#allocation2 + $0xb8] sm:$0xff] %v1874
  %1939 = vst [vmem:[#allocation2 + $0xc0] sm:$0xff] %v1875
  %1940 = vst [vmem:[#allocation2 + $0xc8] sm:$0xff] %v1876
  %1941 = vst [vmem:[#allocation2 + $0xd0] sm:$0xff] %v1877
  %1942 = vst [vmem:[#allocation2 + $0xd8] sm:$0xff] %v1878
  %1943 = vst [vmem:[#allocation2 + $0xe0] sm:$0xff] %v1879
  %1944 = vst [vmem:[#allocation2 + $0xe8] sm:$0xff] %v1880
  %1945 = vst [vmem:[#allocation2 + $0xf0] sm:$0xff] %v1881
  %1946 = vst [vmem:[#allocation2 + $0xf8] sm:$0xff] %v1882
  %1947 = vst [vmem:[#allocation2 + $0x100] sm:$0xff] %v1883
  %1948 = vst [vmem:[#allocation2 + $0x108] sm:$0xff] %v1884
  %1949 = vst [vmem:[#allocation2 + $0x110] sm:$0xff] %v1885
  %1950 = vst [vmem:[#allocation2 + $0x118] sm:$0xff] %v1886
  %1951 = vst [vmem:[#allocation2 + $0x120] sm:$0xff] %v1887
  %1952 = vst [vmem:[#allocation2 + $0x128] sm:$0xff] %v1888
  %1953 = vst [vmem:[#allocation2 + $0x130] sm:$0xff] %v1889
  %1954 = vst [vmem:[#allocation2 + $0x138] sm:$0xff] %v1890
  %1955 = vst [vmem:[#allocation2 + $0x140] sm:$0xff] %v1891
  %1956 = vst [vmem:[#allocation2 + $0x148] sm:$0xff] %v1892
  %1957 = vst [vmem:[#allocation2 + $0x150] sm:$0xff] %v1893
  %1958 = vst [vmem:[#allocation2 + $0x158] sm:$0xff] %v1894
  %1959 = vst [vmem:[#allocation2 + $0x160] sm:$0xff] %v1895
  %1960 = vst [vmem:[#allocation2 + $0x168] sm:$0xff] %v1896
  %1961 = vst [vmem:[#allocation2 + $0x170] sm:$0xff] %v1897
  %1962 = vst [vmem:[#allocation2 + $0x178] sm:$0xff] %v1898
  %1963 = vst [vmem:[#allocation2 + $0x180] sm:$0xff] %v1899
  %1964 = vst [vmem:[#allocation2 + $0x188] sm:$0xff] %v1900
  %1965 = vst [vmem:[#allocation2 + $0x190] sm:$0xff] %v1901
  %1966 = vst [vmem:[#allocation2 + $0x198] sm:$0xff] %v1902
  %1967 = vst [vmem:[#allocation2 + $0x1a0] sm:$0xff] %v1903
  %1968 = vst [vmem:[#allocation2 + $0x1a8] sm:$0xff] %v1904
  %1969 = vst [vmem:[#allocation2 + $0x1b0] sm:$0xff] %v1905
  %1970 = vst [vmem:[#allocation2 + $0x1b8] sm:$0xff] %v1906
  %1971 = vst [vmem:[#allocation2 + $0x1c0] sm:$0xff] %v1907
  %1972 = vst [vmem:[#allocation2 + $0x1c8] sm:$0xff] %v1908
  %1973 = vst [vmem:[#allocation2 + $0x1d0] sm:$0xff] %v1909
  %1974 = vst [vmem:[#allocation2 + $0x1d8] sm:$0xff] %v1910
  %1975 = vst [vmem:[#allocation2 + $0x1e0] sm:$0xff] %v1911
  %1976 = vst [vmem:[#allocation2 + $0x1e8] sm:$0xff] %v1912
  %1977 = vst [vmem:[#allocation2 + $0x1f0] sm:$0xff] %v1913
  %1978 = vst [vmem:[#allocation2 + $0x1f8] sm:$0xff] %v1914
  // Predicated region
  $region18: #{stmgsc_forward.3} parent=0 // pred_check
    %p1979 = pneg %p14
  $region19: #{stmgsc_forward.3} parent=0 // pred_check_branch
    %1981 = sbr.rel (%p1979) target = $region21
  $region20: #{stmgsc_forward.3} parent=0 // pred_region
    %v1982 = vld [vmem:[#allocation2] sm:$0xff]
    %v1983 = vld [vmem:[#allocation2 + $0x8] sm:$0xff]
    %v1984 = vld [vmem:[#allocation2 + $0x10] sm:$0xff]
    %v1985 = vld [vmem:[#allocation2 + $0x18] sm:$0xff]
    %v1986 = vld [vmem:[#allocation2 + $0x20] sm:$0xff]
    %v1987 = vld [vmem:[#allocation2 + $0x28] sm:$0xff]
    %v1988 = vld [vmem:[#allocation2 + $0x30] sm:$0xff]
    %v1989 = vld [vmem:[#allocation2 + $0x38] sm:$0xff]
    %v1990 = vld [vmem:[#allocation2 + $0x40] sm:$0xff]
    %v1991 = vld [vmem:[#allocation2 + $0x48] sm:$0xff]
    %v1992 = vld [vmem:[#allocation2 + $0x50] sm:$0xff]
    %v1993 = vld [vmem:[#allocation2 + $0x58] sm:$0xff]
    %v1994 = vld [vmem:[#allocation2 + $0x60] sm:$0xff]
    %v1995 = vld [vmem:[#allocation2 + $0x68] sm:$0xff]
    %v1996 = vld [vmem:[#allocation2 + $0x70] sm:$0xff]
    %v1997 = vld [vmem:[#allocation2 + $0x78] sm:$0xff]
    %v1998 = vld [vmem:[#allocation2 + $0x80] sm:$0xff]
    %v1999 = vld [vmem:[#allocation2 + $0x88] sm:$0xff]
    %v2000 = vld [vmem:[#allocation2 + $0x90] sm:$0xff]
    %v2001 = vld [vmem:[#allocation2 + $0x98] sm:$0xff]
    %v2002 = vld [vmem:[#allocation2 + $0xa0] sm:$0xff]
    %v2003 = vld [vmem:[#allocation2 + $0xa8] sm:$0xff]
    %v2004 = vld [vmem:[#allocation2 + $0xb0] sm:$0xff]
    %v2005 = vld [vmem:[#allocation2 + $0xb8] sm:$0xff]
    %v2006 = vld [vmem:[#allocation2 + $0xc0] sm:$0xff]
    %v2007 = vld [vmem:[#allocation2 + $0xc8] sm:$0xff]
    %v2008 = vld [vmem:[#allocation2 + $0xd0] sm:$0xff]
    %v2009 = vld [vmem:[#allocation2 + $0xd8] sm:$0xff]
    %v2010 = vld [vmem:[#allocation2 + $0xe0] sm:$0xff]
    %v2011 = vld [vmem:[#allocation2 + $0xe8] sm:$0xff]
    %v2012 = vld [vmem:[#allocation2 + $0xf0] sm:$0xff]
    %v2013 = vld [vmem:[#allocation2 + $0xf8] sm:$0xff]
    %v2014 = vld [vmem:[#allocation2 + $0x100] sm:$0xff]
    %v2015 = vld [vmem:[#allocation2 + $0x108] sm:$0xff]
    %v2016 = vld [vmem:[#allocation2 + $0x110] sm:$0xff]
    %v2017 = vld [vmem:[#allocation2 + $0x118] sm:$0xff]
    %v2018 = vld [vmem:[#allocation2 + $0x120] sm:$0xff]
    %v2019 = vld [vmem:[#allocation2 + $0x128] sm:$0xff]
    %v2020 = vld [vmem:[#allocation2 + $0x130] sm:$0xff]
    %v2021 = vld [vmem:[#allocation2 + $0x138] sm:$0xff]
    %v2022 = vld [vmem:[#allocation2 + $0x140] sm:$0xff]
    %v2023 = vld [vmem:[#allocation2 + $0x148] sm:$0xff]
    %v2024 = vld [vmem:[#allocation2 + $0x150] sm:$0xff]
    %v2025 = vld [vmem:[#allocation2 + $0x158] sm:$0xff]
    %v2026 = vld [vmem:[#allocation2 + $0x160] sm:$0xff]
    %v2027 = vld [vmem:[#allocation2 + $0x168] sm:$0xff]
    %v2028 = vld [vmem:[#allocation2 + $0x170] sm:$0xff]
    %v2029 = vld [vmem:[#allocation2 + $0x178] sm:$0xff]
    %v2030 = vld [vmem:[#allocation2 + $0x180] sm:$0xff]
    %v2031 = vld [vmem:[#allocation2 + $0x188] sm:$0xff]
    %v2032 = vld [vmem:[#allocation2 + $0x190] sm:$0xff]
    %v2033 = vld [vmem:[#allocation2 + $0x198] sm:$0xff]
    %v2034 = vld [vmem:[#allocation2 + $0x1a0] sm:$0xff]
    %v2035 = vld [vmem:[#allocation2 + $0x1a8] sm:$0xff]
    %v2036 = vld [vmem:[#allocation2 + $0x1b0] sm:$0xff]
    %v2037 = vld [vmem:[#allocation2 + $0x1b8] sm:$0xff]
    %v2038 = vld [vmem:[#allocation2 + $0x1c0] sm:$0xff]
    %v2039 = vld [vmem:[#allocation2 + $0x1c8] sm:$0xff]
    %v2040 = vld [vmem:[#allocation2 + $0x1d0] sm:$0xff]
    %v2041 = vld [vmem:[#allocation2 + $0x1d8] sm:$0xff]
    %v2042 = vld [vmem:[#allocation2 + $0x1e0] sm:$0xff]
    %v2043 = vld [vmem:[#allocation2 + $0x1e8] sm:$0xff]
    %v2044 = vld [vmem:[#allocation2 + $0x1f0] sm:$0xff]
    %v2045 = vld [vmem:[#allocation2 + $0x1f8] sm:$0xff]
    %v2046 = vmax.f32 %v1982, 0.0
    %v2047 = vmax.f32 %v1983, 0.0
    %v2048 = vmax.f32 %v1984, 0.0
    %v2049 = vmax.f32 %v1985, 0.0
    %v2050 = vmax.f32 %v1986, 0.0
    %v2051 = vmax.f32 %v1987, 0.0
    %v2052 = vmax.f32 %v1988, 0.0
    %v2053 = vmax.f32 %v1989, 0.0
    %v2054 = vmax.f32 %v1990, 0.0
    %v2055 = vmax.f32 %v1991, 0.0
    %v2056 = vmax.f32 %v1992, 0.0
    %v2057 = vmax.f32 %v1993, 0.0
    %v2058 = vmax.f32 %v1994, 0.0
    %v2059 = vmax.f32 %v1995, 0.0
    %v2060 = vmax.f32 %v1996, 0.0
    %v2061 = vmax.f32 %v1997, 0.0
    %v2062 = vmax.f32 %v1998, 0.0
    %v2063 = vmax.f32 %v1999, 0.0
    %v2064 = vmax.f32 %v2000, 0.0
    %v2065 = vmax.f32 %v2001, 0.0
    %v2066 = vmax.f32 %v2002, 0.0
    %v2067 = vmax.f32 %v2003, 0.0
    %v2068 = vmax.f32 %v2004, 0.0
    %v2069 = vmax.f32 %v2005, 0.0
    %v2070 = vmax.f32 %v2006, 0.0
    %v2071 = vmax.f32 %v2007, 0.0
    %v2072 = vmax.f32 %v2008, 0.0
    %v2073 = vmax.f32 %v2009, 0.0
    %v2074 = vmax.f32 %v2010, 0.0
    %v2075 = vmax.f32 %v2011, 0.0
    %v2076 = vmax.f32 %v2012, 0.0
    %v2077 = vmax.f32 %v2013, 0.0
    %v2078 = vmax.f32 %v2014, 0.0
    %v2079 = vmax.f32 %v2015, 0.0
    %v2080 = vmax.f32 %v2016, 0.0
    %v2081 = vmax.f32 %v2017, 0.0
    %v2082 = vmax.f32 %v2018, 0.0
    %v2083 = vmax.f32 %v2019, 0.0
    %v2084 = vmax.f32 %v2020, 0.0
    %v2085 = vmax.f32 %v2021, 0.0
    %v2086 = vmax.f32 %v2022, 0.0
    %v2087 = vmax.f32 %v2023, 0.0
    %v2088 = vmax.f32 %v2024, 0.0
    %v2089 = vmax.f32 %v2025, 0.0
    %v2090 = vmax.f32 %v2026, 0.0
    %v2091 = vmax.f32 %v2027, 0.0
    %v2092 = vmax.f32 %v2028, 0.0
    %v2093 = vmax.f32 %v2029, 0.0
    %v2094 = vmax.f32 %v2030, 0.0
    %v2095 = vmax.f32 %v2031, 0.0
    %v2096 = vmax.f32 %v2032, 0.0
    %v2097 = vmax.f32 %v2033, 0.0
    %v2098 = vmax.f32 %v2034, 0.0
    %v2099 = vmax.f32 %v2035, 0.0
    %v2100 = vmax.f32 %v2036, 0.0
    %v2101 = vmax.f32 %v2037, 0.0
    %v2102 = vmax.f32 %v2038, 0.0
    %v2103 = vmax.f32 %v2039, 0.0
    %v2104 = vmax.f32 %v2040, 0.0
    %v2105 = vmax.f32 %v2041, 0.0
    %v2106 = vmax.f32 %v2042, 0.0
    %v2107 = vmax.f32 %v2043, 0.0
    %v2108 = vmax.f32 %v2044, 0.0
    %v2109 = vmax.f32 %v2045, 0.0
    %v2110 = vpack.c.bf16 %v2047, %v2046
    %v2111 = vpack.c.bf16 %v2049, %v2048
    %v2112 = vpack.c.bf16 %v2051, %v2050
    %v2113 = vpack.c.bf16 %v2053, %v2052
    %v2114 = vpack.c.bf16 %v2055, %v2054
    %v2115 = vpack.c.bf16 %v2057, %v2056
    %v2116 = vpack.c.bf16 %v2059, %v2058
    %v2117 = vpack.c.bf16 %v2061, %v2060
    %v2118 = vpack.c.bf16 %v2063, %v2062
    %v2119 = vpack.c.bf16 %v2065, %v2064
    %v2120 = vpack.c.bf16 %v2067, %v2066
    %v2121 = vpack.c.bf16 %v2069, %v2068
    %v2122 = vpack.c.bf16 %v2071, %v2070
    %v2123 = vpack.c.bf16 %v2073, %v2072
    %v2124 = vpack.c.bf16 %v2075, %v2074
    %v2125 = vpack.c.bf16 %v2077, %v2076
    %v2126 = vpack.c.bf16 %v2079, %v2078
    %v2127 = vpack.c.bf16 %v2081, %v2080
    %v2128 = vpack.c.bf16 %v2083, %v2082
    %v2129 = vpack.c.bf16 %v2085, %v2084
    %v2130 = vpack.c.bf16 %v2087, %v2086
    %v2131 = vpack.c.bf16 %v2089, %v2088
    %v2132 = vpack.c.bf16 %v2091, %v2090
    %v2133 = vpack.c.bf16 %v2093, %v2092
    %v2134 = vpack.c.bf16 %v2095, %v2094
    %v2135 = vpack.c.bf16 %v2097, %v2096
    %v2136 = vpack.c.bf16 %v2099, %v2098
    %v2137 = vpack.c.bf16 %v2101, %v2100
    %v2138 = vpack.c.bf16 %v2103, %v2102
    %v2139 = vpack.c.bf16 %v2105, %v2104
    %v2140 = vpack.c.bf16 %v2107, %v2106
    %v2141 = vpack.c.bf16 %v2109, %v2108
    %v2142 = vld [vmem:[%s2] sm:$0xf]
    %v2143 = vld [vmem:[%s2 + $0x4] sm:$0xf]
    %v2144 = vld [vmem:[%s2 + $0x8] sm:$0xf]
    %v2145 = vld [vmem:[%s2 + $0xc] sm:$0xf]
    %v2146 = vld [vmem:[%s2 + $0x10] sm:$0xf]
    %v2147 = vld [vmem:[%s2 + $0x14] sm:$0xf]
    %v2148 = vld [vmem:[%s2 + $0x18] sm:$0xf]
    %v2149 = vld [vmem:[%s2 + $0x1c] sm:$0xf]
    %v2150 = vld [vmem:[%s2 + $0x20] sm:$0xf]
    %v2151 = vld [vmem:[%s2 + $0x24] sm:$0xf]
    %v2152 = vld [vmem:[%s2 + $0x28] sm:$0xf]
    %v2153 = vld [vmem:[%s2 + $0x2c] sm:$0xf]
    %v2154 = vld [vmem:[%s2 + $0x30] sm:$0xf]
    %v2155 = vld [vmem:[%s2 + $0x34] sm:$0xf]
    %v2156 = vld [vmem:[%s2 + $0x38] sm:$0xf]
    %v2157 = vld [vmem:[%s2 + $0x3c] sm:$0xf]
    %v2174 = vunpack.c.l.b16 %v2142
    %v2175 = vunpack.c.l.b16 %v2143
    %v2176 = vunpack.c.l.b16 %v2144
    %v2177 = vunpack.c.l.b16 %v2145
    %v2178 = vunpack.c.l.b16 %v2146
    %v2179 = vunpack.c.l.b16 %v2147
    %v2180 = vunpack.c.l.b16 %v2148
    %v2181 = vunpack.c.l.b16 %v2149
    %v2182 = vunpack.c.l.b16 %v2150
    %v2183 = vunpack.c.l.b16 %v2151
    %v2184 = vunpack.c.l.b16 %v2152
    %v2185 = vunpack.c.l.b16 %v2153
    %v2186 = vunpack.c.l.b16 %v2154
    %v2187 = vunpack.c.l.b16 %v2155
    %v2188 = vunpack.c.l.b16 %v2156
    %v2189 = vunpack.c.l.b16 %v2157
    %v2190 = vpack.c.b16 %v2175, %v2174
    %v2191 = vpack.c.b16 %v2177, %v2176
    %v2192 = vpack.c.b16 %v2179, %v2178
    %v2193 = vpack.c.b16 %v2181, %v2180
    %v2194 = vpack.c.b16 %v2183, %v2182
    %v2195 = vpack.c.b16 %v2185, %v2184
    %v2196 = vpack.c.b16 %v2187, %v2186
    %v2197 = vpack.c.b16 %v2189, %v2188
    %2206 = vmatpush.bf16.msra.mxu0 %v2197
    %2207 = vmatpush.bf16.msra.mxu0 %v2196
    %2208 = vmatpush.bf16.msra.mxu0 %v2195
    %2209 = vmatpush.bf16.msra.mxu0 %v2194
    %2210 = vmatpush.bf16.msra.mxu0 %v2193
    %2211 = vmatpush.bf16.msra.mxu0 %v2192
    %2212 = vmatpush.bf16.msra.mxu0 %v2191
    %2213 = vmatpush.bf16.msra.mxu0 %v2190
    %2214 = vmatmul.bf16.gmra.mxu0 %v2110
    %v2215 = vpop.f32.mrf.mxu0
    %v2216 = vadd.f32 0.0, %v2215
    %v2217 = vpop.f32.mrf.mxu0
    %v2218 = vadd.f32 0.0, %v2217
    %2219 = vmatmul.bf16.gmra.mxu0 %v2111
    %v2220 = vpop.f32.mrf.mxu0
    %v2221 = vadd.f32 0.0, %v2220
    %v2222 = vpop.f32.mrf.mxu0
    %v2223 = vadd.f32 0.0, %v2222
    %2224 = vmatmul.bf16.gmra.mxu0 %v2112
    %v2225 = vpop.f32.mrf.mxu0
    %v2226 = vadd.f32 0.0, %v2225
    %v2227 = vpop.f32.mrf.mxu0
    %v2228 = vadd.f32 0.0, %v2227
    %2229 = vmatmul.bf16.gmra.mxu0 %v2113
    %v2230 = vpop.f32.mrf.mxu0
    %v2231 = vadd.f32 0.0, %v2230
    %v2232 = vpop.f32.mrf.mxu0
    %v2233 = vadd.f32 0.0, %v2232
    %2234 = vmatmul.bf16.gmra.mxu0 %v2114
    %v2235 = vpop.f32.mrf.mxu0
    %v2236 = vadd.f32 0.0, %v2235
    %v2237 = vpop.f32.mrf.mxu0
    %v2238 = vadd.f32 0.0, %v2237
    %2239 = vmatmul.bf16.gmra.mxu0 %v2115
    %v2240 = vpop.f32.mrf.mxu0
    %v2241 = vadd.f32 0.0, %v2240
    %v2242 = vpop.f32.mrf.mxu0
    %v2243 = vadd.f32 0.0, %v2242
    %2244 = vmatmul.bf16.gmra.mxu0 %v2116
    %v2245 = vpop.f32.mrf.mxu0
    %v2246 = vadd.f32 0.0, %v2245
    %v2247 = vpop.f32.mrf.mxu0
    %v2248 = vadd.f32 0.0, %v2247
    %2249 = vmatmul.bf16.gmra.mxu0 %v2117
    %v2250 = vpop.f32.mrf.mxu0
    %v2251 = vadd.f32 0.0, %v2250
    %v2252 = vpop.f32.mrf.mxu0
    %v2253 = vadd.f32 0.0, %v2252
    %2254 = vmatmul.bf16.gmra.mxu0 %v2118
    %v2255 = vpop.f32.mrf.mxu0
    %v2256 = vadd.f32 0.0, %v2255
    %v2257 = vpop.f32.mrf.mxu0
    %v2258 = vadd.f32 0.0, %v2257
    %2259 = vmatmul.bf16.gmra.mxu0 %v2119
    %v2260 = vpop.f32.mrf.mxu0
    %v2261 = vadd.f32 0.0, %v2260
    %v2262 = vpop.f32.mrf.mxu0
    %v2263 = vadd.f32 0.0, %v2262
    %2264 = vmatmul.bf16.gmra.mxu0 %v2120
    %v2265 = vpop.f32.mrf.mxu0
    %v2266 = vadd.f32 0.0, %v2265
    %v2267 = vpop.f32.mrf.mxu0
    %v2268 = vadd.f32 0.0, %v2267
    %2269 = vmatmul.bf16.gmra.mxu0 %v2121
    %v2270 = vpop.f32.mrf.mxu0
    %v2271 = vadd.f32 0.0, %v2270
    %v2272 = vpop.f32.mrf.mxu0
    %v2273 = vadd.f32 0.0, %v2272
    %2274 = vmatmul.bf16.gmra.mxu0 %v2122
    %v2275 = vpop.f32.mrf.mxu0
    %v2276 = vadd.f32 0.0, %v2275
    %v2277 = vpop.f32.mrf.mxu0
    %v2278 = vadd.f32 0.0, %v2277
    %2279 = vmatmul.bf16.gmra.mxu0 %v2123
    %v2280 = vpop.f32.mrf.mxu0
    %v2281 = vadd.f32 0.0, %v2280
    %v2282 = vpop.f32.mrf.mxu0
    %v2283 = vadd.f32 0.0, %v2282
    %2284 = vmatmul.bf16.gmra.mxu0 %v2124
    %v2285 = vpop.f32.mrf.mxu0
    %v2286 = vadd.f32 0.0, %v2285
    %v2287 = vpop.f32.mrf.mxu0
    %v2288 = vadd.f32 0.0, %v2287
    %2289 = vmatmul.bf16.gmra.mxu0 %v2125
    %v2290 = vpop.f32.mrf.mxu0
    %v2291 = vadd.f32 0.0, %v2290
    %v2292 = vpop.f32.mrf.mxu0
    %v2293 = vadd.f32 0.0, %v2292
    %2294 = vmatmul.bf16.gmra.mxu0 %v2126
    %v2295 = vpop.f32.mrf.mxu0
    %v2296 = vadd.f32 0.0, %v2295
    %v2297 = vpop.f32.mrf.mxu0
    %v2298 = vadd.f32 0.0, %v2297
    %2299 = vmatmul.bf16.gmra.mxu0 %v2127
    %v2300 = vpop.f32.mrf.mxu0
    %v2301 = vadd.f32 0.0, %v2300
    %v2302 = vpop.f32.mrf.mxu0
    %v2303 = vadd.f32 0.0, %v2302
    %2304 = vmatmul.bf16.gmra.mxu0 %v2128
    %v2305 = vpop.f32.mrf.mxu0
    %v2306 = vadd.f32 0.0, %v2305
    %v2307 = vpop.f32.mrf.mxu0
    %v2308 = vadd.f32 0.0, %v2307
    %2309 = vmatmul.bf16.gmra.mxu0 %v2129
    %v2310 = vpop.f32.mrf.mxu0
    %v2311 = vadd.f32 0.0, %v2310
    %v2312 = vpop.f32.mrf.mxu0
    %v2313 = vadd.f32 0.0, %v2312
    %2314 = vmatmul.bf16.gmra.mxu0 %v2130
    %v2315 = vpop.f32.mrf.mxu0
    %v2316 = vadd.f32 0.0, %v2315
    %v2317 = vpop.f32.mrf.mxu0
    %v2318 = vadd.f32 0.0, %v2317
    %2319 = vmatmul.bf16.gmra.mxu0 %v2131
    %v2320 = vpop.f32.mrf.mxu0
    %v2321 = vadd.f32 0.0, %v2320
    %v2322 = vpop.f32.mrf.mxu0
    %v2323 = vadd.f32 0.0, %v2322
    %2324 = vmatmul.bf16.gmra.mxu0 %v2132
    %v2325 = vpop.f32.mrf.mxu0
    %v2326 = vadd.f32 0.0, %v2325
    %v2327 = vpop.f32.mrf.mxu0
    %v2328 = vadd.f32 0.0, %v2327
    %2329 = vmatmul.bf16.gmra.mxu0 %v2133
    %v2330 = vpop.f32.mrf.mxu0
    %v2331 = vadd.f32 0.0, %v2330
    %v2332 = vpop.f32.mrf.mxu0
    %v2333 = vadd.f32 0.0, %v2332
    %2334 = vmatmul.bf16.gmra.mxu0 %v2134
    %v2335 = vpop.f32.mrf.mxu0
    %v2336 = vadd.f32 0.0, %v2335
    %v2337 = vpop.f32.mrf.mxu0
    %v2338 = vadd.f32 0.0, %v2337
    %2339 = vmatmul.bf16.gmra.mxu0 %v2135
    %v2340 = vpop.f32.mrf.mxu0
    %v2341 = vadd.f32 0.0, %v2340
    %v2342 = vpop.f32.mrf.mxu0
    %v2343 = vadd.f32 0.0, %v2342
    %2344 = vmatmul.bf16.gmra.mxu0 %v2136
    %v2345 = vpop.f32.mrf.mxu0
    %v2346 = vadd.f32 0.0, %v2345
    %v2347 = vpop.f32.mrf.mxu0
    %v2348 = vadd.f32 0.0, %v2347
    %2349 = vmatmul.bf16.gmra.mxu0 %v2137
    %v2350 = vpop.f32.mrf.mxu0
    %v2351 = vadd.f32 0.0, %v2350
    %v2352 = vpop.f32.mrf.mxu0
    %v2353 = vadd.f32 0.0, %v2352
    %2354 = vmatmul.bf16.gmra.mxu0 %v2138
    %v2355 = vpop.f32.mrf.mxu0
    %v2356 = vadd.f32 0.0, %v2355
    %v2357 = vpop.f32.mrf.mxu0
    %v2358 = vadd.f32 0.0, %v2357
    %2359 = vmatmul.bf16.gmra.mxu0 %v2139
    %v2360 = vpop.f32.mrf.mxu0
    %v2361 = vadd.f32 0.0, %v2360
    %v2362 = vpop.f32.mrf.mxu0
    %v2363 = vadd.f32 0.0, %v2362
    %2364 = vmatmul.bf16.gmra.mxu0 %v2140
    %v2365 = vpop.f32.mrf.mxu0
    %v2366 = vadd.f32 0.0, %v2365
    %v2367 = vpop.f32.mrf.mxu0
    %v2368 = vadd.f32 0.0, %v2367
    %2369 = vmatmul.bf16.gmra.mxu0 %v2141
    %v2370 = vpop.f32.mrf.mxu0
    %v2371 = vadd.f32 0.0, %v2370
    %v2372 = vpop.f32.mrf.mxu0
    %v2373 = vadd.f32 0.0, %v2372
    %2374 = vdwg.mxu0
    %v2375 = vpack.c.bf16 %v2216, %v2216
    %v2376 = vpack.c.bf16 %v2218, %v2218
    %v2377 = vpack.c.bf16 %v2221, %v2221
    %v2378 = vpack.c.bf16 %v2223, %v2223
    %v2379 = vpack.c.bf16 %v2226, %v2226
    %v2380 = vpack.c.bf16 %v2228, %v2228
    %v2381 = vpack.c.bf16 %v2231, %v2231
    %v2382 = vpack.c.bf16 %v2233, %v2233
    %v2383 = vpack.c.bf16 %v2236, %v2236
    %v2384 = vpack.c.bf16 %v2238, %v2238
    %v2385 = vpack.c.bf16 %v2241, %v2241
    %v2386 = vpack.c.bf16 %v2243, %v2243
    %v2387 = vpack.c.bf16 %v2246, %v2246
    %v2388 = vpack.c.bf16 %v2248, %v2248
    %v2389 = vpack.c.bf16 %v2251, %v2251
    %v2390 = vpack.c.bf16 %v2253, %v2253
    %v2391 = vpack.c.bf16 %v2256, %v2256
    %v2392 = vpack.c.bf16 %v2258, %v2258
    %v2393 = vpack.c.bf16 %v2261, %v2261
    %v2394 = vpack.c.bf16 %v2263, %v2263
    %v2395 = vpack.c.bf16 %v2266, %v2266
    %v2396 = vpack.c.bf16 %v2268, %v2268
    %v2397 = vpack.c.bf16 %v2271, %v2271
    %v2398 = vpack.c.bf16 %v2273, %v2273
    %v2399 = vpack.c.bf16 %v2276, %v2276
    %v2400 = vpack.c.bf16 %v2278, %v2278
    %v2401 = vpack.c.bf16 %v2281, %v2281
    %v2402 = vpack.c.bf16 %v2283, %v2283
    %v2403 = vpack.c.bf16 %v2286, %v2286
    %v2404 = vpack.c.bf16 %v2288, %v2288
    %v2405 = vpack.c.bf16 %v2291, %v2291
    %v2406 = vpack.c.bf16 %v2293, %v2293
    %v2407 = vpack.c.bf16 %v2296, %v2296
    %v2408 = vpack.c.bf16 %v2298, %v2298
    %v2409 = vpack.c.bf16 %v2301, %v2301
    %v2410 = vpack.c.bf16 %v2303, %v2303
    %v2411 = vpack.c.bf16 %v2306, %v2306
    %v2412 = vpack.c.bf16 %v2308, %v2308
    %v2413 = vpack.c.bf16 %v2311, %v2311
    %v2414 = vpack.c.bf16 %v2313, %v2313
    %v2415 = vpack.c.bf16 %v2316, %v2316
    %v2416 = vpack.c.bf16 %v2318, %v2318
    %v2417 = vpack.c.bf16 %v2321, %v2321
    %v2418 = vpack.c.bf16 %v2323, %v2323
    %v2419 = vpack.c.bf16 %v2326, %v2326
    %v2420 = vpack.c.bf16 %v2328, %v2328
    %v2421 = vpack.c.bf16 %v2331, %v2331
    %v2422 = vpack.c.bf16 %v2333, %v2333
    %v2423 = vpack.c.bf16 %v2336, %v2336
    %v2424 = vpack.c.bf16 %v2338, %v2338
    %v2425 = vpack.c.bf16 %v2341, %v2341
    %v2426 = vpack.c.bf16 %v2343, %v2343
    %v2427 = vpack.c.bf16 %v2346, %v2346
    %v2428 = vpack.c.bf16 %v2348, %v2348
    %v2429 = vpack.c.bf16 %v2351, %v2351
    %v2430 = vpack.c.bf16 %v2353, %v2353
    %v2431 = vpack.c.bf16 %v2356, %v2356
    %v2432 = vpack.c.bf16 %v2358, %v2358
    %v2433 = vpack.c.bf16 %v2361, %v2361
    %v2434 = vpack.c.bf16 %v2363, %v2363
    %v2435 = vpack.c.bf16 %v2366, %v2366
    %v2436 = vpack.c.bf16 %v2368, %v2368
    %v2437 = vpack.c.bf16 %v2371, %v2371
    %v2438 = vpack.c.bf16 %v2373, %v2373
    %2439 = vst [vmem:[%s3] sm:$0xf] %v2375
    %2440 = vst [vmem:[%s3 + $0x4] sm:$0xf] %v2376
    %2441 = vst [vmem:[%s3 + $0x8] sm:$0xf] %v2377
    %2442 = vst [vmem:[%s3 + $0xc] sm:$0xf] %v2378
    %2443 = vst [vmem:[%s3 + $0x10] sm:$0xf] %v2379
    %2444 = vst [vmem:[%s3 + $0x14] sm:$0xf] %v2380
    %2445 = vst [vmem:[%s3 + $0x18] sm:$0xf] %v2381
    %2446 = vst [vmem:[%s3 + $0x1c] sm:$0xf] %v2382
    %2447 = vst [vmem:[%s3 + $0x20] sm:$0xf] %v2383
    %2448 = vst [vmem:[%s3 + $0x24] sm:$0xf] %v2384
    %2449 = vst [vmem:[%s3 + $0x28] sm:$0xf] %v2385
    %2450 = vst [vmem:[%s3 + $0x2c] sm:$0xf] %v2386
    %2451 = vst [vmem:[%s3 + $0x30] sm:$0xf] %v2387
    %2452 = vst [vmem:[%s3 + $0x34] sm:$0xf] %v2388
    %2453 = vst [vmem:[%s3 + $0x38] sm:$0xf] %v2389
    %2454 = vst [vmem:[%s3 + $0x3c] sm:$0xf] %v2390
    %2455 = vst [vmem:[%s3 + $0x40] sm:$0xf] %v2391
    %2456 = vst [vmem:[%s3 + $0x44] sm:$0xf] %v2392
    %2457 = vst [vmem:[%s3 + $0x48] sm:$0xf] %v2393
    %2458 = vst [vmem:[%s3 + $0x4c] sm:$0xf] %v2394
    %2459 = vst [vmem:[%s3 + $0x50] sm:$0xf] %v2395
    %2460 = vst [vmem:[%s3 + $0x54] sm:$0xf] %v2396
    %2461 = vst [vmem:[%s3 + $0x58] sm:$0xf] %v2397
    %2462 = vst [vmem:[%s3 + $0x5c] sm:$0xf] %v2398
    %2463 = vst [vmem:[%s3 + $0x60] sm:$0xf] %v2399
    %2464 = vst [vmem:[%s3 + $0x64] sm:$0xf] %v2400
    %2465 = vst [vmem:[%s3 + $0x68] sm:$0xf] %v2401
    %2466 = vst [vmem:[%s3 + $0x6c] sm:$0xf] %v2402
    %2467 = vst [vmem:[%s3 + $0x70] sm:$0xf] %v2403
    %2468 = vst [vmem:[%s3 + $0x74] sm:$0xf] %v2404
    %2469 = vst [vmem:[%s3 + $0x78] sm:$0xf] %v2405
    %2470 = vst [vmem:[%s3 + $0x7c] sm:$0xf] %v2406
    %2471 = vst [vmem:[%s3 + $0x80] sm:$0xf] %v2407
    %2472 = vst [vmem:[%s3 + $0x84] sm:$0xf] %v2408
    %2473 = vst [vmem:[%s3 + $0x88] sm:$0xf] %v2409
    %2474 = vst [vmem:[%s3 + $0x8c] sm:$0xf] %v2410
    %2475 = vst [vmem:[%s3 + $0x90] sm:$0xf] %v2411
    %2476 = vst [vmem:[%s3 + $0x94] sm:$0xf] %v2412
    %2477 = vst [vmem:[%s3 + $0x98] sm:$0xf] %v2413
    %2478 = vst [vmem:[%s3 + $0x9c] sm:$0xf] %v2414
    %2479 = vst [vmem:[%s3 + $0xa0] sm:$0xf] %v2415
    %2480 = vst [vmem:[%s3 + $0xa4] sm:$0xf] %v2416
    %2481 = vst [vmem:[%s3 + $0xa8] sm:$0xf] %v2417
    %2482 = vst [vmem:[%s3 + $0xac] sm:$0xf] %v2418
    %2483 = vst [vmem:[%s3 + $0xb0] sm:$0xf] %v2419
    %2484 = vst [vmem:[%s3 + $0xb4] sm:$0xf] %v2420
    %2485 = vst [vmem:[%s3 + $0xb8] sm:$0xf] %v2421
    %2486 = vst [vmem:[%s3 + $0xbc] sm:$0xf] %v2422
    %2487 = vst [vmem:[%s3 + $0xc0] sm:$0xf] %v2423
    %2488 = vst [vmem:[%s3 + $0xc4] sm:$0xf] %v2424
    %2489 = vst [vmem:[%s3 + $0xc8] sm:$0xf] %v2425
    %2490 = vst [vmem:[%s3 + $0xcc] sm:$0xf] %v2426
    %2491 = vst [vmem:[%s3 + $0xd0] sm:$0xf] %v2427
    %2492 = vst [vmem:[%s3 + $0xd4] sm:$0xf] %v2428
    %2493 = vst [vmem:[%s3 + $0xd8] sm:$0xf] %v2429
    %2494 = vst [vmem:[%s3 + $0xdc] sm:$0xf] %v2430
    %2495 = vst [vmem:[%s3 + $0xe0] sm:$0xf] %v2431
    %2496 = vst [vmem:[%s3 + $0xe4] sm:$0xf] %v2432
    %2497 = vst [vmem:[%s3 + $0xe8] sm:$0xf] %v2433
    %2498 = vst [vmem:[%s3 + $0xec] sm:$0xf] %v2434
    %2499 = vst [vmem:[%s3 + $0xf0] sm:$0xf] %v2435
    %2500 = vst [vmem:[%s3 + $0xf4] sm:$0xf] %v2436
    %2501 = vst [vmem:[%s3 + $0xf8] sm:$0xf] %v2437
    %2502 = vst [vmem:[%s3 + $0xfc] sm:$0xf] %v2438
  $region21: #{stmgsc_forward.3} parent=0 // pred_fallthru
    _
  // Predicated region
  $region22: #{stmgsc_forward.3} parent=0 // pred_check
    _
  $region23: #{stmgsc_forward.3} parent=0 // pred_check_branch
    %2504 = sbr.rel (0) target = $region25
  $region24: #{stmgsc_forward.3} parent=0 // pred_region
    _
  $region25: #{stmgsc_forward.3} parent=0 // pred_fallthru
    _
  // Predicated region
  $region26: #{stmgsc_forward.3} parent=0 // pred_check
    _
  $region27: #{stmgsc_forward.3} parent=0 // pred_check_branch
    %2506 = sbr.rel (0) target = $region29
  $region28: #{stmgsc_forward.3} parent=0 // pred_region
    _
  $region29: #{stmgsc_forward.3} parent=0 // pred_fallthru
    _

</llo_original>
